<compile_context>
chip_gen: v7x
topology: tpu7x:2x2x1
jax: 0.10.0
libtpu: 0.0.40
codegen_flags: <defaults>
</compile_context>

<pallas_src>
import functools

import numpy as np
import jax
import jax.numpy as jnp
from jax.experimental import pallas as pl
from jax.experimental.pallas import tpu as pltpu

TIME_BINS = 30


# --------------------------------- kernel ----------------------------------
def dynamic_deephit_kernel(
    x_ref, mask_ref,
    wih0_ref, whh0_ref, b0_ref,
    wih1_ref, whh1_ref, b1_ref,
    wfc_ref, bfc_ref, wa1_ref, ba1_ref, wa2_ref, ba2_ref,
    wc_ref, bc_ref, wr_ref, br_ref,
    hazard_ref, attn_ref,
    *, T,
):
    f32 = jnp.float32
    _, Bt, D = x_ref.shape
    H = whh0_ref.shape[0] // 2
    G = 8 * H
    TB = T * Bt

    # Lane mask over the packed gate columns
    # [i_f i_b | f_f f_b | g_f g_b | o_f o_b]; True -> forward-direction column.
    col = jax.lax.broadcasted_iota(jnp.int32, (TB, G), 1)
    dir_mask = (col % (2 * H)) < H

    def bilstm_layer(xproj, whh):
        """Fused fwd+bwd LSTM. xproj: (T*Bt, 8H) input projections (+bias).
        Returns (T*Bt, 2H) sequence output [h_fwd(t) | h_bwd(t)] at row t*Bt+b."""
        # Hoist the fwd/bwd input select out of the recurrence: the backward
        # direction at python step s consumes time T-1-s.
        xrev = jnp.concatenate(
            [xproj[(T - 1 - s) * Bt:(T - s) * Bt, :] for s in range(T)], axis=0)
        xcomb = jnp.where(dir_mask, xproj, xrev)                        # (T*Bt, 8H)

        h = jnp.zeros((Bt, 2 * H), f32)
        c = jnp.zeros((Bt, 2 * H), f32)
        hs = []
        # T is small & static: Python unroll keeps the whole chain visible.
        for s in range(T):
            gates = xcomb[s * Bt:(s + 1) * Bt, :] + jnp.dot(
                h, whh, preferred_element_type=f32)                     # (Bt, 8H)
            sig = jax.nn.sigmoid(gates)                                  # one full-width EUP pass
            g_g = jnp.tanh(gates[:, 4 * H:6 * H])                        # tanh only on the g slice
            i_g = sig[:, 0:2 * H]
            f_g = sig[:, 2 * H:4 * H]
            o_g = sig[:, 6 * H:8 * H]
            c = f_g * c + i_g * g_g
            h = o_g * jnp.tanh(c)
            hs.append(h)
        # De-interleave fwd/bwd and time-reverse the backward half once,
        # outside the serial chain (no stores inside the recurrence).
        fwd = jnp.concatenate([hs[t][:, 0:H] for t in range(T)], axis=0)           # (T*Bt, H)
        bwd = jnp.concatenate([hs[T - 1 - t][:, H:2 * H] for t in range(T)], axis=0)
        return jnp.concatenate([fwd, bwd], axis=1)                       # (T*Bt, 2H)

    x_flat = x_ref[...].reshape(TB, D)

    # ---- layer 0 / layer 1: hoisted input projections + fused recurrences ----
    xproj0 = jnp.dot(x_flat, wih0_ref[...], preferred_element_type=f32) + b0_ref[...]
    seq0 = bilstm_layer(xproj0, whh0_ref[...])
    # inter-layer dropout is identity at inference
    xproj1 = jnp.dot(seq0, wih1_ref[...], preferred_element_type=f32) + b1_ref[...]
    seq1 = bilstm_layer(xproj1, whh1_ref[...])                           # (T*Bt, 2H)

    # ---- fc + attention projections, batched over all timesteps --------------
    fc_out = jnp.tanh(
        jnp.dot(seq1, wfc_ref[...], preferred_element_type=f32) + bfc_ref[...])      # (T*Bt, H)
    a1 = jnp.tanh(
        jnp.dot(fc_out, wa1_ref[...], preferred_element_type=f32) + ba1_ref[...])    # (T*Bt, H)
    scores = jnp.dot(a1, wa2_ref[...], preferred_element_type=f32) + ba2_ref[...]    # (T*Bt, 1)

    # ---- masked softmax over time + context, on (T, Bt, .) slabs --------------
    scores3 = scores.reshape(T, Bt, 1)
    # NOTE: a fully-masked row yields NaN attention, same as the PyTorch reference.
    scores3 = jnp.where(mask_ref[...] == 0.0, -jnp.inf, scores3)
    m = jnp.max(scores3, axis=0, keepdims=True)                          # (1, Bt, 1)
    e = jnp.exp(scores3 - m)
    denom = jnp.sum(e, axis=0, keepdims=True)
    attn3 = e * (1.0 / denom)                                            # exact recip: 5e-5 budget
    attn_ref[...] = attn3                                                # one store

    fc3 = fc_out.reshape(T, Bt, H)
    context = jnp.sum(attn3 * fc3, axis=0)                               # (Bt, H)

    # ---- cause-specific fc (ReLU) + fused risk heads + sigmoid ----------------
    hcs = jnp.maximum(
        jnp.dot(context, wc_ref[...], preferred_element_type=f32) + bc_ref[...], 0.0)
    # Lane-dense (Bt, 128) store; valid lanes sliced off in the wrapper.
    hazard_ref[...] = jax.nn.sigmoid(
        jnp.dot(hcs, wr_ref[...], preferred_element_type=f32) + br_ref[...])


# ----------------------------- weight packing --------------------------------
def _pack_dir_cols(wf, wb, H):
    """Interleave fwd/bwd columns per gate: [i_f i_b | f_f f_b | g_f g_b | o_f o_b]."""
    cols = []
    for g in range(4):
        cols.append(wf[:, g * H:(g + 1) * H])
        cols.append(wb[:, g * H:(g + 1) * H])
    return jnp.concatenate(cols, axis=1)


def _pack_hh_blockdiag(whh_f, whh_b, H):
    """Block-diagonal recurrent weights: rows 0:H act on h_fwd, rows H:2H on h_bwd."""
    zero = jnp.zeros((H, H), jnp.float32)
    cols = []
    for g in range(4):
        cols.append(jnp.concatenate([whh_f[:, g * H:(g + 1) * H], zero], axis=0))
        cols.append(jnp.concatenate([zero, whh_b[:, g * H:(g + 1) * H]], axis=0))
    return jnp.concatenate(cols, axis=1)                                  # (2H, 8H)


# -------------------------------- wrapper -----------------------------------
def dynamic_deephit_forward(x, mask, params, num_risks):
    B, T, D = x.shape
    H = params['whh0f'].shape[0]

    # Sublane-aligned batch padding (multiple of 8). Padded rows: x = 0,
    # mask = 1 (kept finite); they are sliced off after the kernel.
    B_pad = max(8, ((B + 7) // 8) * 8)
    pad_b = B_pad - B
    x_p = jnp.pad(x.astype(jnp.float32), ((0, pad_b), (0, 0), (0, 0)))
    mask_p = jnp.pad(mask.astype(jnp.float32), ((0, pad_b), (0, 0)), constant_values=1.0)

    # Time-major slabs: (T, B_pad, D) / (T, B_pad, 1).
    x_tm = jnp.transpose(x_p, (1, 0, 2))
    mask_tm = jnp.transpose(mask_p, (1, 0))[..., None]

    # Fused, lane-padded risk heads.
    out_cols = num_risks * TIME_BINS
    haz_lanes = ((out_cols + 127) // 128) * 128
    wr_cat = jnp.concatenate([params['wr'][r] for r in range(num_risks)], axis=1)
    br_cat = jnp.concatenate([params['br'][r] for r in range(num_risks)], axis=1)
    wr_pad = jnp.pad(wr_cat, ((0, 0), (0, haz_lanes - out_cols)))
    br_pad = jnp.pad(br_cat, ((0, 0), (0, haz_lanes - out_cols)))

    inputs = [
        x_tm, mask_tm,
        _pack_dir_cols(params['wih0f'], params['wih0b'], H),
        _pack_hh_blockdiag(params['whh0f'], params['whh0b'], H),
        _pack_dir_cols(params['b0f'], params['b0b'], H),
        _pack_dir_cols(params['wih1f'], params['wih1b'], H),
        _pack_hh_blockdiag(params['whh1f'], params['whh1b'], H),
        _pack_dir_cols(params['b1f'], params['b1b'], H),
        params['wfc'], params['bfc'],
        params['wa1'], params['ba1'],
        params['wa2'], params['ba2'],
        params['wc'], params['bc'],
        wr_pad, br_pad,
    ]

    # One batch tile per grid step; grid axis is parallel so larger batches
    # shard across v7x's two TensorCores.
    B_TILE = B_pad
    grid = (B_pad // B_TILE,)

    def full_spec(a):
        return pl.BlockSpec(tuple(a.shape), lambda b: (0,) * a.ndim)

    in_specs = [
        pl.BlockSpec((T, B_TILE, D), lambda b: (0, b, 0)),
        pl.BlockSpec((T, B_TILE, 1), lambda b: (0, b, 0)),
    ] + [full_spec(a) for a in inputs[2:]]
    out_specs = (
        pl.BlockSpec((B_TILE, haz_lanes), lambda b: (b, 0)),
        pl.BlockSpec((T, B_TILE, 1), lambda b: (0, b, 0)),
    )

    hazard_flat, attn_tm = pl.pallas_call(
        functools.partial(dynamic_deephit_kernel, T=T),
        out_shape=(jax.ShapeDtypeStruct((B_pad, haz_lanes), jnp.float32),
                   jax.ShapeDtypeStruct((T, B_pad, 1), jnp.float32)),
        grid=grid,
        in_specs=in_specs,
        out_specs=out_specs,
        compiler_params=pltpu.CompilerParams(
            dimension_semantics=("parallel",)),
    )(*inputs)

    hazard = hazard_flat[:B, :out_cols].reshape(B, num_risks, TIME_BINS)   # (B, R, 30)
    attn = jnp.transpose(attn_tm[:, :B, 0], (1, 0))[..., None]             # (B, T, 1)
    return hazard, attn


# --------------------------- deterministic params ---------------------------
def init_params(key, input_dim, hidden_dims, num_risks):
    H = hidden_dims[0]
    H2 = hidden_dims[1] if len(hidden_dims) > 1 else H
    keys = iter(jax.random.split(key, 32))

    def unif(shape, fan_in):
        s = 1.0 / (fan_in ** 0.5)
        return jax.random.uniform(next(keys), shape, jnp.float32, -s, s)

    p = {}
    # LSTM layer 0 (input_dim -> H) and layer 1 (2H -> H), forward / backward.
    p['wih0f'] = unif((input_dim, 4 * H), H); p['whh0f'] = unif((H, 4 * H), H); p['b0f'] = unif((1, 4 * H), H)
    p['wih0b'] = unif((input_dim, 4 * H), H); p['whh0b'] = unif((H, 4 * H), H); p['b0b'] = unif((1, 4 * H), H)
    p['wih1f'] = unif((2 * H, 4 * H), H);     p['whh1f'] = unif((H, 4 * H), H); p['b1f'] = unif((1, 4 * H), H)
    p['wih1b'] = unif((2 * H, 4 * H), H);     p['whh1b'] = unif((H, 4 * H), H); p['b1b'] = unif((1, 4 * H), H)
    # fc (2H -> H) + Tanh
    p['wfc'] = unif((2 * H, H), 2 * H); p['bfc'] = unif((1, H), 2 * H)
    # attention: Linear(H, H) + Tanh + Linear(H, 1)
    p['wa1'] = unif((H, H), H); p['ba1'] = unif((1, H), H)
    p['wa2'] = unif((H, 1), H); p['ba2'] = unif((1, 1), H)
    # cause-specific fc (H -> H2) + ReLU
    p['wc'] = unif((H, H2), H); p['bc'] = unif((1, H2), H)
    # risk heads (H2 -> TIME_BINS) x num_risks
    p['wr'] = unif((num_risks, H2, TIME_BINS), H2)
    p['br'] = unif((num_risks, 1, TIME_BINS), H2)
    return p


# ----------------------------- pure-JAX reference ----------------------------
def _lstm_dir_ref(xs, w_ih, w_hh, b, H, reverse):
    def step(carry, xt):
        h, c = carry
        gates = xt @ w_ih + h @ w_hh + b
        i, f, g, o = jnp.split(gates, 4, axis=-1)
        i, f, g, o = jax.nn.sigmoid(i), jax.nn.sigmoid(f), jnp.tanh(g), jax.nn.sigmoid(o)
        c = f * c + i * g
        h = o * jnp.tanh(c)
        return (h, c), h

    B = xs.shape[1]
    init = (jnp.zeros((B, H), jnp.float32), jnp.zeros((B, H), jnp.float32))
    xs_s = xs[::-1] if reverse else xs
    _, hs = jax.lax.scan(step, init, xs_s)
    return hs[::-1] if reverse else hs


def reference_forward(x, mask, p, H, num_risks):
    xs = jnp.transpose(x, (1, 0, 2))                                    # (T, B, D)
    o0f = _lstm_dir_ref(xs, p['wih0f'], p['whh0f'], p['b0f'], H, False)
    o0b = _lstm_dir_ref(xs, p['wih0b'], p['whh0b'], p['b0b'], H, True)
    in1 = jnp.concatenate([o0f, o0b], axis=-1)
    o1f = _lstm_dir_ref(in1, p['wih1f'], p['whh1f'], p['b1f'], H, False)
    o1b = _lstm_dir_ref(in1, p['wih1b'], p['whh1b'], p['b1b'], H, True)
    lstm_out = jnp.transpose(jnp.concatenate([o1f, o1b], axis=-1), (1, 0, 2))  # (B, T, 2H)
    fc_out = jnp.tanh(lstm_out @ p['wfc'] + p['bfc'])                   # (B, T, H)
    a1 = jnp.tanh(fc_out @ p['wa1'] + p['ba1'])
    scores = a1 @ p['wa2'] + p['ba2']                                   # (B, T, 1)
    scores = jnp.where(mask[..., None] == 0, -jnp.inf, scores)
    attn = jax.nn.softmax(scores, axis=1)
    context = jnp.sum(attn * fc_out, axis=1)                            # (B, H)
    hcs = jax.nn.relu(context @ p['wc'] + p['bc'])
    hazards = jnp.stack(
        [jax.nn.sigmoid(hcs @ p['wr'][r] + p['br'][r]) for r in range(num_risks)], axis=1)
    return hazards, attn


# ----------------------------------- main ------------------------------------
if __name__ == "__main__":
    key = jax.random.PRNGKey(0)
    B, T, D = 2, 8, 6
    hidden_dims = [32, 16]
    num_risks = 3

    kx, kp = jax.random.split(key, 2)
    x = jax.random.normal(kx, (B, T, D), jnp.float32)
    lengths = jnp.array([T, T - 3])
    mask = (jnp.arange(T)[None, :] < lengths[:, None]).astype(jnp.float32)   # (B, T)

    params = init_params(kp, D, hidden_dims, num_risks)

    hazard, attn = dynamic_deephit_forward(x, mask, params, num_risks)
    jax.block_until_ready((hazard, attn))

    haz_ref, attn_ref = reference_forward(x, mask, params, hidden_dims[0], num_risks)
    assert hazard.shape == (B, num_risks, TIME_BINS)
    assert attn.shape == (B, T, 1)
    np.testing.assert_allclose(np.asarray(hazard), np.asarray(haz_ref), rtol=5e-5, atol=5e-5)
    np.testing.assert_allclose(np.asarray(attn), np.asarray(attn_ref), rtol=5e-5, atol=5e-5)
    print("KERNEL_OK")
</pallas_src>

<mosaic_0001>
module attributes {stable_mosaic.version = 11 : i64} {
  func.func @dynamic_deephit_kernel(%arg0: i32, %arg1: memref<8x8x6xf32, #tpu.memory_space<vmem>>, %arg2: memref<8x8x1xf32, #tpu.memory_space<vmem>>, %arg3: memref<6x256xf32, #tpu.memory_space<vmem>>, %arg4: memref<64x256xf32, #tpu.memory_space<vmem>>, %arg5: memref<1x256xf32, #tpu.memory_space<vmem>>, %arg6: memref<64x256xf32, #tpu.memory_space<vmem>>, %arg7: memref<64x256xf32, #tpu.memory_space<vmem>>, %arg8: memref<1x256xf32, #tpu.memory_space<vmem>>, %arg9: memref<64x32xf32, #tpu.memory_space<vmem>>, %arg10: memref<1x32xf32, #tpu.memory_space<vmem>>, %arg11: memref<32x32xf32, #tpu.memory_space<vmem>>, %arg12: memref<1x32xf32, #tpu.memory_space<vmem>>, %arg13: memref<32x1xf32, #tpu.memory_space<vmem>>, %arg14: memref<1x1xf32, #tpu.memory_space<vmem>>, %arg15: memref<32x16xf32, #tpu.memory_space<vmem>>, %arg16: memref<1x16xf32, #tpu.memory_space<vmem>>, %arg17: memref<16x128xf32, #tpu.memory_space<vmem>>, %arg18: memref<1x128xf32, #tpu.memory_space<vmem>>, %arg19: memref<8x128xf32, #tpu.memory_space<vmem>>, %arg20: memref<8x8x1xf32, #tpu.memory_space<vmem>>) attributes {dimension_semantics = [#tpu.dimension_semantics<parallel>], iteration_bounds = array<i64: 1>, scalar_prefetch = 0 : i64, scratch_operands = 0 : i64, tpu.core_type = #tpu.core_type<tc>, window_params = [{transform_indices = @transform_0, window_bounds = array<i64: 8, 8, 6>}, {transform_indices = @transform_1, window_bounds = array<i64: 8, 8, 1>}, {pipeline_mode = #tpu.pipeline_mode<synchronous>, transform_indices = @transform_2, window_bounds = array<i64: 6, 256>}, {pipeline_mode = #tpu.pipeline_mode<synchronous>, transform_indices = @transform_3, window_bounds = array<i64: 64, 256>}, {pipeline_mode = #tpu.pipeline_mode<synchronous>, transform_indices = @transform_4, window_bounds = array<i64: 1, 256>}, {pipeline_mode = #tpu.pipeline_mode<synchronous>, transform_indices = @transform_5, window_bounds = array<i64: 64, 256>}, {pipeline_mode = #tpu.pipeline_mode<synchronous>, transform_indices = @transform_6, window_bounds = array<i64: 64, 256>}, {pipeline_mode = #tpu.pipeline_mode<synchronous>, transform_indices = @transform_7, window_bounds = array<i64: 1, 256>}, {pipeline_mode = #tpu.pipeline_mode<synchronous>, transform_indices = @transform_8, window_bounds = array<i64: 64, 32>}, {pipeline_mode = #tpu.pipeline_mode<synchronous>, transform_indices = @transform_9, window_bounds = array<i64: 1, 32>}, {pipeline_mode = #tpu.pipeline_mode<synchronous>, transform_indices = @transform_10, window_bounds = array<i64: 32, 32>}, {pipeline_mode = #tpu.pipeline_mode<synchronous>, transform_indices = @transform_11, window_bounds = array<i64: 1, 32>}, {pipeline_mode = #tpu.pipeline_mode<synchronous>, transform_indices = @transform_12, window_bounds = array<i64: 32, 1>}, {pipeline_mode = #tpu.pipeline_mode<synchronous>, transform_indices = @transform_13, window_bounds = array<i64: 1, 1>}, {pipeline_mode = #tpu.pipeline_mode<synchronous>, transform_indices = @transform_14, window_bounds = array<i64: 32, 16>}, {pipeline_mode = #tpu.pipeline_mode<synchronous>, transform_indices = @transform_15, window_bounds = array<i64: 1, 16>}, {pipeline_mode = #tpu.pipeline_mode<synchronous>, transform_indices = @transform_16, window_bounds = array<i64: 16, 128>}, {pipeline_mode = #tpu.pipeline_mode<synchronous>, transform_indices = @transform_17, window_bounds = array<i64: 1, 128>}, {transform_indices = @transform_18, window_bounds = array<i64: 8, 128>}, {transform_indices = @transform_19, window_bounds = array<i64: 8, 8, 1>}]} {
    %0 = tpu.iota {dimensions = array<i32: 1>} : vector<64x256xi32>
    %c64_i32 = arith.constant 64 : i32
    %c0_i32 = arith.constant 0 : i32
    %1 = arith.cmpi eq, %c64_i32, %c0_i32 : i32
    %c1_i32 = arith.constant 1 : i32
    %2 = arith.select %1, %c1_i32, %c64_i32 : i32
    %3 = vector.broadcast %2 : i32 to vector<64x256xi32>
    %4 = arith.remsi %0, %3 : vector<64x256xi32>
    %c0_i32_0 = arith.constant 0 : i32
    %5 = vector.broadcast %c0_i32_0 : i32 to vector<64x256xi32>
    %6 = arith.cmpi ne, %4, %5 : vector<64x256xi32>
    %c0_i32_1 = arith.constant 0 : i32
    %7 = vector.broadcast %c0_i32_1 : i32 to vector<64x256xi32>
    %8 = arith.cmpi slt, %4, %7 : vector<64x256xi32>
    %c0_i32_2 = arith.constant 0 : i32
    %9 = arith.cmpi slt, %2, %c0_i32_2 : i32
    %10 = vector.broadcast %9 : i1 to vector<64x256xi1>
    %11 = vector.broadcast %10 : vector<64x256xi1> to vector<64x256xi1>
    %12 = arith.xori %8, %11 : vector<64x256xi1>
    %13 = arith.andi %12, %6 : vector<64x256xi1>
    %14 = vector.broadcast %2 : i32 to vector<64x256xi32>
    %15 = arith.addi %4, %14 : vector<64x256xi32>
    %16 = arith.select %13, %15, %4 : vector<64x256xi1>, vector<64x256xi32>
    %c32_i32 = arith.constant 32 : i32
    %17 = vector.broadcast %c32_i32 : i32 to vector<64x256xi32>
    %18 = arith.cmpi slt, %16, %17 : vector<64x256xi32>
    %c0 = arith.constant 0 : index
    %c0_3 = arith.constant 0 : index
    %c0_4 = arith.constant 0 : index
    %19 = vector.load %arg1[%c0, %c0_3, %c0_4] : memref<8x8x6xf32, #tpu.memory_space<vmem>>, vector<8x8x6xf32>
    %20 = vector.shape_cast %19 : vector<8x8x6xf32> to vector<64x6xf32>
    %c0_5 = arith.constant 0 : index
    %c0_6 = arith.constant 0 : index
    %21 = vector.load %arg3[%c0_5, %c0_6] : memref<6x256xf32, #tpu.memory_space<vmem>>, vector<6x256xf32>
    %cst = arith.constant dense<0.000000e+00> : vector<64x256xf32>
    %22 = tpu.matmul %20, %21, %cst {dimension_numbers = #tpu.dot_dimension_numbers<[1], [0], [0], [1], [0, 0, 1, 1], [], []>} : vector<64x6xf32>, vector<6x256xf32>, vector<64x256xf32> -> vector<64x256xf32>
    %c0_7 = arith.constant 0 : index
    %c0_8 = arith.constant 0 : index
    %23 = vector.load %arg5[%c0_7, %c0_8] : memref<1x256xf32, #tpu.memory_space<vmem>>, vector<1x256xf32>
    %24 = vector.broadcast %23 : vector<1x256xf32> to vector<64x256xf32>
    %25 = arith.addf %22, %24 : vector<64x256xf32>
    %c0_9 = arith.constant 0 : index
    %c0_10 = arith.constant 0 : index
    %26 = vector.load %arg4[%c0_9, %c0_10] : memref<64x256xf32, #tpu.memory_space<vmem>>, vector<64x256xf32>
    %27 = vector.extract_strided_slice %25 {offsets = [56, 0], sizes = [8, 256], strides = [1, 1]} : vector<64x256xf32> to vector<8x256xf32>
    %28 = vector.extract_strided_slice %25 {offsets = [48, 0], sizes = [8, 256], strides = [1, 1]} : vector<64x256xf32> to vector<8x256xf32>
    %29 = vector.extract_strided_slice %25 {offsets = [40, 0], sizes = [8, 256], strides = [1, 1]} : vector<64x256xf32> to vector<8x256xf32>
    %30 = vector.extract_strided_slice %25 {offsets = [32, 0], sizes = [8, 256], strides = [1, 1]} : vector<64x256xf32> to vector<8x256xf32>
    %31 = vector.extract_strided_slice %25 {offsets = [24, 0], sizes = [8, 256], strides = [1, 1]} : vector<64x256xf32> to vector<8x256xf32>
    %32 = vector.extract_strided_slice %25 {offsets = [16, 0], sizes = [8, 256], strides = [1, 1]} : vector<64x256xf32> to vector<8x256xf32>
    %33 = vector.extract_strided_slice %25 {offsets = [8, 0], sizes = [8, 256], strides = [1, 1]} : vector<64x256xf32> to vector<8x256xf32>
    %34 = vector.extract_strided_slice %25 {offsets = [0, 0], sizes = [8, 256], strides = [1, 1]} : vector<64x256xf32> to vector<8x256xf32>
    %35 = tpu.concatenate %27, %28, %29, %30, %31, %32, %33, %34 in 0 : vector<8x256xf32>, vector<8x256xf32>, vector<8x256xf32>, vector<8x256xf32>, vector<8x256xf32>, vector<8x256xf32>, vector<8x256xf32>, vector<8x256xf32> -> vector<64x256xf32>
    %36 = arith.select %18, %25, %35 : vector<64x256xi1>, vector<64x256xf32>
    %cst_11 = arith.constant 0.000000e+00 : f32
    %37 = vector.broadcast %cst_11 : f32 to vector<8x64xf32>
    %cst_12 = arith.constant 0.000000e+00 : f32
    %38 = vector.broadcast %cst_12 : f32 to vector<8x64xf32>
    %39 = vector.extract_strided_slice %36 {offsets = [0, 0], sizes = [8, 256], strides = [1, 1]} : vector<64x256xf32> to vector<8x256xf32>
    %cst_13 = arith.constant dense<0.000000e+00> : vector<8x256xf32>
    %40 = tpu.matmul %37, %26, %cst_13 {dimension_numbers = #tpu.dot_dimension_numbers<[1], [0], [0], [1], [0, 0, 1, 1], [], []>} : vector<8x64xf32>, vector<64x256xf32>, vector<8x256xf32> -> vector<8x256xf32>
    %41 = arith.addf %39, %40 : vector<8x256xf32>
    %42 = arith.negf %41 : vector<8x256xf32>
    %43 = math.exp %42 : vector<8x256xf32>
    %cst_14 = arith.constant 1.000000e+00 : f32
    %44 = vector.broadcast %cst_14 : f32 to vector<8x256xf32>
    %45 = arith.addf %44, %43 : vector<8x256xf32>
    %46 = arith.divf %44, %45 : vector<8x256xf32>
    %47 = vector.extract_strided_slice %41 {offsets = [0, 128], sizes = [8, 64], strides = [1, 1]} : vector<8x256xf32> to vector<8x64xf32>
    %48 = math.tanh %47 : vector<8x64xf32>
    %49 = vector.extract_strided_slice %46 {offsets = [0, 0], sizes = [8, 64], strides = [1, 1]} : vector<8x256xf32> to vector<8x64xf32>
    %50 = vector.extract_strided_slice %46 {offsets = [0, 64], sizes = [8, 64], strides = [1, 1]} : vector<8x256xf32> to vector<8x64xf32>
    %51 = vector.extract_strided_slice %46 {offsets = [0, 192], sizes = [8, 64], strides = [1, 1]} : vector<8x256xf32> to vector<8x64xf32>
    %52 = arith.mulf %50, %38 : vector<8x64xf32>
    %53 = arith.mulf %49, %48 : vector<8x64xf32>
    %54 = arith.addf %52, %53 : vector<8x64xf32>
    %55 = math.tanh %54 : vector<8x64xf32>
    %56 = arith.mulf %51, %55 : vector<8x64xf32>
    %57 = vector.extract_strided_slice %36 {offsets = [8, 0], sizes = [8, 256], strides = [1, 1]} : vector<64x256xf32> to vector<8x256xf32>
    %cst_15 = arith.constant dense<0.000000e+00> : vector<8x256xf32>
    %58 = tpu.matmul %56, %26, %cst_15 {dimension_numbers = #tpu.dot_dimension_numbers<[1], [0], [0], [1], [0, 0, 1, 1], [], []>} : vector<8x64xf32>, vector<64x256xf32>, vector<8x256xf32> -> vector<8x256xf32>
    %59 = arith.addf %57, %58 : vector<8x256xf32>
    %60 = arith.negf %59 : vector<8x256xf32>
    %61 = math.exp %60 : vector<8x256xf32>
    %cst_16 = arith.constant 1.000000e+00 : f32
    %62 = vector.broadcast %cst_16 : f32 to vector<8x256xf32>
    %63 = arith.addf %62, %61 : vector<8x256xf32>
    %64 = arith.divf %62, %63 : vector<8x256xf32>
    %65 = vector.extract_strided_slice %59 {offsets = [0, 128], sizes = [8, 64], strides = [1, 1]} : vector<8x256xf32> to vector<8x64xf32>
    %66 = math.tanh %65 : vector<8x64xf32>
    %67 = vector.extract_strided_slice %64 {offsets = [0, 0], sizes = [8, 64], strides = [1, 1]} : vector<8x256xf32> to vector<8x64xf32>
    %68 = vector.extract_strided_slice %64 {offsets = [0, 64], sizes = [8, 64], strides = [1, 1]} : vector<8x256xf32> to vector<8x64xf32>
    %69 = vector.extract_strided_slice %64 {offsets = [0, 192], sizes = [8, 64], strides = [1, 1]} : vector<8x256xf32> to vector<8x64xf32>
    %70 = arith.mulf %68, %54 : vector<8x64xf32>
    %71 = arith.mulf %67, %66 : vector<8x64xf32>
    %72 = arith.addf %70, %71 : vector<8x64xf32>
    %73 = math.tanh %72 : vector<8x64xf32>
    %74 = arith.mulf %69, %73 : vector<8x64xf32>
    %75 = vector.extract_strided_slice %36 {offsets = [16, 0], sizes = [8, 256], strides = [1, 1]} : vector<64x256xf32> to vector<8x256xf32>
    %cst_17 = arith.constant dense<0.000000e+00> : vector<8x256xf32>
    %76 = tpu.matmul %74, %26, %cst_17 {dimension_numbers = #tpu.dot_dimension_numbers<[1], [0], [0], [1], [0, 0, 1, 1], [], []>} : vector<8x64xf32>, vector<64x256xf32>, vector<8x256xf32> -> vector<8x256xf32>
    %77 = arith.addf %75, %76 : vector<8x256xf32>
    %78 = arith.negf %77 : vector<8x256xf32>
    %79 = math.exp %78 : vector<8x256xf32>
    %cst_18 = arith.constant 1.000000e+00 : f32
    %80 = vector.broadcast %cst_18 : f32 to vector<8x256xf32>
    %81 = arith.addf %80, %79 : vector<8x256xf32>
    %82 = arith.divf %80, %81 : vector<8x256xf32>
    %83 = vector.extract_strided_slice %77 {offsets = [0, 128], sizes = [8, 64], strides = [1, 1]} : vector<8x256xf32> to vector<8x64xf32>
    %84 = math.tanh %83 : vector<8x64xf32>
    %85 = vector.extract_strided_slice %82 {offsets = [0, 0], sizes = [8, 64], strides = [1, 1]} : vector<8x256xf32> to vector<8x64xf32>
    %86 = vector.extract_strided_slice %82 {offsets = [0, 64], sizes = [8, 64], strides = [1, 1]} : vector<8x256xf32> to vector<8x64xf32>
    %87 = vector.extract_strided_slice %82 {offsets = [0, 192], sizes = [8, 64], strides = [1, 1]} : vector<8x256xf32> to vector<8x64xf32>
    %88 = arith.mulf %86, %72 : vector<8x64xf32>
    %89 = arith.mulf %85, %84 : vector<8x64xf32>
    %90 = arith.addf %88, %89 : vector<8x64xf32>
    %91 = math.tanh %90 : vector<8x64xf32>
    %92 = arith.mulf %87, %91 : vector<8x64xf32>
    %93 = vector.extract_strided_slice %36 {offsets = [24, 0], sizes = [8, 256], strides = [1, 1]} : vector<64x256xf32> to vector<8x256xf32>
    %cst_19 = arith.constant dense<0.000000e+00> : vector<8x256xf32>
    %94 = tpu.matmul %92, %26, %cst_19 {dimension_numbers = #tpu.dot_dimension_numbers<[1], [0], [0], [1], [0, 0, 1, 1], [], []>} : vector<8x64xf32>, vector<64x256xf32>, vector<8x256xf32> -> vector<8x256xf32>
    %95 = arith.addf %93, %94 : vector<8x256xf32>
    %96 = arith.negf %95 : vector<8x256xf32>
    %97 = math.exp %96 : vector<8x256xf32>
    %cst_20 = arith.constant 1.000000e+00 : f32
    %98 = vector.broadcast %cst_20 : f32 to vector<8x256xf32>
    %99 = arith.addf %98, %97 : vector<8x256xf32>
    %100 = arith.divf %98, %99 : vector<8x256xf32>
    %101 = vector.extract_strided_slice %95 {offsets = [0, 128], sizes = [8, 64], strides = [1, 1]} : vector<8x256xf32> to vector<8x64xf32>
    %102 = math.tanh %101 : vector<8x64xf32>
    %103 = vector.extract_strided_slice %100 {offsets = [0, 0], sizes = [8, 64], strides = [1, 1]} : vector<8x256xf32> to vector<8x64xf32>
    %104 = vector.extract_strided_slice %100 {offsets = [0, 64], sizes = [8, 64], strides = [1, 1]} : vector<8x256xf32> to vector<8x64xf32>
    %105 = vector.extract_strided_slice %100 {offsets = [0, 192], sizes = [8, 64], strides = [1, 1]} : vector<8x256xf32> to vector<8x64xf32>
    %106 = arith.mulf %104, %90 : vector<8x64xf32>
    %107 = arith.mulf %103, %102 : vector<8x64xf32>
    %108 = arith.addf %106, %107 : vector<8x64xf32>
    %109 = math.tanh %108 : vector<8x64xf32>
    %110 = arith.mulf %105, %109 : vector<8x64xf32>
    %111 = vector.extract_strided_slice %36 {offsets = [32, 0], sizes = [8, 256], strides = [1, 1]} : vector<64x256xf32> to vector<8x256xf32>
    %cst_21 = arith.constant dense<0.000000e+00> : vector<8x256xf32>
    %112 = tpu.matmul %110, %26, %cst_21 {dimension_numbers = #tpu.dot_dimension_numbers<[1], [0], [0], [1], [0, 0, 1, 1], [], []>} : vector<8x64xf32>, vector<64x256xf32>, vector<8x256xf32> -> vector<8x256xf32>
    %113 = arith.addf %111, %112 : vector<8x256xf32>
    %114 = arith.negf %113 : vector<8x256xf32>
    %115 = math.exp %114 : vector<8x256xf32>
    %cst_22 = arith.constant 1.000000e+00 : f32
    %116 = vector.broadcast %cst_22 : f32 to vector<8x256xf32>
    %117 = arith.addf %116, %115 : vector<8x256xf32>
    %118 = arith.divf %116, %117 : vector<8x256xf32>
    %119 = vector.extract_strided_slice %113 {offsets = [0, 128], sizes = [8, 64], strides = [1, 1]} : vector<8x256xf32> to vector<8x64xf32>
    %120 = math.tanh %119 : vector<8x64xf32>
    %121 = vector.extract_strided_slice %118 {offsets = [0, 0], sizes = [8, 64], strides = [1, 1]} : vector<8x256xf32> to vector<8x64xf32>
    %122 = vector.extract_strided_slice %118 {offsets = [0, 64], sizes = [8, 64], strides = [1, 1]} : vector<8x256xf32> to vector<8x64xf32>
    %123 = vector.extract_strided_slice %118 {offsets = [0, 192], sizes = [8, 64], strides = [1, 1]} : vector<8x256xf32> to vector<8x64xf32>
    %124 = arith.mulf %122, %108 : vector<8x64xf32>
    %125 = arith.mulf %121, %120 : vector<8x64xf32>
    %126 = arith.addf %124, %125 : vector<8x64xf32>
    %127 = math.tanh %126 : vector<8x64xf32>
    %128 = arith.mulf %123, %127 : vector<8x64xf32>
    %129 = vector.extract_strided_slice %36 {offsets = [40, 0], sizes = [8, 256], strides = [1, 1]} : vector<64x256xf32> to vector<8x256xf32>
    %cst_23 = arith.constant dense<0.000000e+00> : vector<8x256xf32>
    %130 = tpu.matmul %128, %26, %cst_23 {dimension_numbers = #tpu.dot_dimension_numbers<[1], [0], [0], [1], [0, 0, 1, 1], [], []>} : vector<8x64xf32>, vector<64x256xf32>, vector<8x256xf32> -> vector<8x256xf32>
    %131 = arith.addf %129, %130 : vector<8x256xf32>
    %132 = arith.negf %131 : vector<8x256xf32>
    %133 = math.exp %132 : vector<8x256xf32>
    %cst_24 = arith.constant 1.000000e+00 : f32
    %134 = vector.broadcast %cst_24 : f32 to vector<8x256xf32>
    %135 = arith.addf %134, %133 : vector<8x256xf32>
    %136 = arith.divf %134, %135 : vector<8x256xf32>
    %137 = vector.extract_strided_slice %131 {offsets = [0, 128], sizes = [8, 64], strides = [1, 1]} : vector<8x256xf32> to vector<8x64xf32>
    %138 = math.tanh %137 : vector<8x64xf32>
    %139 = vector.extract_strided_slice %136 {offsets = [0, 0], sizes = [8, 64], strides = [1, 1]} : vector<8x256xf32> to vector<8x64xf32>
    %140 = vector.extract_strided_slice %136 {offsets = [0, 64], sizes = [8, 64], strides = [1, 1]} : vector<8x256xf32> to vector<8x64xf32>
    %141 = vector.extract_strided_slice %136 {offsets = [0, 192], sizes = [8, 64], strides = [1, 1]} : vector<8x256xf32> to vector<8x64xf32>
    %142 = arith.mulf %140, %126 : vector<8x64xf32>
    %143 = arith.mulf %139, %138 : vector<8x64xf32>
    %144 = arith.addf %142, %143 : vector<8x64xf32>
    %145 = math.tanh %144 : vector<8x64xf32>
    %146 = arith.mulf %141, %145 : vector<8x64xf32>
    %147 = vector.extract_strided_slice %36 {offsets = [48, 0], sizes = [8, 256], strides = [1, 1]} : vector<64x256xf32> to vector<8x256xf32>
    %cst_25 = arith.constant dense<0.000000e+00> : vector<8x256xf32>
    %148 = tpu.matmul %146, %26, %cst_25 {dimension_numbers = #tpu.dot_dimension_numbers<[1], [0], [0], [1], [0, 0, 1, 1], [], []>} : vector<8x64xf32>, vector<64x256xf32>, vector<8x256xf32> -> vector<8x256xf32>
    %149 = arith.addf %147, %148 : vector<8x256xf32>
    %150 = arith.negf %149 : vector<8x256xf32>
    %151 = math.exp %150 : vector<8x256xf32>
    %cst_26 = arith.constant 1.000000e+00 : f32
    %152 = vector.broadcast %cst_26 : f32 to vector<8x256xf32>
    %153 = arith.addf %152, %151 : vector<8x256xf32>
    %154 = arith.divf %152, %153 : vector<8x256xf32>
    %155 = vector.extract_strided_slice %149 {offsets = [0, 128], sizes = [8, 64], strides = [1, 1]} : vector<8x256xf32> to vector<8x64xf32>
    %156 = math.tanh %155 : vector<8x64xf32>
    %157 = vector.extract_strided_slice %154 {offsets = [0, 0], sizes = [8, 64], strides = [1, 1]} : vector<8x256xf32> to vector<8x64xf32>
    %158 = vector.extract_strided_slice %154 {offsets = [0, 64], sizes = [8, 64], strides = [1, 1]} : vector<8x256xf32> to vector<8x64xf32>
    %159 = vector.extract_strided_slice %154 {offsets = [0, 192], sizes = [8, 64], strides = [1, 1]} : vector<8x256xf32> to vector<8x64xf32>
    %160 = arith.mulf %158, %144 : vector<8x64xf32>
    %161 = arith.mulf %157, %156 : vector<8x64xf32>
    %162 = arith.addf %160, %161 : vector<8x64xf32>
    %163 = math.tanh %162 : vector<8x64xf32>
    %164 = arith.mulf %159, %163 : vector<8x64xf32>
    %165 = vector.extract_strided_slice %36 {offsets = [56, 0], sizes = [8, 256], strides = [1, 1]} : vector<64x256xf32> to vector<8x256xf32>
    %cst_27 = arith.constant dense<0.000000e+00> : vector<8x256xf32>
    %166 = tpu.matmul %164, %26, %cst_27 {dimension_numbers = #tpu.dot_dimension_numbers<[1], [0], [0], [1], [0, 0, 1, 1], [], []>} : vector<8x64xf32>, vector<64x256xf32>, vector<8x256xf32> -> vector<8x256xf32>
    %167 = arith.addf %165, %166 : vector<8x256xf32>
    %168 = arith.negf %167 : vector<8x256xf32>
    %169 = math.exp %168 : vector<8x256xf32>
    %cst_28 = arith.constant 1.000000e+00 : f32
    %170 = vector.broadcast %cst_28 : f32 to vector<8x256xf32>
    %171 = arith.addf %170, %169 : vector<8x256xf32>
    %172 = arith.divf %170, %171 : vector<8x256xf32>
    %173 = vector.extract_strided_slice %167 {offsets = [0, 128], sizes = [8, 64], strides = [1, 1]} : vector<8x256xf32> to vector<8x64xf32>
    %174 = math.tanh %173 : vector<8x64xf32>
    %175 = vector.extract_strided_slice %172 {offsets = [0, 0], sizes = [8, 64], strides = [1, 1]} : vector<8x256xf32> to vector<8x64xf32>
    %176 = vector.extract_strided_slice %172 {offsets = [0, 64], sizes = [8, 64], strides = [1, 1]} : vector<8x256xf32> to vector<8x64xf32>
    %177 = vector.extract_strided_slice %172 {offsets = [0, 192], sizes = [8, 64], strides = [1, 1]} : vector<8x256xf32> to vector<8x64xf32>
    %178 = arith.mulf %176, %162 : vector<8x64xf32>
    %179 = arith.mulf %175, %174 : vector<8x64xf32>
    %180 = arith.addf %178, %179 : vector<8x64xf32>
    %181 = math.tanh %180 : vector<8x64xf32>
    %182 = arith.mulf %177, %181 : vector<8x64xf32>
    %183 = vector.extract_strided_slice %56 {offsets = [0, 0], sizes = [8, 32], strides = [1, 1]} : vector<8x64xf32> to vector<8x32xf32>
    %184 = vector.extract_strided_slice %74 {offsets = [0, 0], sizes = [8, 32], strides = [1, 1]} : vector<8x64xf32> to vector<8x32xf32>
    %185 = vector.extract_strided_slice %92 {offsets = [0, 0], sizes = [8, 32], strides = [1, 1]} : vector<8x64xf32> to vector<8x32xf32>
    %186 = vector.extract_strided_slice %110 {offsets = [0, 0], sizes = [8, 32], strides = [1, 1]} : vector<8x64xf32> to vector<8x32xf32>
    %187 = vector.extract_strided_slice %128 {offsets = [0, 0], sizes = [8, 32], strides = [1, 1]} : vector<8x64xf32> to vector<8x32xf32>
    %188 = vector.extract_strided_slice %146 {offsets = [0, 0], sizes = [8, 32], strides = [1, 1]} : vector<8x64xf32> to vector<8x32xf32>
    %189 = vector.extract_strided_slice %164 {offsets = [0, 0], sizes = [8, 32], strides = [1, 1]} : vector<8x64xf32> to vector<8x32xf32>
    %190 = vector.extract_strided_slice %182 {offsets = [0, 0], sizes = [8, 32], strides = [1, 1]} : vector<8x64xf32> to vector<8x32xf32>
    %191 = tpu.concatenate %183, %184, %185, %186, %187, %188, %189, %190 in 0 : vector<8x32xf32>, vector<8x32xf32>, vector<8x32xf32>, vector<8x32xf32>, vector<8x32xf32>, vector<8x32xf32>, vector<8x32xf32>, vector<8x32xf32> -> vector<64x32xf32>
    %192 = vector.extract_strided_slice %182 {offsets = [0, 32], sizes = [8, 32], strides = [1, 1]} : vector<8x64xf32> to vector<8x32xf32>
    %193 = vector.extract_strided_slice %164 {offsets = [0, 32], sizes = [8, 32], strides = [1, 1]} : vector<8x64xf32> to vector<8x32xf32>
    %194 = vector.extract_strided_slice %146 {offsets = [0, 32], sizes = [8, 32], strides = [1, 1]} : vector<8x64xf32> to vector<8x32xf32>
    %195 = vector.extract_strided_slice %128 {offsets = [0, 32], sizes = [8, 32], strides = [1, 1]} : vector<8x64xf32> to vector<8x32xf32>
    %196 = vector.extract_strided_slice %110 {offsets = [0, 32], sizes = [8, 32], strides = [1, 1]} : vector<8x64xf32> to vector<8x32xf32>
    %197 = vector.extract_strided_slice %92 {offsets = [0, 32], sizes = [8, 32], strides = [1, 1]} : vector<8x64xf32> to vector<8x32xf32>
    %198 = vector.extract_strided_slice %74 {offsets = [0, 32], sizes = [8, 32], strides = [1, 1]} : vector<8x64xf32> to vector<8x32xf32>
    %199 = vector.extract_strided_slice %56 {offsets = [0, 32], sizes = [8, 32], strides = [1, 1]} : vector<8x64xf32> to vector<8x32xf32>
    %200 = tpu.concatenate %192, %193, %194, %195, %196, %197, %198, %199 in 0 : vector<8x32xf32>, vector<8x32xf32>, vector<8x32xf32>, vector<8x32xf32>, vector<8x32xf32>, vector<8x32xf32>, vector<8x32xf32>, vector<8x32xf32> -> vector<64x32xf32>
    %201 = tpu.concatenate %191, %200 in 1 : vector<64x32xf32>, vector<64x32xf32> -> vector<64x64xf32>
    %c0_29 = arith.constant 0 : index
    %c0_30 = arith.constant 0 : index
    %202 = vector.load %arg6[%c0_29, %c0_30] : memref<64x256xf32, #tpu.memory_space<vmem>>, vector<64x256xf32>
    %cst_31 = arith.constant dense<0.000000e+00> : vector<64x256xf32>
    %203 = tpu.matmul %201, %202, %cst_31 {dimension_numbers = #tpu.dot_dimension_numbers<[1], [0], [0], [1], [0, 0, 1, 1], [], []>} : vector<64x64xf32>, vector<64x256xf32>, vector<64x256xf32> -> vector<64x256xf32>
    %c0_32 = arith.constant 0 : index
    %c0_33 = arith.constant 0 : index
    %204 = vector.load %arg8[%c0_32, %c0_33] : memref<1x256xf32, #tpu.memory_space<vmem>>, vector<1x256xf32>
    %205 = vector.broadcast %204 : vector<1x256xf32> to vector<64x256xf32>
    %206 = arith.addf %203, %205 : vector<64x256xf32>
    %c0_34 = arith.constant 0 : index
    %c0_35 = arith.constant 0 : index
    %207 = vector.load %arg7[%c0_34, %c0_35] : memref<64x256xf32, #tpu.memory_space<vmem>>, vector<64x256xf32>
    %208 = vector.extract_strided_slice %206 {offsets = [56, 0], sizes = [8, 256], strides = [1, 1]} : vector<64x256xf32> to vector<8x256xf32>
    %209 = vector.extract_strided_slice %206 {offsets = [48, 0], sizes = [8, 256], strides = [1, 1]} : vector<64x256xf32> to vector<8x256xf32>
    %210 = vector.extract_strided_slice %206 {offsets = [40, 0], sizes = [8, 256], strides = [1, 1]} : vector<64x256xf32> to vector<8x256xf32>
    %211 = vector.extract_strided_slice %206 {offsets = [32, 0], sizes = [8, 256], strides = [1, 1]} : vector<64x256xf32> to vector<8x256xf32>
    %212 = vector.extract_strided_slice %206 {offsets = [24, 0], sizes = [8, 256], strides = [1, 1]} : vector<64x256xf32> to vector<8x256xf32>
    %213 = vector.extract_strided_slice %206 {offsets = [16, 0], sizes = [8, 256], strides = [1, 1]} : vector<64x256xf32> to vector<8x256xf32>
    %214 = vector.extract_strided_slice %206 {offsets = [8, 0], sizes = [8, 256], strides = [1, 1]} : vector<64x256xf32> to vector<8x256xf32>
    %215 = vector.extract_strided_slice %206 {offsets = [0, 0], sizes = [8, 256], strides = [1, 1]} : vector<64x256xf32> to vector<8x256xf32>
    %216 = tpu.concatenate %208, %209, %210, %211, %212, %213, %214, %215 in 0 : vector<8x256xf32>, vector<8x256xf32>, vector<8x256xf32>, vector<8x256xf32>, vector<8x256xf32>, vector<8x256xf32>, vector<8x256xf32>, vector<8x256xf32> -> vector<64x256xf32>
    %217 = arith.select %18, %206, %216 : vector<64x256xi1>, vector<64x256xf32>
    %cst_36 = arith.constant 0.000000e+00 : f32
    %218 = vector.broadcast %cst_36 : f32 to vector<8x64xf32>
    %cst_37 = arith.constant 0.000000e+00 : f32
    %219 = vector.broadcast %cst_37 : f32 to vector<8x64xf32>
    %220 = vector.extract_strided_slice %217 {offsets = [0, 0], sizes = [8, 256], strides = [1, 1]} : vector<64x256xf32> to vector<8x256xf32>
    %cst_38 = arith.constant dense<0.000000e+00> : vector<8x256xf32>
    %221 = tpu.matmul %218, %207, %cst_38 {dimension_numbers = #tpu.dot_dimension_numbers<[1], [0], [0], [1], [0, 0, 1, 1], [], []>} : vector<8x64xf32>, vector<64x256xf32>, vector<8x256xf32> -> vector<8x256xf32>
    %222 = arith.addf %220, %221 : vector<8x256xf32>
    %223 = arith.negf %222 : vector<8x256xf32>
    %224 = math.exp %223 : vector<8x256xf32>
    %cst_39 = arith.constant 1.000000e+00 : f32
    %225 = vector.broadcast %cst_39 : f32 to vector<8x256xf32>
    %226 = arith.addf %225, %224 : vector<8x256xf32>
    %227 = arith.divf %225, %226 : vector<8x256xf32>
    %228 = vector.extract_strided_slice %222 {offsets = [0, 128], sizes = [8, 64], strides = [1, 1]} : vector<8x256xf32> to vector<8x64xf32>
    %229 = math.tanh %228 : vector<8x64xf32>
    %230 = vector.extract_strided_slice %227 {offsets = [0, 0], sizes = [8, 64], strides = [1, 1]} : vector<8x256xf32> to vector<8x64xf32>
    %231 = vector.extract_strided_slice %227 {offsets = [0, 64], sizes = [8, 64], strides = [1, 1]} : vector<8x256xf32> to vector<8x64xf32>
    %232 = vector.extract_strided_slice %227 {offsets = [0, 192], sizes = [8, 64], strides = [1, 1]} : vector<8x256xf32> to vector<8x64xf32>
    %233 = arith.mulf %231, %219 : vector<8x64xf32>
    %234 = arith.mulf %230, %229 : vector<8x64xf32>
    %235 = arith.addf %233, %234 : vector<8x64xf32>
    %236 = math.tanh %235 : vector<8x64xf32>
    %237 = arith.mulf %232, %236 : vector<8x64xf32>
    %238 = vector.extract_strided_slice %217 {offsets = [8, 0], sizes = [8, 256], strides = [1, 1]} : vector<64x256xf32> to vector<8x256xf32>
    %cst_40 = arith.constant dense<0.000000e+00> : vector<8x256xf32>
    %239 = tpu.matmul %237, %207, %cst_40 {dimension_numbers = #tpu.dot_dimension_numbers<[1], [0], [0], [1], [0, 0, 1, 1], [], []>} : vector<8x64xf32>, vector<64x256xf32>, vector<8x256xf32> -> vector<8x256xf32>
    %240 = arith.addf %238, %239 : vector<8x256xf32>
    %241 = arith.negf %240 : vector<8x256xf32>
    %242 = math.exp %241 : vector<8x256xf32>
    %cst_41 = arith.constant 1.000000e+00 : f32
    %243 = vector.broadcast %cst_41 : f32 to vector<8x256xf32>
    %244 = arith.addf %243, %242 : vector<8x256xf32>
    %245 = arith.divf %243, %244 : vector<8x256xf32>
    %246 = vector.extract_strided_slice %240 {offsets = [0, 128], sizes = [8, 64], strides = [1, 1]} : vector<8x256xf32> to vector<8x64xf32>
    %247 = math.tanh %246 : vector<8x64xf32>
    %248 = vector.extract_strided_slice %245 {offsets = [0, 0], sizes = [8, 64], strides = [1, 1]} : vector<8x256xf32> to vector<8x64xf32>
    %249 = vector.extract_strided_slice %245 {offsets = [0, 64], sizes = [8, 64], strides = [1, 1]} : vector<8x256xf32> to vector<8x64xf32>
    %250 = vector.extract_strided_slice %245 {offsets = [0, 192], sizes = [8, 64], strides = [1, 1]} : vector<8x256xf32> to vector<8x64xf32>
    %251 = arith.mulf %249, %235 : vector<8x64xf32>
    %252 = arith.mulf %248, %247 : vector<8x64xf32>
    %253 = arith.addf %251, %252 : vector<8x64xf32>
    %254 = math.tanh %253 : vector<8x64xf32>
    %255 = arith.mulf %250, %254 : vector<8x64xf32>
    %256 = vector.extract_strided_slice %217 {offsets = [16, 0], sizes = [8, 256], strides = [1, 1]} : vector<64x256xf32> to vector<8x256xf32>
    %cst_42 = arith.constant dense<0.000000e+00> : vector<8x256xf32>
    %257 = tpu.matmul %255, %207, %cst_42 {dimension_numbers = #tpu.dot_dimension_numbers<[1], [0], [0], [1], [0, 0, 1, 1], [], []>} : vector<8x64xf32>, vector<64x256xf32>, vector<8x256xf32> -> vector<8x256xf32>
    %258 = arith.addf %256, %257 : vector<8x256xf32>
    %259 = arith.negf %258 : vector<8x256xf32>
    %260 = math.exp %259 : vector<8x256xf32>
    %cst_43 = arith.constant 1.000000e+00 : f32
    %261 = vector.broadcast %cst_43 : f32 to vector<8x256xf32>
    %262 = arith.addf %261, %260 : vector<8x256xf32>
    %263 = arith.divf %261, %262 : vector<8x256xf32>
    %264 = vector.extract_strided_slice %258 {offsets = [0, 128], sizes = [8, 64], strides = [1, 1]} : vector<8x256xf32> to vector<8x64xf32>
    %265 = math.tanh %264 : vector<8x64xf32>
    %266 = vector.extract_strided_slice %263 {offsets = [0, 0], sizes = [8, 64], strides = [1, 1]} : vector<8x256xf32> to vector<8x64xf32>
    %267 = vector.extract_strided_slice %263 {offsets = [0, 64], sizes = [8, 64], strides = [1, 1]} : vector<8x256xf32> to vector<8x64xf32>
    %268 = vector.extract_strided_slice %263 {offsets = [0, 192], sizes = [8, 64], strides = [1, 1]} : vector<8x256xf32> to vector<8x64xf32>
    %269 = arith.mulf %267, %253 : vector<8x64xf32>
    %270 = arith.mulf %266, %265 : vector<8x64xf32>
    %271 = arith.addf %269, %270 : vector<8x64xf32>
    %272 = math.tanh %271 : vector<8x64xf32>
    %273 = arith.mulf %268, %272 : vector<8x64xf32>
    %274 = vector.extract_strided_slice %217 {offsets = [24, 0], sizes = [8, 256], strides = [1, 1]} : vector<64x256xf32> to vector<8x256xf32>
    %cst_44 = arith.constant dense<0.000000e+00> : vector<8x256xf32>
    %275 = tpu.matmul %273, %207, %cst_44 {dimension_numbers = #tpu.dot_dimension_numbers<[1], [0], [0], [1], [0, 0, 1, 1], [], []>} : vector<8x64xf32>, vector<64x256xf32>, vector<8x256xf32> -> vector<8x256xf32>
    %276 = arith.addf %274, %275 : vector<8x256xf32>
    %277 = arith.negf %276 : vector<8x256xf32>
    %278 = math.exp %277 : vector<8x256xf32>
    %cst_45 = arith.constant 1.000000e+00 : f32
    %279 = vector.broadcast %cst_45 : f32 to vector<8x256xf32>
    %280 = arith.addf %279, %278 : vector<8x256xf32>
    %281 = arith.divf %279, %280 : vector<8x256xf32>
    %282 = vector.extract_strided_slice %276 {offsets = [0, 128], sizes = [8, 64], strides = [1, 1]} : vector<8x256xf32> to vector<8x64xf32>
    %283 = math.tanh %282 : vector<8x64xf32>
    %284 = vector.extract_strided_slice %281 {offsets = [0, 0], sizes = [8, 64], strides = [1, 1]} : vector<8x256xf32> to vector<8x64xf32>
    %285 = vector.extract_strided_slice %281 {offsets = [0, 64], sizes = [8, 64], strides = [1, 1]} : vector<8x256xf32> to vector<8x64xf32>
    %286 = vector.extract_strided_slice %281 {offsets = [0, 192], sizes = [8, 64], strides = [1, 1]} : vector<8x256xf32> to vector<8x64xf32>
    %287 = arith.mulf %285, %271 : vector<8x64xf32>
    %288 = arith.mulf %284, %283 : vector<8x64xf32>
    %289 = arith.addf %287, %288 : vector<8x64xf32>
    %290 = math.tanh %289 : vector<8x64xf32>
    %291 = arith.mulf %286, %290 : vector<8x64xf32>
    %292 = vector.extract_strided_slice %217 {offsets = [32, 0], sizes = [8, 256], strides = [1, 1]} : vector<64x256xf32> to vector<8x256xf32>
    %cst_46 = arith.constant dense<0.000000e+00> : vector<8x256xf32>
    %293 = tpu.matmul %291, %207, %cst_46 {dimension_numbers = #tpu.dot_dimension_numbers<[1], [0], [0], [1], [0, 0, 1, 1], [], []>} : vector<8x64xf32>, vector<64x256xf32>, vector<8x256xf32> -> vector<8x256xf32>
    %294 = arith.addf %292, %293 : vector<8x256xf32>
    %295 = arith.negf %294 : vector<8x256xf32>
    %296 = math.exp %295 : vector<8x256xf32>
    %cst_47 = arith.constant 1.000000e+00 : f32
    %297 = vector.broadcast %cst_47 : f32 to vector<8x256xf32>
    %298 = arith.addf %297, %296 : vector<8x256xf32>
    %299 = arith.divf %297, %298 : vector<8x256xf32>
    %300 = vector.extract_strided_slice %294 {offsets = [0, 128], sizes = [8, 64], strides = [1, 1]} : vector<8x256xf32> to vector<8x64xf32>
    %301 = math.tanh %300 : vector<8x64xf32>
    %302 = vector.extract_strided_slice %299 {offsets = [0, 0], sizes = [8, 64], strides = [1, 1]} : vector<8x256xf32> to vector<8x64xf32>
    %303 = vector.extract_strided_slice %299 {offsets = [0, 64], sizes = [8, 64], strides = [1, 1]} : vector<8x256xf32> to vector<8x64xf32>
    %304 = vector.extract_strided_slice %299 {offsets = [0, 192], sizes = [8, 64], strides = [1, 1]} : vector<8x256xf32> to vector<8x64xf32>
    %305 = arith.mulf %303, %289 : vector<8x64xf32>
    %306 = arith.mulf %302, %301 : vector<8x64xf32>
    %307 = arith.addf %305, %306 : vector<8x64xf32>
    %308 = math.tanh %307 : vector<8x64xf32>
    %309 = arith.mulf %304, %308 : vector<8x64xf32>
    %310 = vector.extract_strided_slice %217 {offsets = [40, 0], sizes = [8, 256], strides = [1, 1]} : vector<64x256xf32> to vector<8x256xf32>
    %cst_48 = arith.constant dense<0.000000e+00> : vector<8x256xf32>
    %311 = tpu.matmul %309, %207, %cst_48 {dimension_numbers = #tpu.dot_dimension_numbers<[1], [0], [0], [1], [0, 0, 1, 1], [], []>} : vector<8x64xf32>, vector<64x256xf32>, vector<8x256xf32> -> vector<8x256xf32>
    %312 = arith.addf %310, %311 : vector<8x256xf32>
    %313 = arith.negf %312 : vector<8x256xf32>
    %314 = math.exp %313 : vector<8x256xf32>
    %cst_49 = arith.constant 1.000000e+00 : f32
    %315 = vector.broadcast %cst_49 : f32 to vector<8x256xf32>
    %316 = arith.addf %315, %314 : vector<8x256xf32>
    %317 = arith.divf %315, %316 : vector<8x256xf32>
    %318 = vector.extract_strided_slice %312 {offsets = [0, 128], sizes = [8, 64], strides = [1, 1]} : vector<8x256xf32> to vector<8x64xf32>
    %319 = math.tanh %318 : vector<8x64xf32>
    %320 = vector.extract_strided_slice %317 {offsets = [0, 0], sizes = [8, 64], strides = [1, 1]} : vector<8x256xf32> to vector<8x64xf32>
    %321 = vector.extract_strided_slice %317 {offsets = [0, 64], sizes = [8, 64], strides = [1, 1]} : vector<8x256xf32> to vector<8x64xf32>
    %322 = vector.extract_strided_slice %317 {offsets = [0, 192], sizes = [8, 64], strides = [1, 1]} : vector<8x256xf32> to vector<8x64xf32>
    %323 = arith.mulf %321, %307 : vector<8x64xf32>
    %324 = arith.mulf %320, %319 : vector<8x64xf32>
    %325 = arith.addf %323, %324 : vector<8x64xf32>
    %326 = math.tanh %325 : vector<8x64xf32>
    %327 = arith.mulf %322, %326 : vector<8x64xf32>
    %328 = vector.extract_strided_slice %217 {offsets = [48, 0], sizes = [8, 256], strides = [1, 1]} : vector<64x256xf32> to vector<8x256xf32>
    %cst_50 = arith.constant dense<0.000000e+00> : vector<8x256xf32>
    %329 = tpu.matmul %327, %207, %cst_50 {dimension_numbers = #tpu.dot_dimension_numbers<[1], [0], [0], [1], [0, 0, 1, 1], [], []>} : vector<8x64xf32>, vector<64x256xf32>, vector<8x256xf32> -> vector<8x256xf32>
    %330 = arith.addf %328, %329 : vector<8x256xf32>
    %331 = arith.negf %330 : vector<8x256xf32>
    %332 = math.exp %331 : vector<8x256xf32>
    %cst_51 = arith.constant 1.000000e+00 : f32
    %333 = vector.broadcast %cst_51 : f32 to vector<8x256xf32>
    %334 = arith.addf %333, %332 : vector<8x256xf32>
    %335 = arith.divf %333, %334 : vector<8x256xf32>
    %336 = vector.extract_strided_slice %330 {offsets = [0, 128], sizes = [8, 64], strides = [1, 1]} : vector<8x256xf32> to vector<8x64xf32>
    %337 = math.tanh %336 : vector<8x64xf32>
    %338 = vector.extract_strided_slice %335 {offsets = [0, 0], sizes = [8, 64], strides = [1, 1]} : vector<8x256xf32> to vector<8x64xf32>
    %339 = vector.extract_strided_slice %335 {offsets = [0, 64], sizes = [8, 64], strides = [1, 1]} : vector<8x256xf32> to vector<8x64xf32>
    %340 = vector.extract_strided_slice %335 {offsets = [0, 192], sizes = [8, 64], strides = [1, 1]} : vector<8x256xf32> to vector<8x64xf32>
    %341 = arith.mulf %339, %325 : vector<8x64xf32>
    %342 = arith.mulf %338, %337 : vector<8x64xf32>
    %343 = arith.addf %341, %342 : vector<8x64xf32>
    %344 = math.tanh %343 : vector<8x64xf32>
    %345 = arith.mulf %340, %344 : vector<8x64xf32>
    %346 = vector.extract_strided_slice %217 {offsets = [56, 0], sizes = [8, 256], strides = [1, 1]} : vector<64x256xf32> to vector<8x256xf32>
    %cst_52 = arith.constant dense<0.000000e+00> : vector<8x256xf32>
    %347 = tpu.matmul %345, %207, %cst_52 {dimension_numbers = #tpu.dot_dimension_numbers<[1], [0], [0], [1], [0, 0, 1, 1], [], []>} : vector<8x64xf32>, vector<64x256xf32>, vector<8x256xf32> -> vector<8x256xf32>
    %348 = arith.addf %346, %347 : vector<8x256xf32>
    %349 = arith.negf %348 : vector<8x256xf32>
    %350 = math.exp %349 : vector<8x256xf32>
    %cst_53 = arith.constant 1.000000e+00 : f32
    %351 = vector.broadcast %cst_53 : f32 to vector<8x256xf32>
    %352 = arith.addf %351, %350 : vector<8x256xf32>
    %353 = arith.divf %351, %352 : vector<8x256xf32>
    %354 = vector.extract_strided_slice %348 {offsets = [0, 128], sizes = [8, 64], strides = [1, 1]} : vector<8x256xf32> to vector<8x64xf32>
    %355 = math.tanh %354 : vector<8x64xf32>
    %356 = vector.extract_strided_slice %353 {offsets = [0, 0], sizes = [8, 64], strides = [1, 1]} : vector<8x256xf32> to vector<8x64xf32>
    %357 = vector.extract_strided_slice %353 {offsets = [0, 64], sizes = [8, 64], strides = [1, 1]} : vector<8x256xf32> to vector<8x64xf32>
    %358 = vector.extract_strided_slice %353 {offsets = [0, 192], sizes = [8, 64], strides = [1, 1]} : vector<8x256xf32> to vector<8x64xf32>
    %359 = arith.mulf %357, %343 : vector<8x64xf32>
    %360 = arith.mulf %356, %355 : vector<8x64xf32>
    %361 = arith.addf %359, %360 : vector<8x64xf32>
    %362 = math.tanh %361 : vector<8x64xf32>
    %363 = arith.mulf %358, %362 : vector<8x64xf32>
    %364 = vector.extract_strided_slice %237 {offsets = [0, 0], sizes = [8, 32], strides = [1, 1]} : vector<8x64xf32> to vector<8x32xf32>
    %365 = vector.extract_strided_slice %255 {offsets = [0, 0], sizes = [8, 32], strides = [1, 1]} : vector<8x64xf32> to vector<8x32xf32>
    %366 = vector.extract_strided_slice %273 {offsets = [0, 0], sizes = [8, 32], strides = [1, 1]} : vector<8x64xf32> to vector<8x32xf32>
    %367 = vector.extract_strided_slice %291 {offsets = [0, 0], sizes = [8, 32], strides = [1, 1]} : vector<8x64xf32> to vector<8x32xf32>
    %368 = vector.extract_strided_slice %309 {offsets = [0, 0], sizes = [8, 32], strides = [1, 1]} : vector<8x64xf32> to vector<8x32xf32>
    %369 = vector.extract_strided_slice %327 {offsets = [0, 0], sizes = [8, 32], strides = [1, 1]} : vector<8x64xf32> to vector<8x32xf32>
    %370 = vector.extract_strided_slice %345 {offsets = [0, 0], sizes = [8, 32], strides = [1, 1]} : vector<8x64xf32> to vector<8x32xf32>
    %371 = vector.extract_strided_slice %363 {offsets = [0, 0], sizes = [8, 32], strides = [1, 1]} : vector<8x64xf32> to vector<8x32xf32>
    %372 = tpu.concatenate %364, %365, %366, %367, %368, %369, %370, %371 in 0 : vector<8x32xf32>, vector<8x32xf32>, vector<8x32xf32>, vector<8x32xf32>, vector<8x32xf32>, vector<8x32xf32>, vector<8x32xf32>, vector<8x32xf32> -> vector<64x32xf32>
    %373 = vector.extract_strided_slice %363 {offsets = [0, 32], sizes = [8, 32], strides = [1, 1]} : vector<8x64xf32> to vector<8x32xf32>
    %374 = vector.extract_strided_slice %345 {offsets = [0, 32], sizes = [8, 32], strides = [1, 1]} : vector<8x64xf32> to vector<8x32xf32>
    %375 = vector.extract_strided_slice %327 {offsets = [0, 32], sizes = [8, 32], strides = [1, 1]} : vector<8x64xf32> to vector<8x32xf32>
    %376 = vector.extract_strided_slice %309 {offsets = [0, 32], sizes = [8, 32], strides = [1, 1]} : vector<8x64xf32> to vector<8x32xf32>
    %377 = vector.extract_strided_slice %291 {offsets = [0, 32], sizes = [8, 32], strides = [1, 1]} : vector<8x64xf32> to vector<8x32xf32>
    %378 = vector.extract_strided_slice %273 {offsets = [0, 32], sizes = [8, 32], strides = [1, 1]} : vector<8x64xf32> to vector<8x32xf32>
    %379 = vector.extract_strided_slice %255 {offsets = [0, 32], sizes = [8, 32], strides = [1, 1]} : vector<8x64xf32> to vector<8x32xf32>
    %380 = vector.extract_strided_slice %237 {offsets = [0, 32], sizes = [8, 32], strides = [1, 1]} : vector<8x64xf32> to vector<8x32xf32>
    %381 = tpu.concatenate %373, %374, %375, %376, %377, %378, %379, %380 in 0 : vector<8x32xf32>, vector<8x32xf32>, vector<8x32xf32>, vector<8x32xf32>, vector<8x32xf32>, vector<8x32xf32>, vector<8x32xf32>, vector<8x32xf32> -> vector<64x32xf32>
    %382 = tpu.concatenate %372, %381 in 1 : vector<64x32xf32>, vector<64x32xf32> -> vector<64x64xf32>
    %c0_54 = arith.constant 0 : index
    %c0_55 = arith.constant 0 : index
    %383 = vector.load %arg9[%c0_54, %c0_55] : memref<64x32xf32, #tpu.memory_space<vmem>>, vector<64x32xf32>
    %cst_56 = arith.constant dense<0.000000e+00> : vector<64x32xf32>
    %384 = tpu.matmul %382, %383, %cst_56 {dimension_numbers = #tpu.dot_dimension_numbers<[1], [0], [0], [1], [0, 0, 1, 1], [], []>} : vector<64x64xf32>, vector<64x32xf32>, vector<64x32xf32> -> vector<64x32xf32>
    %c0_57 = arith.constant 0 : index
    %c0_58 = arith.constant 0 : index
    %385 = vector.load %arg10[%c0_57, %c0_58] : memref<1x32xf32, #tpu.memory_space<vmem>>, vector<1x32xf32>
    %386 = vector.broadcast %385 : vector<1x32xf32> to vector<64x32xf32>
    %387 = arith.addf %384, %386 : vector<64x32xf32>
    %388 = math.tanh %387 : vector<64x32xf32>
    %c0_59 = arith.constant 0 : index
    %c0_60 = arith.constant 0 : index
    %389 = vector.load %arg11[%c0_59, %c0_60] : memref<32x32xf32, #tpu.memory_space<vmem>>, vector<32x32xf32>
    %cst_61 = arith.constant dense<0.000000e+00> : vector<64x32xf32>
    %390 = tpu.matmul %388, %389, %cst_61 {dimension_numbers = #tpu.dot_dimension_numbers<[1], [0], [0], [1], [0, 0, 1, 1], [], []>} : vector<64x32xf32>, vector<32x32xf32>, vector<64x32xf32> -> vector<64x32xf32>
    %c0_62 = arith.constant 0 : index
    %c0_63 = arith.constant 0 : index
    %391 = vector.load %arg12[%c0_62, %c0_63] : memref<1x32xf32, #tpu.memory_space<vmem>>, vector<1x32xf32>
    %392 = vector.broadcast %391 : vector<1x32xf32> to vector<64x32xf32>
    %393 = arith.addf %390, %392 : vector<64x32xf32>
    %394 = math.tanh %393 : vector<64x32xf32>
    %c0_64 = arith.constant 0 : index
    %c0_65 = arith.constant 0 : index
    %395 = vector.load %arg13[%c0_64, %c0_65] : memref<32x1xf32, #tpu.memory_space<vmem>>, vector<32x1xf32>
    %cst_66 = arith.constant dense<0.000000e+00> : vector<64x1xf32>
    %396 = tpu.matmul %394, %395, %cst_66 {dimension_numbers = #tpu.dot_dimension_numbers<[1], [0], [0], [1], [0, 0, 1, 1], [], []>} : vector<64x32xf32>, vector<32x1xf32>, vector<64x1xf32> -> vector<64x1xf32>
    %c0_67 = arith.constant 0 : index
    %c0_68 = arith.constant 0 : index
    %397 = vector.load %arg14[%c0_67, %c0_68] : memref<1x1xf32, #tpu.memory_space<vmem>>, vector<1x1xf32>
    %398 = vector.broadcast %397 : vector<1x1xf32> to vector<64x1xf32>
    %399 = arith.addf %396, %398 : vector<64x1xf32>
    %400 = vector.shape_cast %399 : vector<64x1xf32> to vector<8x8x1xf32>
    %c0_69 = arith.constant 0 : index
    %c0_70 = arith.constant 0 : index
    %c0_71 = arith.constant 0 : index
    %401 = vector.load %arg2[%c0_69, %c0_70, %c0_71] : memref<8x8x1xf32, #tpu.memory_space<vmem>>, vector<8x8x1xf32>
    %cst_72 = arith.constant 0.000000e+00 : f32
    %402 = vector.broadcast %cst_72 : f32 to vector<8x8x1xf32>
    %403 = arith.cmpf oeq, %401, %402 : vector<8x8x1xf32>
    %cst_73 = arith.constant 0xFF800000 : f32
    %404 = vector.broadcast %cst_73 : f32 to vector<8x8x1xf32>
    %405 = arith.select %403, %404, %400 : vector<8x8x1xi1>, vector<8x8x1xf32>
    %cst_74 = arith.constant dense<0xFF800000> : vector<8x1xf32>
    %406 = vector.multi_reduction <maximumf>, %405, %cst_74 [0] : vector<8x8x1xf32> to vector<8x1xf32>
    %407 = vector.shape_cast %406 : vector<8x1xf32> to vector<1x8x1xf32>
    %408 = vector.broadcast %407 : vector<1x8x1xf32> to vector<8x8x1xf32>
    %409 = arith.subf %405, %408 : vector<8x8x1xf32>
    %410 = math.exp %409 : vector<8x8x1xf32>
    %cst_75 = arith.constant dense<0.000000e+00> : vector<8x1xf32>
    %411 = vector.multi_reduction <add>, %410, %cst_75 [0] : vector<8x8x1xf32> to vector<8x1xf32>
    %412 = vector.shape_cast %411 : vector<8x1xf32> to vector<1x8x1xf32>
    %cst_76 = arith.constant 1.000000e+00 : f32
    %413 = vector.broadcast %cst_76 : f32 to vector<1x8x1xf32>
    %414 = arith.divf %413, %412 : vector<1x8x1xf32>
    %415 = vector.broadcast %414 : vector<1x8x1xf32> to vector<8x8x1xf32>
    %416 = arith.mulf %410, %415 : vector<8x8x1xf32>
    %c0_77 = arith.constant 0 : index
    %c0_78 = arith.constant 0 : index
    %c0_79 = arith.constant 0 : index
    %417 = vector.load %arg20[%c0_77, %c0_78, %c0_79] : memref<8x8x1xf32, #tpu.memory_space<vmem>>, vector<8x8x1xf32>
    tpu.vector_store %arg20[%c0_77, %c0_78, %c0_79], %416 {strides = array<i32>} : memref<8x8x1xf32, #tpu.memory_space<vmem>>, vector<8x8x1xf32>,
    %418 = vector.shape_cast %388 : vector<64x32xf32> to vector<8x8x32xf32>
    %419 = vector.broadcast %416 : vector<8x8x1xf32> to vector<8x8x32xf32>
    %420 = arith.mulf %419, %418 : vector<8x8x32xf32>
    %cst_80 = arith.constant dense<0.000000e+00> : vector<8x32xf32>
    %421 = vector.multi_reduction <add>, %420, %cst_80 [0] : vector<8x8x32xf32> to vector<8x32xf32>
    %c0_81 = arith.constant 0 : index
    %c0_82 = arith.constant 0 : index
    %422 = vector.load %arg15[%c0_81, %c0_82] : memref<32x16xf32, #tpu.memory_space<vmem>>, vector<32x16xf32>
    %cst_83 = arith.constant dense<0.000000e+00> : vector<8x16xf32>
    %423 = tpu.matmul %421, %422, %cst_83 {dimension_numbers = #tpu.dot_dimension_numbers<[1], [0], [0], [1], [0, 0, 1, 1], [], []>} : vector<8x32xf32>, vector<32x16xf32>, vector<8x16xf32> -> vector<8x16xf32>
    %c0_84 = arith.constant 0 : index
    %c0_85 = arith.constant 0 : index
    %424 = vector.load %arg16[%c0_84, %c0_85] : memref<1x16xf32, #tpu.memory_space<vmem>>, vector<1x16xf32>
    %425 = vector.broadcast %424 : vector<1x16xf32> to vector<8x16xf32>
    %426 = arith.addf %423, %425 : vector<8x16xf32>
    %cst_86 = arith.constant 0.000000e+00 : f32
    %427 = vector.broadcast %cst_86 : f32 to vector<8x16xf32>
    %428 = arith.maximumf %426, %427 : vector<8x16xf32>
    %c0_87 = arith.constant 0 : index
    %c0_88 = arith.constant 0 : index
    %429 = vector.load %arg17[%c0_87, %c0_88] : memref<16x128xf32, #tpu.memory_space<vmem>>, vector<16x128xf32>
    %cst_89 = arith.constant dense<0.000000e+00> : vector<8x128xf32>
    %430 = tpu.matmul %428, %429, %cst_89 {dimension_numbers = #tpu.dot_dimension_numbers<[1], [0], [0], [1], [0, 0, 1, 1], [], []>} : vector<8x16xf32>, vector<16x128xf32>, vector<8x128xf32> -> vector<8x128xf32>
    %c0_90 = arith.constant 0 : index
    %c0_91 = arith.constant 0 : index
    %431 = vector.load %arg18[%c0_90, %c0_91] : memref<1x128xf32, #tpu.memory_space<vmem>>, vector<1x128xf32>
    %432 = vector.broadcast %431 : vector<1x128xf32> to vector<8x128xf32>
    %433 = arith.addf %430, %432 : vector<8x128xf32>
    %434 = arith.negf %433 : vector<8x128xf32>
    %435 = math.exp %434 : vector<8x128xf32>
    %cst_92 = arith.constant 1.000000e+00 : f32
    %436 = vector.broadcast %cst_92 : f32 to vector<8x128xf32>
    %437 = arith.addf %436, %435 : vector<8x128xf32>
    %438 = arith.divf %436, %437 : vector<8x128xf32>
    %c0_93 = arith.constant 0 : index
    %c0_94 = arith.constant 0 : index
    %439 = vector.load %arg19[%c0_93, %c0_94] : memref<8x128xf32, #tpu.memory_space<vmem>>, vector<8x128xf32>
    tpu.vector_store %arg19[%c0_93, %c0_94], %438 {strides = array<i32>} : memref<8x128xf32, #tpu.memory_space<vmem>>, vector<8x128xf32>,
    return
  }
  func.func @transform_0(%arg0: i32) -> (i32, i32, i32) {
    %c0_i32 = arith.constant 0 : i32
    %c0_i32_0 = arith.constant 0 : i32
    %c0_i32_1 = arith.constant 0 : i32
    return %c0_i32, %arg0, %c0_i32_0 : i32, i32, i32
  }
  func.func @transform_1(%arg0: i32) -> (i32, i32, i32) {
    %c0_i32 = arith.constant 0 : i32
    %c0_i32_0 = arith.constant 0 : i32
    %c0_i32_1 = arith.constant 0 : i32
    return %c0_i32, %arg0, %c0_i32_0 : i32, i32, i32
  }
  func.func @transform_2(%arg0: i32) -> (i32, i32) {
    %c0_i32 = arith.constant 0 : i32
    %c0_i32_0 = arith.constant 0 : i32
    %c0_i32_1 = arith.constant 0 : i32
    return %c0_i32, %c0_i32_0 : i32, i32
  }
  func.func @transform_3(%arg0: i32) -> (i32, i32) {
    %c0_i32 = arith.constant 0 : i32
    %c0_i32_0 = arith.constant 0 : i32
    %c0_i32_1 = arith.constant 0 : i32
    return %c0_i32, %c0_i32_0 : i32, i32
  }
  func.func @transform_4(%arg0: i32) -> (i32, i32) {
    %c0_i32 = arith.constant 0 : i32
    %c0_i32_0 = arith.constant 0 : i32
    %c0_i32_1 = arith.constant 0 : i32
    return %c0_i32, %c0_i32_0 : i32, i32
  }
  func.func @transform_5(%arg0: i32) -> (i32, i32) {
    %c0_i32 = arith.constant 0 : i32
    %c0_i32_0 = arith.constant 0 : i32
    %c0_i32_1 = arith.constant 0 : i32
    return %c0_i32, %c0_i32_0 : i32, i32
  }
  func.func @transform_6(%arg0: i32) -> (i32, i32) {
    %c0_i32 = arith.constant 0 : i32
    %c0_i32_0 = arith.constant 0 : i32
    %c0_i32_1 = arith.constant 0 : i32
    return %c0_i32, %c0_i32_0 : i32, i32
  }
  func.func @transform_7(%arg0: i32) -> (i32, i32) {
    %c0_i32 = arith.constant 0 : i32
    %c0_i32_0 = arith.constant 0 : i32
    %c0_i32_1 = arith.constant 0 : i32
    return %c0_i32, %c0_i32_0 : i32, i32
  }
  func.func @transform_8(%arg0: i32) -> (i32, i32) {
    %c0_i32 = arith.constant 0 : i32
    %c0_i32_0 = arith.constant 0 : i32
    %c0_i32_1 = arith.constant 0 : i32
    return %c0_i32, %c0_i32_0 : i32, i32
  }
  func.func @transform_9(%arg0: i32) -> (i32, i32) {
    %c0_i32 = arith.constant 0 : i32
    %c0_i32_0 = arith.constant 0 : i32
    %c0_i32_1 = arith.constant 0 : i32
    return %c0_i32, %c0_i32_0 : i32, i32
  }
  func.func @transform_10(%arg0: i32) -> (i32, i32) {
    %c0_i32 = arith.constant 0 : i32
    %c0_i32_0 = arith.constant 0 : i32
    %c0_i32_1 = arith.constant 0 : i32
    return %c0_i32, %c0_i32_0 : i32, i32
  }
  func.func @transform_11(%arg0: i32) -> (i32, i32) {
    %c0_i32 = arith.constant 0 : i32
    %c0_i32_0 = arith.constant 0 : i32
    %c0_i32_1 = arith.constant 0 : i32
    return %c0_i32, %c0_i32_0 : i32, i32
  }
  func.func @transform_12(%arg0: i32) -> (i32, i32) {
    %c0_i32 = arith.constant 0 : i32
    %c0_i32_0 = arith.constant 0 : i32
    %c0_i32_1 = arith.constant 0 : i32
    return %c0_i32, %c0_i32_0 : i32, i32
  }
  func.func @transform_13(%arg0: i32) -> (i32, i32) {
    %c0_i32 = arith.constant 0 : i32
    %c0_i32_0 = arith.constant 0 : i32
    %c0_i32_1 = arith.constant 0 : i32
    return %c0_i32, %c0_i32_0 : i32, i32
  }
  func.func @transform_14(%arg0: i32) -> (i32, i32) {
    %c0_i32 = arith.constant 0 : i32
    %c0_i32_0 = arith.constant 0 : i32
    %c0_i32_1 = arith.constant 0 : i32
    return %c0_i32, %c0_i32_0 : i32, i32
  }
  func.func @transform_15(%arg0: i32) -> (i32, i32) {
    %c0_i32 = arith.constant 0 : i32
    %c0_i32_0 = arith.constant 0 : i32
    %c0_i32_1 = arith.constant 0 : i32
    return %c0_i32, %c0_i32_0 : i32, i32
  }
  func.func @transform_16(%arg0: i32) -> (i32, i32) {
    %c0_i32 = arith.constant 0 : i32
    %c0_i32_0 = arith.constant 0 : i32
    %c0_i32_1 = arith.constant 0 : i32
    return %c0_i32, %c0_i32_0 : i32, i32
  }
  func.func @transform_17(%arg0: i32) -> (i32, i32) {
    %c0_i32 = arith.constant 0 : i32
    %c0_i32_0 = arith.constant 0 : i32
    %c0_i32_1 = arith.constant 0 : i32
    return %c0_i32, %c0_i32_0 : i32, i32
  }
  func.func @transform_18(%arg0: i32) -> (i32, i32) {
    %c0_i32 = arith.constant 0 : i32
    %c0_i32_0 = arith.constant 0 : i32
    return %arg0, %c0_i32 : i32, i32
  }
  func.func @transform_19(%arg0: i32) -> (i32, i32, i32) {
    %c0_i32 = arith.constant 0 : i32
    %c0_i32_0 = arith.constant 0 : i32
    %c0_i32_1 = arith.constant 0 : i32
    return %c0_i32, %arg0, %c0_i32_0 : i32, i32, i32
  }
}

</mosaic_0001>

<llo_original>
// kernel: tpu_custom_call.1
$region0: #{tpu_custom_call.1}
  #allocation0 [shape = 'u32[]', space=smem, size = 0x4, offset = 0x4, fixed_abs, tag = 'smem constant byte address 0x4 - core index']
  #allocation1 [shape = 'u32[144,128]{1,0:T(1,128)}', space=vmem, size = 0x12000, scoped, tag = 'internal scratch']
  #allocation2 [shape = 'f32[1,1]{1,0:T(1,128)S(1)}', space=vmem, size = 0x200, scoped, tag = 'scoped memory for tpu_custom_call.1']
  %s0 = inlined_call_operand.vmem [shape: f32[8,8,6], index: 0, kind: input, shape index: {}]
  %s1 = inlined_call_operand.vmem [shape: f32[8,8,1], index: 1, kind: input, shape index: {}]
  %s2 = inlined_call_operand.hbm [shape: f32[6,256], index: 2, kind: input, shape index: {}]
  %s3 = inlined_call_operand.vmem [shape: f32[64,256], index: 3, kind: input, shape index: {}]
  %s4 = inlined_call_operand.vmem [shape: f32[1,256], index: 4, kind: input, shape index: {}]
  %s5 = inlined_call_operand.vmem [shape: f32[64,256], index: 5, kind: input, shape index: {}]
  %s6 = inlined_call_operand.hbm [shape: f32[64,256], index: 6, kind: input, shape index: {}]
  %s7 = inlined_call_operand.vmem [shape: f32[1,256], index: 7, kind: input, shape index: {}]
  %s8 = inlined_call_operand.vmem [shape: f32[64,32], index: 8, kind: input, shape index: {}]
  %s9 = inlined_call_operand.vmem [shape: f32[1,32], index: 9, kind: input, shape index: {}]
  %s10 = inlined_call_operand.vmem [shape: f32[32,32], index: 10, kind: input, shape index: {}]
  %s11 = inlined_call_operand.vmem [shape: f32[1,32], index: 11, kind: input, shape index: {}]
  %s12 = inlined_call_operand.vmem [shape: f32[32,1], index: 12, kind: input, shape index: {}]
  %s13 = inlined_call_operand.<no memory space> [shape: f32[1,1], index: 13, kind: input, shape index: {}]
  %s14 = inlined_call_operand.vmem [shape: f32[32,16], index: 14, kind: input, shape index: {}]
  %s15 = inlined_call_operand.vmem [shape: f32[1,16], index: 15, kind: input, shape index: {}]
  %s16 = inlined_call_operand.vmem [shape: f32[16,128], index: 16, kind: input, shape index: {}]
  %s17 = inlined_call_operand.vmem [shape: f32[1,128], index: 17, kind: input, shape index: {}]
  %s18 = inlined_call_operand.hbm [shape: f32[8,128], index: 18, kind: output, shape index: {0}]
  %s19 = inlined_call_operand.vmem [shape: f32[8,8,1], index: 19, kind: output, shape index: {1}]
  %20 = xla_tuple %s18, %s19
  %s21 = sld [smem:[#allocation0]]
  $region98: #{tpu_custom_call.1} parent=0
    _
  %s23 = ssub.s32 1, %s21
  %s24 = scalar_select 0, %s23, %s21
  %v25 = vstv %s13
  %26 = vst [vmem:[#allocation2] sm:$0x1] %v25
  $region1: #{tpu_custom_call.1} parent=0
    #allocation3 [shape = 'u8[8192]{0}', space=vmem, size = 0x2000, scoped, tag = 'input window, operand 2, single buffered']
    #allocation4 [shape = 's32[1]{0}', space=sflag, size = 0x4, scoped, tag = 'scoped memory for tpu_custom_call.1']
    #allocation5 [shape = 's32[1]{0}', space=sflag, size = 0x4, scoped, tag = 'scoped memory for tpu_custom_call.1']
    #allocation6 [shape = 'u8[65536]{0}', space=vmem, size = 0x10000, scoped, tag = 'input window, operand 6, single buffered']
    #allocation7 [shape = 's32[1]{0}', space=sflag, size = 0x4, scoped, tag = 'scoped memory for tpu_custom_call.1']
    #allocation8 [shape = 'u8[4096]{0}', space=vmem, size = 0x1000, scoped, tag = 'output window, operand 0, single buffered']
    %27 = vsyncpa [#allocation4], 0
    %28 = vsyncpa [#allocation7], 0
    %29 = vsyncpa [#allocation5], 0
    // Predicated region
    $region2: #{tpu_custom_call.1} parent=1 // pred_check
      _
    $region3: #{tpu_custom_call.1} parent=1 // pred_check_branch
      %31 = sbr.rel (0) target = $region5
    $region4: #{tpu_custom_call.1} parent=1 // pred_region
      _
    $region5: #{tpu_custom_call.1} parent=1 // pred_fallthru
      _
    // Predicated region
    $region6: #{tpu_custom_call.1} parent=1 // pred_check
      _
    $region7: #{tpu_custom_call.1} parent=1 // pred_check_branch
      %33 = sbr.rel (0) target = $region9
    $region8: #{tpu_custom_call.1} parent=1 // pred_region
      _
    $region9: #{tpu_custom_call.1} parent=1 // pred_fallthru
      _
    // Predicated region
    $region10: #{tpu_custom_call.1} parent=1 // pred_check
      _
    $region11: #{tpu_custom_call.1} parent=1 // pred_check_branch
      %35 = sbr.rel (0) target = $region13
    $region12: #{tpu_custom_call.1} parent=1 // pred_region
      %s37 = ssub.s32 256, 256
      %38 = vsyncadd [#allocation4], %s37
      %s40 = sshll.u32 [#allocation3], 4
      %s41 = int_to_ptr.vmem [resolvable:$true] %s40
      %43 = dma.hbm_to_vmem [thread:$0]  %s2, 256, %s41, [#allocation4]
    $region13: #{tpu_custom_call.1} parent=1 // pred_fallthru
      _
    // Predicated region
    $region14: #{tpu_custom_call.1} parent=1 // pred_check
      _
    $region15: #{tpu_custom_call.1} parent=1 // pred_check_branch
      %45 = sbr.rel (0) target = $region17
    $region16: #{tpu_custom_call.1} parent=1 // pred_region
      _
    $region17: #{tpu_custom_call.1} parent=1 // pred_fallthru
      _
    // Predicated region
    $region18: #{tpu_custom_call.1} parent=1 // pred_check
      _
    $region19: #{tpu_custom_call.1} parent=1 // pred_check_branch
      %47 = sbr.rel (0) target = $region21
    $region20: #{tpu_custom_call.1} parent=1 // pred_region
      _
    $region21: #{tpu_custom_call.1} parent=1 // pred_fallthru
      _
    // Predicated region
    $region22: #{tpu_custom_call.1} parent=1 // pred_check
      _
    $region23: #{tpu_custom_call.1} parent=1 // pred_check_branch
      %49 = sbr.rel (0) target = $region25
    $region24: #{tpu_custom_call.1} parent=1 // pred_region
      _
    $region25: #{tpu_custom_call.1} parent=1 // pred_fallthru
      _
    // Predicated region
    $region26: #{tpu_custom_call.1} parent=1 // pred_check
      _
    $region27: #{tpu_custom_call.1} parent=1 // pred_check_branch
      %51 = sbr.rel (0) target = $region29
    $region28: #{tpu_custom_call.1} parent=1 // pred_region
      %s53 = ssub.s32 2048, 2048
      %54 = vsyncadd [#allocation7], %s53
      %s55 = sshll.u32 [#allocation6], 4
      %s56 = int_to_ptr.vmem [resolvable:$true] %s55
      %61 = dma.hbm_to_vmem [thread:$0]  %s6, 2048, %s56, [#allocation7], 256, 256, 16
    $region29: #{tpu_custom_call.1} parent=1 // pred_fallthru
      _
    // Predicated region
    $region30: #{tpu_custom_call.1} parent=1 // pred_check
      _
    $region31: #{tpu_custom_call.1} parent=1 // pred_check_branch
      %63 = sbr.rel (0) target = $region33
    $region32: #{tpu_custom_call.1} parent=1 // pred_region
      _
    $region33: #{tpu_custom_call.1} parent=1 // pred_fallthru
      _
    // Predicated region
    $region34: #{tpu_custom_call.1} parent=1 // pred_check
      _
    $region35: #{tpu_custom_call.1} parent=1 // pred_check_branch
      %65 = sbr.rel (0) target = $region37
    $region36: #{tpu_custom_call.1} parent=1 // pred_region
      _
    $region37: #{tpu_custom_call.1} parent=1 // pred_fallthru
      _
    // Predicated region
    $region38: #{tpu_custom_call.1} parent=1 // pred_check
      _
    $region39: #{tpu_custom_call.1} parent=1 // pred_check_branch
      %67 = sbr.rel (0) target = $region41
    $region40: #{tpu_custom_call.1} parent=1 // pred_region
      _
    $region41: #{tpu_custom_call.1} parent=1 // pred_fallthru
      _
    // Predicated region
    $region42: #{tpu_custom_call.1} parent=1 // pred_check
      _
    $region43: #{tpu_custom_call.1} parent=1 // pred_check_branch
      %69 = sbr.rel (0) target = $region45
    $region44: #{tpu_custom_call.1} parent=1 // pred_region
      _
    $region45: #{tpu_custom_call.1} parent=1 // pred_fallthru
      _
    // Predicated region
    $region46: #{tpu_custom_call.1} parent=1 // pred_check
      _
    $region47: #{tpu_custom_call.1} parent=1 // pred_check_branch
      %71 = sbr.rel (0) target = $region49
    $region48: #{tpu_custom_call.1} parent=1 // pred_region
      _
    $region49: #{tpu_custom_call.1} parent=1 // pred_fallthru
      _
    // Predicated region
    $region50: #{tpu_custom_call.1} parent=1 // pred_check
      _
    $region51: #{tpu_custom_call.1} parent=1 // pred_check_branch
      %73 = sbr.rel (0) target = $region53
    $region52: #{tpu_custom_call.1} parent=1 // pred_region
      _
    $region53: #{tpu_custom_call.1} parent=1 // pred_fallthru
      _
    // Predicated region
    $region54: #{tpu_custom_call.1} parent=1 // pred_check
      _
    $region55: #{tpu_custom_call.1} parent=1 // pred_check_branch
      %75 = sbr.rel (0) target = $region57
    $region56: #{tpu_custom_call.1} parent=1 // pred_region
      _
    $region57: #{tpu_custom_call.1} parent=1 // pred_fallthru
      _
    // Predicated region
    $region58: #{tpu_custom_call.1} parent=1 // pred_check
      _
    $region59: #{tpu_custom_call.1} parent=1 // pred_check_branch
      %77 = sbr.rel (0) target = $region61
    $region60: #{tpu_custom_call.1} parent=1 // pred_region
      _
    $region61: #{tpu_custom_call.1} parent=1 // pred_fallthru
      _
    // Predicated region
    $region62: #{tpu_custom_call.1} parent=1 // pred_check
      _
    $region63: #{tpu_custom_call.1} parent=1 // pred_check_branch
      %79 = sbr.rel (0) target = $region65
    $region64: #{tpu_custom_call.1} parent=1 // pred_region
      _
    $region65: #{tpu_custom_call.1} parent=1 // pred_fallthru
      _
    // Predicated region
    $region66: #{tpu_custom_call.1} parent=1 // pred_check
      _
    $region67: #{tpu_custom_call.1} parent=1 // pred_check_branch
      %81 = sbr.rel (0) target = $region69
    $region68: #{tpu_custom_call.1} parent=1 // pred_region
      _
    $region69: #{tpu_custom_call.1} parent=1 // pred_fallthru
      _
    // Predicated region
    $region70: #{tpu_custom_call.1} parent=1 // pred_check
      _
    $region71: #{tpu_custom_call.1} parent=1 // pred_check_branch
      %83 = sbr.rel (0) target = $region73
    $region72: #{tpu_custom_call.1} parent=1 // pred_region
      _
    $region73: #{tpu_custom_call.1} parent=1 // pred_fallthru
      _
    // Predicated region
    $region74: #{tpu_custom_call.1} parent=1 // pred_check
      _
    $region75: #{tpu_custom_call.1} parent=1 // pred_check_branch
      %85 = sbr.rel (0) target = $region77
    $region76: #{tpu_custom_call.1} parent=1 // pred_region
      %86 = dma.done [#allocation4], 256
    $region77: #{tpu_custom_call.1} parent=1 // pred_fallthru
      _
    // Predicated region
    $region78: #{tpu_custom_call.1} parent=1 // pred_check
      _
    $region79: #{tpu_custom_call.1} parent=1 // pred_check_branch
      %88 = sbr.rel (0) target = $region81
    $region80: #{tpu_custom_call.1} parent=1 // pred_region
      %89 = dma.done [#allocation7], 2048
    $region81: #{tpu_custom_call.1} parent=1 // pred_fallthru
      _
    %v90 = vlaneseq
    %v91 = vand.u32 %v90, 127
    %v92 = vadd.s32 %v91, 128
    %vm93 = vcmp.lt.s32.totalorder %v91, 0
    %v94 = vsub.s32 0, %v91
    %v95 = vsel %vm93, %v94, %v91
    %v96 = vshrl.u32 %v95, 6
    %v97 = vand.u32 %v95, 63
    %v98 = vsub.s32 0, %v97
    %v99 = vsel %vm93, %v98, %v97
    %vm100 = vcmp.lt.s32.totalorder %v92, 0
    %v101 = vsub.s32 0, %v92
    %v102 = vsel %vm100, %v101, %v92
    %v103 = vshrl.u32 %v102, 6
    %v104 = vand.u32 %v102, 63
    %v105 = vsub.s32 0, %v104
    %v106 = vsel %vm100, %v105, %v104
    %vm107 = vcmp.ne.s32.totalorder %v99, 0
    %vm108 = vcmp.ne.s32.totalorder %v106, 0
    %vm109 = vcmp.lt.s32.totalorder %v99, 0
    %vm110 = vcmp.lt.s32.totalorder %v106, 0
    %vm111 = vmand %vm109, %vm107
    %vm112 = vmand %vm110, %vm108
    %v113 = vadd.s32 %v99, 64
    %v114 = vadd.s32 %v106, 64
    %v115 = vsel %vm111, %v113, %v99
    %v116 = vsel %vm112, %v114, %v106
    %vm117 = vcmp.lt.s32.totalorder %v115, 32
    %vm118 = vcmp.lt.s32.totalorder %v116, 32
    %v119 = vld [vmem:[%s0] sm:$0xff]
    %v120 = vld [vmem:[%s0 + $0x8] sm:$0xff]
    %v121 = vld [vmem:[%s0 + $0x10] sm:$0xff]
    %v122 = vld [vmem:[%s0 + $0x18] sm:$0xff]
    %v123 = vld [vmem:[%s0 + $0x20] sm:$0xff]
    %v124 = vld [vmem:[%s0 + $0x28] sm:$0xff]
    %v125 = vld [vmem:[%s0 + $0x30] sm:$0xff]
    %v126 = vld [vmem:[%s0 + $0x38] sm:$0xff]
    %v127 = vld [vmem:[#allocation3] sm:$0x3f]
    %v128 = vld [vmem:[#allocation3 + $0x8] sm:$0x3f]
    %v129 = vld [vmem:[%s4] sm:$0x3]
    %v131 = vlaneseq
    %v132 = vshrl.u32 %v131, 7
    %v133 = vsub.s32 0, %v132
    %v134 = vrot.slane %v129, %v133
    %v135 = vlaneseq
    %v136 = vshrl.u32 %v135, 7
    %v137 = vsub.s32 1, %v136
    %v138 = vrot.slane %v129, %v137
    %vm141 = vcmask 48128
    %v143 = vsel %vm141, %v119, 0
    %v146 = vsel %vm141, %v120, 0
    %v149 = vsel %vm141, %v121, 0
    %v152 = vsel %vm141, %v122, 0
    %v155 = vsel %vm141, %v123, 0
    %v158 = vsel %vm141, %v124, 0
    %v161 = vsel %vm141, %v125, 0
    %v164 = vsel %vm141, %v126, 0
    %vm166 = vcmask 1045504
    %v168 = vsel %vm166, %v127, 0
    %v171 = vsel %vm166, %v128, 0
    %173 = vmatprep.subr.mxu0 %v171
    %174 = vmatpush1.msra.mxu0 %v168
    %175 = vmatprep.subr.mxu0 0.0
    %176 = vmatpush1.msra.mxu0 0.0
    %177 = vmatprep.subr.mxu0 0.0
    %178 = vmatpush1.msra.mxu0 0.0
    %179 = vmatprep.subr.mxu0 0.0
    %180 = vmatpush1.msra.mxu0 0.0
    %181 = vmatprep.subr.mxu0 0.0
    %182 = vmatpush1.msra.mxu0 0.0
    %183 = vmatprep.subr.mxu0 0.0
    %184 = vmatpush1.msra.mxu0 0.0
    %185 = vmatprep.subr.mxu0 0.0
    %186 = vmatpush1.msra.mxu0 0.0
    %187 = vmatprep.subr.mxu0 0.0
    %188 = vmatpush1.msra.mxu0 0.0
    %189 = vmatprep.subr.mxu0 0.0
    %190 = vmatpush1.msra.mxu0 0.0
    %191 = vmatprep.subr.mxu0 0.0
    %192 = vmatpush1.msra.mxu0 0.0
    %193 = vmatprep.subr.mxu0 0.0
    %194 = vmatpush1.msra.mxu0 0.0
    %195 = vmatprep.subr.mxu0 0.0
    %196 = vmatpush1.msra.mxu0 0.0
    %197 = vmatprep.subr.mxu0 0.0
    %198 = vmatpush1.msra.mxu0 0.0
    %199 = vmatprep.subr.mxu0 0.0
    %200 = vmatpush1.msra.mxu0 0.0
    %201 = vmatprep.subr.mxu0 0.0
    %202 = vmatpush1.msra.mxu0 0.0
    %203 = vmatprep.subr.mxu0 0.0
    %204 = vmatpush1.msra.mxu0 0.0
    %205 = vmatprep.subr.mxu0 0.0
    %206 = vmatpush1.msra.mxu0 0.0
    %207 = vmatprep.subr.mxu0 0.0
    %208 = vmatpush1.msra.mxu0 0.0
    %209 = vmatprep.subr.mxu0 0.0
    %210 = vmatpush1.msra.mxu0 0.0
    %211 = vmatprep.subr.mxu0 0.0
    %212 = vmatpush1.msra.mxu0 0.0
    %213 = vmatprep.subr.mxu0 0.0
    %214 = vmatpush1.msra.mxu0 0.0
    %215 = vmatprep.subr.mxu0 0.0
    %216 = vmatpush1.msra.mxu0 0.0
    %217 = vmatprep.subr.mxu0 0.0
    %218 = vmatpush1.msra.mxu0 0.0
    %219 = vmatprep.subr.mxu0 0.0
    %220 = vmatpush1.msra.mxu0 0.0
    %221 = vmatprep.subr.mxu0 0.0
    %222 = vmatpush1.msra.mxu0 0.0
    %223 = vmatprep.subr.mxu0 0.0
    %224 = vmatpush1.msra.mxu0 0.0
    %225 = vmatprep.subr.mxu0 0.0
    %226 = vmatpush1.msra.mxu0 0.0
    %227 = vmatprep.subr.mxu0 0.0
    %228 = vmatpush1.msra.mxu0 0.0
    %229 = vmatprep.subr.mxu0 0.0
    %230 = vmatpush1.msra.mxu0 0.0
    %231 = vmatprep.subr.mxu0 0.0
    %232 = vmatpush1.msra.mxu0 0.0
    %233 = vmatprep.subr.mxu0 0.0
    %234 = vmatpush1.msra.mxu0 0.0
    %235 = vmatprep.subr.mxu0 0.0
    %236 = vmatpush1.msra.mxu0 0.0
    %237 = vmatprep.mubr.f32.mxu0 0.0
    %238 = vmatmul.mubr.f32.gmra.mrb[0].mxu0 %v143
    %v239 = vpop.f32.mrb[0].mxu0
    %v240 = vadd.f32 %v134, %v239
    %v241 = vpop.f32.mrb[0].mxu0
    %v242 = vadd.f32 %v138, %v241
    %243 = vmatprep.mubr.f32.mxu0 0.0
    %244 = vmatmul.mubr.f32.gmra.mrb[0].mxu0 %v146
    %v245 = vpop.f32.mrb[0].mxu0
    %v246 = vadd.f32 %v134, %v245
    %v247 = vpop.f32.mrb[0].mxu0
    %v248 = vadd.f32 %v138, %v247
    %249 = vmatprep.mubr.f32.mxu0 0.0
    %250 = vmatmul.mubr.f32.gmra.mrb[0].mxu0 %v149
    %v251 = vpop.f32.mrb[0].mxu0
    %v252 = vadd.f32 %v134, %v251
    %v253 = vpop.f32.mrb[0].mxu0
    %v254 = vadd.f32 %v138, %v253
    %255 = vmatprep.mubr.f32.mxu0 0.0
    %256 = vmatmul.mubr.f32.gmra.mrb[0].mxu0 %v152
    %v257 = vpop.f32.mrb[0].mxu0
    %v258 = vadd.f32 %v134, %v257
    %v259 = vpop.f32.mrb[0].mxu0
    %v260 = vadd.f32 %v138, %v259
    %261 = vmatprep.mubr.f32.mxu0 0.0
    %262 = vmatmul.mubr.f32.gmra.mrb[0].mxu0 %v155
    %v263 = vpop.f32.mrb[0].mxu0
    %v264 = vadd.f32 %v134, %v263
    %v265 = vpop.f32.mrb[0].mxu0
    %v266 = vadd.f32 %v138, %v265
    %267 = vmatprep.mubr.f32.mxu0 0.0
    %268 = vmatmul.mubr.f32.gmra.mrb[0].mxu0 %v158
    %v269 = vpop.f32.mrb[0].mxu0
    %v270 = vadd.f32 %v134, %v269
    %v271 = vpop.f32.mrb[0].mxu0
    %v272 = vadd.f32 %v138, %v271
    %273 = vmatprep.mubr.f32.mxu0 0.0
    %274 = vmatmul.mubr.f32.gmra.mrb[0].mxu0 %v161
    %v275 = vpop.f32.mrb[0].mxu0
    %v276 = vadd.f32 %v134, %v275
    %v277 = vpop.f32.mrb[0].mxu0
    %v278 = vadd.f32 %v138, %v277
    %279 = vmatprep.mubr.f32.mxu0 0.0
    %280 = vmatmul.mubr.f32.gmra.mrb[0].mxu0 %v164
    %v281 = vpop.f32.mrb[0].mxu0
    %v282 = vadd.f32 %v134, %v281
    %v283 = vpop.f32.mrb[0].mxu0
    %v284 = vadd.f32 %v138, %v283
    %285 = vdwg.mxu0
    %v286 = vld [vmem:[%s3] sm:$0xff]
    %v287 = vld [vmem:[%s3 + $0x8] sm:$0xff]
    %v288 = vld [vmem:[%s3 + $0x10] sm:$0xff]
    %v289 = vld [vmem:[%s3 + $0x18] sm:$0xff]
    %v290 = vld [vmem:[%s3 + $0x20] sm:$0xff]
    %v291 = vld [vmem:[%s3 + $0x28] sm:$0xff]
    %v292 = vld [vmem:[%s3 + $0x30] sm:$0xff]
    %v293 = vld [vmem:[%s3 + $0x38] sm:$0xff]
    %v294 = vld [vmem:[%s3 + $0x40] sm:$0xff]
    %v295 = vld [vmem:[%s3 + $0x48] sm:$0xff]
    %v296 = vld [vmem:[%s3 + $0x50] sm:$0xff]
    %v297 = vld [vmem:[%s3 + $0x58] sm:$0xff]
    %v298 = vld [vmem:[%s3 + $0x60] sm:$0xff]
    %v299 = vld [vmem:[%s3 + $0x68] sm:$0xff]
    %v300 = vld [vmem:[%s3 + $0x70] sm:$0xff]
    %v301 = vld [vmem:[%s3 + $0x78] sm:$0xff]
    %v302 = vsel %vm117, %v240, %v282
    %v303 = vsel %vm118, %v242, %v284
    %v304 = vsel %vm117, %v246, %v276
    %v305 = vsel %vm118, %v248, %v278
    %v306 = vsel %vm117, %v252, %v270
    %v307 = vsel %vm118, %v254, %v272
    %v308 = vsel %vm117, %v258, %v264
    %v309 = vsel %vm118, %v260, %v266
    %v310 = vsel %vm117, %v264, %v258
    %v311 = vsel %vm118, %v266, %v260
    %v312 = vsel %vm117, %v270, %v252
    %v313 = vsel %vm118, %v272, %v254
    %v314 = vsel %vm117, %v276, %v246
    %v315 = vsel %vm118, %v278, %v248
    %v316 = vsel %vm117, %v282, %v240
    %v317 = vsel %vm118, %v284, %v242
    %vm318 = vcmask 523264
    %v320 = vsel %vm318, 0.0, 0
    %322 = vmatprep.subr.mxu0 %v287
    %323 = vmatpush1.msra.mxu0 %v286
    %324 = vmatprep.subr.mxu0 %v289
    %325 = vmatpush1.msra.mxu0 %v288
    %326 = vmatprep.subr.mxu0 %v291
    %327 = vmatpush1.msra.mxu0 %v290
    %328 = vmatprep.subr.mxu0 %v293
    %329 = vmatpush1.msra.mxu0 %v292
    %330 = vmatprep.subr.mxu0 %v295
    %331 = vmatpush1.msra.mxu0 %v294
    %332 = vmatprep.subr.mxu0 %v297
    %333 = vmatpush1.msra.mxu0 %v296
    %334 = vmatprep.subr.mxu0 %v299
    %335 = vmatpush1.msra.mxu0 %v298
    %336 = vmatprep.subr.mxu0 %v301
    %337 = vmatpush1.msra.mxu0 %v300
    %338 = vmatprep.subr.mxu0 0.0
    %339 = vmatpush1.msra.mxu0 0.0
    %340 = vmatprep.subr.mxu0 0.0
    %341 = vmatpush1.msra.mxu0 0.0
    %342 = vmatprep.subr.mxu0 0.0
    %343 = vmatpush1.msra.mxu0 0.0
    %344 = vmatprep.subr.mxu0 0.0
    %345 = vmatpush1.msra.mxu0 0.0
    %346 = vmatprep.subr.mxu0 0.0
    %347 = vmatpush1.msra.mxu0 0.0
    %348 = vmatprep.subr.mxu0 0.0
    %349 = vmatpush1.msra.mxu0 0.0
    %350 = vmatprep.subr.mxu0 0.0
    %351 = vmatpush1.msra.mxu0 0.0
    %352 = vmatprep.subr.mxu0 0.0
    %353 = vmatpush1.msra.mxu0 0.0
    %354 = vmatprep.subr.mxu0 0.0
    %355 = vmatpush1.msra.mxu0 0.0
    %356 = vmatprep.subr.mxu0 0.0
    %357 = vmatpush1.msra.mxu0 0.0
    %358 = vmatprep.subr.mxu0 0.0
    %359 = vmatpush1.msra.mxu0 0.0
    %360 = vmatprep.subr.mxu0 0.0
    %361 = vmatpush1.msra.mxu0 0.0
    %362 = vmatprep.subr.mxu0 0.0
    %363 = vmatpush1.msra.mxu0 0.0
    %364 = vmatprep.subr.mxu0 0.0
    %365 = vmatpush1.msra.mxu0 0.0
    %366 = vmatprep.subr.mxu0 0.0
    %367 = vmatpush1.msra.mxu0 0.0
    %368 = vmatprep.subr.mxu0 0.0
    %369 = vmatpush1.msra.mxu0 0.0
    %370 = vmatprep.subr.mxu0 0.0
    %371 = vmatpush1.msra.mxu0 0.0
    %372 = vmatprep.subr.mxu0 0.0
    %373 = vmatpush1.msra.mxu0 0.0
    %374 = vmatprep.subr.mxu0 0.0
    %375 = vmatpush1.msra.mxu0 0.0
    %376 = vmatprep.subr.mxu0 0.0
    %377 = vmatpush1.msra.mxu0 0.0
    %378 = vmatprep.subr.mxu0 0.0
    %379 = vmatpush1.msra.mxu0 0.0
    %380 = vmatprep.subr.mxu0 0.0
    %381 = vmatpush1.msra.mxu0 0.0
    %382 = vmatprep.subr.mxu0 0.0
    %383 = vmatpush1.msra.mxu0 0.0
    %384 = vmatprep.subr.mxu0 0.0
    %385 = vmatpush1.msra.mxu0 0.0
    %386 = vmatprep.mubr.f32.mxu0 0.0
    %387 = vmatmul.mubr.f32.gmra.mrb[0].mxu0 %v320
    %v388 = vpop.f32.mrb[0].mxu0
    %v389 = vadd.f32 0.0, %v388
    %v390 = vpop.f32.mrb[0].mxu0
    %v391 = vadd.f32 0.0, %v390
    %392 = vdwg.mxu0
    %v393 = vadd.f32 %v302, %v389
    %v394 = vadd.f32 %v303, %v391
    %v395 = vxor.u32 %v393, 2147483648
    %v396 = vxor.u32 %v394, 2147483648
    %v397 = vmul.f32 %v395, 1.442695
    %v398 = vpow.pop %v397
    %v399 = vmul.f32 %v396, 1.442695
    %v400 = vpow.pop %v399
    %v401 = vadd.f32 %v398, 1.0
    %v402 = vadd.f32 %v400, 1.0
    %v403 = vrcp.pop %v401
    %v404 = vmul.f32 1.0, %v403
    %v405 = vrcp.pop %v402
    %v406 = vmul.f32 1.0, %v405
    %v407 = vtanh.pop %v394
    %v408 = vmul.f32 %v404, 0.0
    %v409 = vmul.f32 %v404, %v407
    %411 = vrot.lane.b32.xlu0 %v409, 64
    %v412 = vpop.permute.xlu0 %411
    %v414 = vadd.f32 %v408, %v412
    %v415 = vtanh.pop %v414
    %v416 = vmul.f32 %v406, %v415
    %418 = vrot.lane.b32.xlu0 %v416, 64
    %v419 = vpop.permute.xlu0 %418
    %v420 = vsel %vm318, %v419, 0
    %422 = vmatprep.subr.mxu0 %v287
    %423 = vmatpush1.msra.mxu0 %v286
    %424 = vmatprep.subr.mxu0 %v289
    %425 = vmatpush1.msra.mxu0 %v288
    %426 = vmatprep.subr.mxu0 %v291
    %427 = vmatpush1.msra.mxu0 %v290
    %428 = vmatprep.subr.mxu0 %v293
    %429 = vmatpush1.msra.mxu0 %v292
    %430 = vmatprep.subr.mxu0 %v295
    %431 = vmatpush1.msra.mxu0 %v294
    %432 = vmatprep.subr.mxu0 %v297
    %433 = vmatpush1.msra.mxu0 %v296
    %434 = vmatprep.subr.mxu0 %v299
    %435 = vmatpush1.msra.mxu0 %v298
    %436 = vmatprep.subr.mxu0 %v301
    %437 = vmatpush1.msra.mxu0 %v300
    %438 = vmatprep.subr.mxu0 0.0
    %439 = vmatpush1.msra.mxu0 0.0
    %440 = vmatprep.subr.mxu0 0.0
    %441 = vmatpush1.msra.mxu0 0.0
    %442 = vmatprep.subr.mxu0 0.0
    %443 = vmatpush1.msra.mxu0 0.0
    %444 = vmatprep.subr.mxu0 0.0
    %445 = vmatpush1.msra.mxu0 0.0
    %446 = vmatprep.subr.mxu0 0.0
    %447 = vmatpush1.msra.mxu0 0.0
    %448 = vmatprep.subr.mxu0 0.0
    %449 = vmatpush1.msra.mxu0 0.0
    %450 = vmatprep.subr.mxu0 0.0
    %451 = vmatpush1.msra.mxu0 0.0
    %452 = vmatprep.subr.mxu0 0.0
    %453 = vmatpush1.msra.mxu0 0.0
    %454 = vmatprep.subr.mxu0 0.0
    %455 = vmatpush1.msra.mxu0 0.0
    %456 = vmatprep.subr.mxu0 0.0
    %457 = vmatpush1.msra.mxu0 0.0
    %458 = vmatprep.subr.mxu0 0.0
    %459 = vmatpush1.msra.mxu0 0.0
    %460 = vmatprep.subr.mxu0 0.0
    %461 = vmatpush1.msra.mxu0 0.0
    %462 = vmatprep.subr.mxu0 0.0
    %463 = vmatpush1.msra.mxu0 0.0
    %464 = vmatprep.subr.mxu0 0.0
    %465 = vmatpush1.msra.mxu0 0.0
    %466 = vmatprep.subr.mxu0 0.0
    %467 = vmatpush1.msra.mxu0 0.0
    %468 = vmatprep.subr.mxu0 0.0
    %469 = vmatpush1.msra.mxu0 0.0
    %470 = vmatprep.subr.mxu0 0.0
    %471 = vmatpush1.msra.mxu0 0.0
    %472 = vmatprep.subr.mxu0 0.0
    %473 = vmatpush1.msra.mxu0 0.0
    %474 = vmatprep.subr.mxu0 0.0
    %475 = vmatpush1.msra.mxu0 0.0
    %476 = vmatprep.subr.mxu0 0.0
    %477 = vmatpush1.msra.mxu0 0.0
    %478 = vmatprep.subr.mxu0 0.0
    %479 = vmatpush1.msra.mxu0 0.0
    %480 = vmatprep.subr.mxu0 0.0
    %481 = vmatpush1.msra.mxu0 0.0
    %482 = vmatprep.subr.mxu0 0.0
    %483 = vmatpush1.msra.mxu0 0.0
    %484 = vmatprep.subr.mxu0 0.0
    %485 = vmatpush1.msra.mxu0 0.0
    %486 = vmatprep.mubr.f32.mxu0 0.0
    %487 = vmatmul.mubr.f32.gmra.mrb[0].mxu0 %v420
    %v488 = vpop.f32.mrb[0].mxu0
    %v489 = vadd.f32 0.0, %v488
    %v490 = vpop.f32.mrb[0].mxu0
    %v491 = vadd.f32 0.0, %v490
    %492 = vdwg.mxu0
    %v493 = vadd.f32 %v304, %v489
    %v494 = vadd.f32 %v305, %v491
    %v495 = vxor.u32 %v493, 2147483648
    %v496 = vxor.u32 %v494, 2147483648
    %v497 = vmul.f32 %v495, 1.442695
    %v498 = vpow.pop %v497
    %v499 = vmul.f32 %v496, 1.442695
    %v500 = vpow.pop %v499
    %v501 = vadd.f32 %v498, 1.0
    %v502 = vadd.f32 %v500, 1.0
    %v503 = vrcp.pop %v501
    %v504 = vmul.f32 1.0, %v503
    %v505 = vrcp.pop %v502
    %v506 = vmul.f32 1.0, %v505
    %v507 = vtanh.pop %v494
    %v508 = vmul.f32 %v504, %v414
    %v509 = vmul.f32 %v504, %v507
    %511 = vrot.lane.b32.xlu0 %v509, 64
    %v512 = vpop.permute.xlu0 %511
    %v514 = vadd.f32 %v508, %v512
    %v515 = vtanh.pop %v514
    %v516 = vmul.f32 %v506, %v515
    %518 = vrot.lane.b32.xlu0 %v516, 64
    %v519 = vpop.permute.xlu0 %518
    %v520 = vsel %vm318, %v519, 0
    %522 = vmatprep.subr.mxu0 %v287
    %523 = vmatpush1.msra.mxu0 %v286
    %524 = vmatprep.subr.mxu0 %v289
    %525 = vmatpush1.msra.mxu0 %v288
    %526 = vmatprep.subr.mxu0 %v291
    %527 = vmatpush1.msra.mxu0 %v290
    %528 = vmatprep.subr.mxu0 %v293
    %529 = vmatpush1.msra.mxu0 %v292
    %530 = vmatprep.subr.mxu0 %v295
    %531 = vmatpush1.msra.mxu0 %v294
    %532 = vmatprep.subr.mxu0 %v297
    %533 = vmatpush1.msra.mxu0 %v296
    %534 = vmatprep.subr.mxu0 %v299
    %535 = vmatpush1.msra.mxu0 %v298
    %536 = vmatprep.subr.mxu0 %v301
    %537 = vmatpush1.msra.mxu0 %v300
    %538 = vmatprep.subr.mxu0 0.0
    %539 = vmatpush1.msra.mxu0 0.0
    %540 = vmatprep.subr.mxu0 0.0
    %541 = vmatpush1.msra.mxu0 0.0
    %542 = vmatprep.subr.mxu0 0.0
    %543 = vmatpush1.msra.mxu0 0.0
    %544 = vmatprep.subr.mxu0 0.0
    %545 = vmatpush1.msra.mxu0 0.0
    %546 = vmatprep.subr.mxu0 0.0
    %547 = vmatpush1.msra.mxu0 0.0
    %548 = vmatprep.subr.mxu0 0.0
    %549 = vmatpush1.msra.mxu0 0.0
    %550 = vmatprep.subr.mxu0 0.0
    %551 = vmatpush1.msra.mxu0 0.0
    %552 = vmatprep.subr.mxu0 0.0
    %553 = vmatpush1.msra.mxu0 0.0
    %554 = vmatprep.subr.mxu0 0.0
    %555 = vmatpush1.msra.mxu0 0.0
    %556 = vmatprep.subr.mxu0 0.0
    %557 = vmatpush1.msra.mxu0 0.0
    %558 = vmatprep.subr.mxu0 0.0
    %559 = vmatpush1.msra.mxu0 0.0
    %560 = vmatprep.subr.mxu0 0.0
    %561 = vmatpush1.msra.mxu0 0.0
    %562 = vmatprep.subr.mxu0 0.0
    %563 = vmatpush1.msra.mxu0 0.0
    %564 = vmatprep.subr.mxu0 0.0
    %565 = vmatpush1.msra.mxu0 0.0
    %566 = vmatprep.subr.mxu0 0.0
    %567 = vmatpush1.msra.mxu0 0.0
    %568 = vmatprep.subr.mxu0 0.0
    %569 = vmatpush1.msra.mxu0 0.0
    %570 = vmatprep.subr.mxu0 0.0
    %571 = vmatpush1.msra.mxu0 0.0
    %572 = vmatprep.subr.mxu0 0.0
    %573 = vmatpush1.msra.mxu0 0.0
    %574 = vmatprep.subr.mxu0 0.0
    %575 = vmatpush1.msra.mxu0 0.0
    %576 = vmatprep.subr.mxu0 0.0
    %577 = vmatpush1.msra.mxu0 0.0
    %578 = vmatprep.subr.mxu0 0.0
    %579 = vmatpush1.msra.mxu0 0.0
    %580 = vmatprep.subr.mxu0 0.0
    %581 = vmatpush1.msra.mxu0 0.0
    %582 = vmatprep.subr.mxu0 0.0
    %583 = vmatpush1.msra.mxu0 0.0
    %584 = vmatprep.subr.mxu0 0.0
    %585 = vmatpush1.msra.mxu0 0.0
    %586 = vmatprep.mubr.f32.mxu0 0.0
    %587 = vmatmul.mubr.f32.gmra.mrb[0].mxu0 %v520
    %v588 = vpop.f32.mrb[0].mxu0
    %v589 = vadd.f32 0.0, %v588
    %v590 = vpop.f32.mrb[0].mxu0
    %v591 = vadd.f32 0.0, %v590
    %592 = vdwg.mxu0
    %v593 = vadd.f32 %v306, %v589
    %v594 = vadd.f32 %v307, %v591
    %v595 = vxor.u32 %v593, 2147483648
    %v596 = vxor.u32 %v594, 2147483648
    %v597 = vmul.f32 %v595, 1.442695
    %v598 = vpow.pop %v597
    %v599 = vmul.f32 %v596, 1.442695
    %v600 = vpow.pop %v599
    %v601 = vadd.f32 %v598, 1.0
    %v602 = vadd.f32 %v600, 1.0
    %v603 = vrcp.pop %v601
    %v604 = vmul.f32 1.0, %v603
    %v605 = vrcp.pop %v602
    %v606 = vmul.f32 1.0, %v605
    %v607 = vtanh.pop %v594
    %v608 = vmul.f32 %v604, %v514
    %v609 = vmul.f32 %v604, %v607
    %611 = vrot.lane.b32.xlu0 %v609, 64
    %v612 = vpop.permute.xlu0 %611
    %v614 = vadd.f32 %v608, %v612
    %v615 = vtanh.pop %v614
    %v616 = vmul.f32 %v606, %v615
    %618 = vrot.lane.b32.xlu0 %v616, 64
    %v619 = vpop.permute.xlu0 %618
    %v620 = vsel %vm318, %v619, 0
    %622 = vmatprep.subr.mxu0 %v287
    %623 = vmatpush1.msra.mxu0 %v286
    %624 = vmatprep.subr.mxu0 %v289
    %625 = vmatpush1.msra.mxu0 %v288
    %626 = vmatprep.subr.mxu0 %v291
    %627 = vmatpush1.msra.mxu0 %v290
    %628 = vmatprep.subr.mxu0 %v293
    %629 = vmatpush1.msra.mxu0 %v292
    %630 = vmatprep.subr.mxu0 %v295
    %631 = vmatpush1.msra.mxu0 %v294
    %632 = vmatprep.subr.mxu0 %v297
    %633 = vmatpush1.msra.mxu0 %v296
    %634 = vmatprep.subr.mxu0 %v299
    %635 = vmatpush1.msra.mxu0 %v298
    %636 = vmatprep.subr.mxu0 %v301
    %637 = vmatpush1.msra.mxu0 %v300
    %638 = vmatprep.subr.mxu0 0.0
    %639 = vmatpush1.msra.mxu0 0.0
    %640 = vmatprep.subr.mxu0 0.0
    %641 = vmatpush1.msra.mxu0 0.0
    %642 = vmatprep.subr.mxu0 0.0
    %643 = vmatpush1.msra.mxu0 0.0
    %644 = vmatprep.subr.mxu0 0.0
    %645 = vmatpush1.msra.mxu0 0.0
    %646 = vmatprep.subr.mxu0 0.0
    %647 = vmatpush1.msra.mxu0 0.0
    %648 = vmatprep.subr.mxu0 0.0
    %649 = vmatpush1.msra.mxu0 0.0
    %650 = vmatprep.subr.mxu0 0.0
    %651 = vmatpush1.msra.mxu0 0.0
    %652 = vmatprep.subr.mxu0 0.0
    %653 = vmatpush1.msra.mxu0 0.0
    %654 = vmatprep.subr.mxu0 0.0
    %655 = vmatpush1.msra.mxu0 0.0
    %656 = vmatprep.subr.mxu0 0.0
    %657 = vmatpush1.msra.mxu0 0.0
    %658 = vmatprep.subr.mxu0 0.0
    %659 = vmatpush1.msra.mxu0 0.0
    %660 = vmatprep.subr.mxu0 0.0
    %661 = vmatpush1.msra.mxu0 0.0
    %662 = vmatprep.subr.mxu0 0.0
    %663 = vmatpush1.msra.mxu0 0.0
    %664 = vmatprep.subr.mxu0 0.0
    %665 = vmatpush1.msra.mxu0 0.0
    %666 = vmatprep.subr.mxu0 0.0
    %667 = vmatpush1.msra.mxu0 0.0
    %668 = vmatprep.subr.mxu0 0.0
    %669 = vmatpush1.msra.mxu0 0.0
    %670 = vmatprep.subr.mxu0 0.0
    %671 = vmatpush1.msra.mxu0 0.0
    %672 = vmatprep.subr.mxu0 0.0
    %673 = vmatpush1.msra.mxu0 0.0
    %674 = vmatprep.subr.mxu0 0.0
    %675 = vmatpush1.msra.mxu0 0.0
    %676 = vmatprep.subr.mxu0 0.0
    %677 = vmatpush1.msra.mxu0 0.0
    %678 = vmatprep.subr.mxu0 0.0
    %679 = vmatpush1.msra.mxu0 0.0
    %680 = vmatprep.subr.mxu0 0.0
    %681 = vmatpush1.msra.mxu0 0.0
    %682 = vmatprep.subr.mxu0 0.0
    %683 = vmatpush1.msra.mxu0 0.0
    %684 = vmatprep.subr.mxu0 0.0
    %685 = vmatpush1.msra.mxu0 0.0
    %686 = vmatprep.mubr.f32.mxu0 0.0
    %687 = vmatmul.mubr.f32.gmra.mrb[0].mxu0 %v620
    %v688 = vpop.f32.mrb[0].mxu0
    %v689 = vadd.f32 0.0, %v688
    %v690 = vpop.f32.mrb[0].mxu0
    %v691 = vadd.f32 0.0, %v690
    %692 = vdwg.mxu0
    %v693 = vadd.f32 %v308, %v689
    %v694 = vadd.f32 %v309, %v691
    %v695 = vxor.u32 %v693, 2147483648
    %v696 = vxor.u32 %v694, 2147483648
    %v697 = vmul.f32 %v695, 1.442695
    %v698 = vpow.pop %v697
    %v699 = vmul.f32 %v696, 1.442695
    %v700 = vpow.pop %v699
    %v701 = vadd.f32 %v698, 1.0
    %v702 = vadd.f32 %v700, 1.0
    %v703 = vrcp.pop %v701
    %v704 = vmul.f32 1.0, %v703
    %v705 = vrcp.pop %v702
    %v706 = vmul.f32 1.0, %v705
    %v707 = vtanh.pop %v694
    %v708 = vmul.f32 %v704, %v614
    %v709 = vmul.f32 %v704, %v707
    %711 = vrot.lane.b32.xlu0 %v709, 64
    %v712 = vpop.permute.xlu0 %711
    %v714 = vadd.f32 %v708, %v712
    %v715 = vtanh.pop %v714
    %v716 = vmul.f32 %v706, %v715
    %718 = vrot.lane.b32.xlu0 %v716, 64
    %v719 = vpop.permute.xlu0 %718
    %v720 = vsel %vm318, %v719, 0
    %722 = vmatprep.subr.mxu0 %v287
    %723 = vmatpush1.msra.mxu0 %v286
    %724 = vmatprep.subr.mxu0 %v289
    %725 = vmatpush1.msra.mxu0 %v288
    %726 = vmatprep.subr.mxu0 %v291
    %727 = vmatpush1.msra.mxu0 %v290
    %728 = vmatprep.subr.mxu0 %v293
    %729 = vmatpush1.msra.mxu0 %v292
    %730 = vmatprep.subr.mxu0 %v295
    %731 = vmatpush1.msra.mxu0 %v294
    %732 = vmatprep.subr.mxu0 %v297
    %733 = vmatpush1.msra.mxu0 %v296
    %734 = vmatprep.subr.mxu0 %v299
    %735 = vmatpush1.msra.mxu0 %v298
    %736 = vmatprep.subr.mxu0 %v301
    %737 = vmatpush1.msra.mxu0 %v300
    %738 = vmatprep.subr.mxu0 0.0
    %739 = vmatpush1.msra.mxu0 0.0
    %740 = vmatprep.subr.mxu0 0.0
    %741 = vmatpush1.msra.mxu0 0.0
    %742 = vmatprep.subr.mxu0 0.0
    %743 = vmatpush1.msra.mxu0 0.0
    %744 = vmatprep.subr.mxu0 0.0
    %745 = vmatpush1.msra.mxu0 0.0
    %746 = vmatprep.subr.mxu0 0.0
    %747 = vmatpush1.msra.mxu0 0.0
    %748 = vmatprep.subr.mxu0 0.0
    %749 = vmatpush1.msra.mxu0 0.0
    %750 = vmatprep.subr.mxu0 0.0
    %751 = vmatpush1.msra.mxu0 0.0
    %752 = vmatprep.subr.mxu0 0.0
    %753 = vmatpush1.msra.mxu0 0.0
    %754 = vmatprep.subr.mxu0 0.0
    %755 = vmatpush1.msra.mxu0 0.0
    %756 = vmatprep.subr.mxu0 0.0
    %757 = vmatpush1.msra.mxu0 0.0
    %758 = vmatprep.subr.mxu0 0.0
    %759 = vmatpush1.msra.mxu0 0.0
    %760 = vmatprep.subr.mxu0 0.0
    %761 = vmatpush1.msra.mxu0 0.0
    %762 = vmatprep.subr.mxu0 0.0
    %763 = vmatpush1.msra.mxu0 0.0
    %764 = vmatprep.subr.mxu0 0.0
    %765 = vmatpush1.msra.mxu0 0.0
    %766 = vmatprep.subr.mxu0 0.0
    %767 = vmatpush1.msra.mxu0 0.0
    %768 = vmatprep.subr.mxu0 0.0
    %769 = vmatpush1.msra.mxu0 0.0
    %770 = vmatprep.subr.mxu0 0.0
    %771 = vmatpush1.msra.mxu0 0.0
    %772 = vmatprep.subr.mxu0 0.0
    %773 = vmatpush1.msra.mxu0 0.0
    %774 = vmatprep.subr.mxu0 0.0
    %775 = vmatpush1.msra.mxu0 0.0
    %776 = vmatprep.subr.mxu0 0.0
    %777 = vmatpush1.msra.mxu0 0.0
    %778 = vmatprep.subr.mxu0 0.0
    %779 = vmatpush1.msra.mxu0 0.0
    %780 = vmatprep.subr.mxu0 0.0
    %781 = vmatpush1.msra.mxu0 0.0
    %782 = vmatprep.subr.mxu0 0.0
    %783 = vmatpush1.msra.mxu0 0.0
    %784 = vmatprep.subr.mxu0 0.0
    %785 = vmatpush1.msra.mxu0 0.0
    %786 = vmatprep.mubr.f32.mxu0 0.0
    %787 = vmatmul.mubr.f32.gmra.mrb[0].mxu0 %v720
    %v788 = vpop.f32.mrb[0].mxu0
    %v789 = vadd.f32 0.0, %v788
    %v790 = vpop.f32.mrb[0].mxu0
    %v791 = vadd.f32 0.0, %v790
    %792 = vdwg.mxu0
    %v793 = vadd.f32 %v310, %v789
    %v794 = vadd.f32 %v311, %v791
    %v795 = vxor.u32 %v793, 2147483648
    %v796 = vxor.u32 %v794, 2147483648
    %v797 = vmul.f32 %v795, 1.442695
    %v798 = vpow.pop %v797
    %v799 = vmul.f32 %v796, 1.442695
    %v800 = vpow.pop %v799
    %v801 = vadd.f32 %v798, 1.0
    %v802 = vadd.f32 %v800, 1.0
    %v803 = vrcp.pop %v801
    %v804 = vmul.f32 1.0, %v803
    %v805 = vrcp.pop %v802
    %v806 = vmul.f32 1.0, %v805
    %v807 = vtanh.pop %v794
    %v808 = vmul.f32 %v804, %v714
    %v809 = vmul.f32 %v804, %v807
    %811 = vrot.lane.b32.xlu0 %v809, 64
    %v812 = vpop.permute.xlu0 %811
    %v814 = vadd.f32 %v808, %v812
    %v815 = vtanh.pop %v814
    %v816 = vmul.f32 %v806, %v815
    %818 = vrot.lane.b32.xlu0 %v816, 64
    %v819 = vpop.permute.xlu0 %818
    %v820 = vsel %vm318, %v819, 0
    %822 = vmatprep.subr.mxu0 %v287
    %823 = vmatpush1.msra.mxu0 %v286
    %824 = vmatprep.subr.mxu0 %v289
    %825 = vmatpush1.msra.mxu0 %v288
    %826 = vmatprep.subr.mxu0 %v291
    %827 = vmatpush1.msra.mxu0 %v290
    %828 = vmatprep.subr.mxu0 %v293
    %829 = vmatpush1.msra.mxu0 %v292
    %830 = vmatprep.subr.mxu0 %v295
    %831 = vmatpush1.msra.mxu0 %v294
    %832 = vmatprep.subr.mxu0 %v297
    %833 = vmatpush1.msra.mxu0 %v296
    %834 = vmatprep.subr.mxu0 %v299
    %835 = vmatpush1.msra.mxu0 %v298
    %836 = vmatprep.subr.mxu0 %v301
    %837 = vmatpush1.msra.mxu0 %v300
    %838 = vmatprep.subr.mxu0 0.0
    %839 = vmatpush1.msra.mxu0 0.0
    %840 = vmatprep.subr.mxu0 0.0
    %841 = vmatpush1.msra.mxu0 0.0
    %842 = vmatprep.subr.mxu0 0.0
    %843 = vmatpush1.msra.mxu0 0.0
    %844 = vmatprep.subr.mxu0 0.0
    %845 = vmatpush1.msra.mxu0 0.0
    %846 = vmatprep.subr.mxu0 0.0
    %847 = vmatpush1.msra.mxu0 0.0
    %848 = vmatprep.subr.mxu0 0.0
    %849 = vmatpush1.msra.mxu0 0.0
    %850 = vmatprep.subr.mxu0 0.0
    %851 = vmatpush1.msra.mxu0 0.0
    %852 = vmatprep.subr.mxu0 0.0
    %853 = vmatpush1.msra.mxu0 0.0
    %854 = vmatprep.subr.mxu0 0.0
    %855 = vmatpush1.msra.mxu0 0.0
    %856 = vmatprep.subr.mxu0 0.0
    %857 = vmatpush1.msra.mxu0 0.0
    %858 = vmatprep.subr.mxu0 0.0
    %859 = vmatpush1.msra.mxu0 0.0
    %860 = vmatprep.subr.mxu0 0.0
    %861 = vmatpush1.msra.mxu0 0.0
    %862 = vmatprep.subr.mxu0 0.0
    %863 = vmatpush1.msra.mxu0 0.0
    %864 = vmatprep.subr.mxu0 0.0
    %865 = vmatpush1.msra.mxu0 0.0
    %866 = vmatprep.subr.mxu0 0.0
    %867 = vmatpush1.msra.mxu0 0.0
    %868 = vmatprep.subr.mxu0 0.0
    %869 = vmatpush1.msra.mxu0 0.0
    %870 = vmatprep.subr.mxu0 0.0
    %871 = vmatpush1.msra.mxu0 0.0
    %872 = vmatprep.subr.mxu0 0.0
    %873 = vmatpush1.msra.mxu0 0.0
    %874 = vmatprep.subr.mxu0 0.0
    %875 = vmatpush1.msra.mxu0 0.0
    %876 = vmatprep.subr.mxu0 0.0
    %877 = vmatpush1.msra.mxu0 0.0
    %878 = vmatprep.subr.mxu0 0.0
    %879 = vmatpush1.msra.mxu0 0.0
    %880 = vmatprep.subr.mxu0 0.0
    %881 = vmatpush1.msra.mxu0 0.0
    %882 = vmatprep.subr.mxu0 0.0
    %883 = vmatpush1.msra.mxu0 0.0
    %884 = vmatprep.subr.mxu0 0.0
    %885 = vmatpush1.msra.mxu0 0.0
    %886 = vmatprep.mubr.f32.mxu0 0.0
    %887 = vmatmul.mubr.f32.gmra.mrb[0].mxu0 %v820
    %v888 = vpop.f32.mrb[0].mxu0
    %v889 = vadd.f32 0.0, %v888
    %v890 = vpop.f32.mrb[0].mxu0
    %v891 = vadd.f32 0.0, %v890
    %892 = vdwg.mxu0
    %v893 = vadd.f32 %v312, %v889
    %v894 = vadd.f32 %v313, %v891
    %v895 = vxor.u32 %v893, 2147483648
    %v896 = vxor.u32 %v894, 2147483648
    %v897 = vmul.f32 %v895, 1.442695
    %v898 = vpow.pop %v897
    %v899 = vmul.f32 %v896, 1.442695
    %v900 = vpow.pop %v899
    %v901 = vadd.f32 %v898, 1.0
    %v902 = vadd.f32 %v900, 1.0
    %v903 = vrcp.pop %v901
    %v904 = vmul.f32 1.0, %v903
    %v905 = vrcp.pop %v902
    %v906 = vmul.f32 1.0, %v905
    %v907 = vtanh.pop %v894
    %v908 = vmul.f32 %v904, %v814
    %v909 = vmul.f32 %v904, %v907
    %911 = vrot.lane.b32.xlu0 %v909, 64
    %v912 = vpop.permute.xlu0 %911
    %v914 = vadd.f32 %v908, %v912
    %v915 = vtanh.pop %v914
    %v916 = vmul.f32 %v906, %v915
    %918 = vrot.lane.b32.xlu0 %v916, 64
    %v919 = vpop.permute.xlu0 %918
    %v920 = vsel %vm318, %v919, 0
    %922 = vmatprep.subr.mxu0 %v287
    %923 = vmatpush1.msra.mxu0 %v286
    %924 = vmatprep.subr.mxu0 %v289
    %925 = vmatpush1.msra.mxu0 %v288
    %926 = vmatprep.subr.mxu0 %v291
    %927 = vmatpush1.msra.mxu0 %v290
    %928 = vmatprep.subr.mxu0 %v293
    %929 = vmatpush1.msra.mxu0 %v292
    %930 = vmatprep.subr.mxu0 %v295
    %931 = vmatpush1.msra.mxu0 %v294
    %932 = vmatprep.subr.mxu0 %v297
    %933 = vmatpush1.msra.mxu0 %v296
    %934 = vmatprep.subr.mxu0 %v299
    %935 = vmatpush1.msra.mxu0 %v298
    %936 = vmatprep.subr.mxu0 %v301
    %937 = vmatpush1.msra.mxu0 %v300
    %938 = vmatprep.subr.mxu0 0.0
    %939 = vmatpush1.msra.mxu0 0.0
    %940 = vmatprep.subr.mxu0 0.0
    %941 = vmatpush1.msra.mxu0 0.0
    %942 = vmatprep.subr.mxu0 0.0
    %943 = vmatpush1.msra.mxu0 0.0
    %944 = vmatprep.subr.mxu0 0.0
    %945 = vmatpush1.msra.mxu0 0.0
    %946 = vmatprep.subr.mxu0 0.0
    %947 = vmatpush1.msra.mxu0 0.0
    %948 = vmatprep.subr.mxu0 0.0
    %949 = vmatpush1.msra.mxu0 0.0
    %950 = vmatprep.subr.mxu0 0.0
    %951 = vmatpush1.msra.mxu0 0.0
    %952 = vmatprep.subr.mxu0 0.0
    %953 = vmatpush1.msra.mxu0 0.0
    %954 = vmatprep.subr.mxu0 0.0
    %955 = vmatpush1.msra.mxu0 0.0
    %956 = vmatprep.subr.mxu0 0.0
    %957 = vmatpush1.msra.mxu0 0.0
    %958 = vmatprep.subr.mxu0 0.0
    %959 = vmatpush1.msra.mxu0 0.0
    %960 = vmatprep.subr.mxu0 0.0
    %961 = vmatpush1.msra.mxu0 0.0
    %962 = vmatprep.subr.mxu0 0.0
    %963 = vmatpush1.msra.mxu0 0.0
    %964 = vmatprep.subr.mxu0 0.0
    %965 = vmatpush1.msra.mxu0 0.0
    %966 = vmatprep.subr.mxu0 0.0
    %967 = vmatpush1.msra.mxu0 0.0
    %968 = vmatprep.subr.mxu0 0.0
    %969 = vmatpush1.msra.mxu0 0.0
    %970 = vmatprep.subr.mxu0 0.0
    %971 = vmatpush1.msra.mxu0 0.0
    %972 = vmatprep.subr.mxu0 0.0
    %973 = vmatpush1.msra.mxu0 0.0
    %974 = vmatprep.subr.mxu0 0.0
    %975 = vmatpush1.msra.mxu0 0.0
    %976 = vmatprep.subr.mxu0 0.0
    %977 = vmatpush1.msra.mxu0 0.0
    %978 = vmatprep.subr.mxu0 0.0
    %979 = vmatpush1.msra.mxu0 0.0
    %980 = vmatprep.subr.mxu0 0.0
    %981 = vmatpush1.msra.mxu0 0.0
    %982 = vmatprep.subr.mxu0 0.0
    %983 = vmatpush1.msra.mxu0 0.0
    %984 = vmatprep.subr.mxu0 0.0
    %985 = vmatpush1.msra.mxu0 0.0
    %986 = vmatprep.mubr.f32.mxu0 0.0
    %987 = vmatmul.mubr.f32.gmra.mrb[0].mxu0 %v920
    %v988 = vpop.f32.mrb[0].mxu0
    %v989 = vadd.f32 0.0, %v988
    %v990 = vpop.f32.mrb[0].mxu0
    %v991 = vadd.f32 0.0, %v990
    %992 = vdwg.mxu0
    %v993 = vadd.f32 %v314, %v989
    %v994 = vadd.f32 %v315, %v991
    %v995 = vxor.u32 %v993, 2147483648
    %v996 = vxor.u32 %v994, 2147483648
    %v997 = vmul.f32 %v995, 1.442695
    %v998 = vpow.pop %v997
    %v999 = vmul.f32 %v996, 1.442695
    %v1000 = vpow.pop %v999
    %v1001 = vadd.f32 %v998, 1.0
    %v1002 = vadd.f32 %v1000, 1.0
    %v1003 = vrcp.pop %v1001
    %v1004 = vmul.f32 1.0, %v1003
    %v1005 = vrcp.pop %v1002
    %v1006 = vmul.f32 1.0, %v1005
    %v1007 = vtanh.pop %v994
    %v1008 = vmul.f32 %v1004, %v914
    %v1009 = vmul.f32 %v1004, %v1007
    %1011 = vrot.lane.b32.xlu0 %v1009, 64
    %v1012 = vpop.permute.xlu0 %1011
    %v1014 = vadd.f32 %v1008, %v1012
    %v1015 = vtanh.pop %v1014
    %v1016 = vmul.f32 %v1006, %v1015
    %1018 = vrot.lane.b32.xlu0 %v1016, 64
    %v1019 = vpop.permute.xlu0 %1018
    %v1020 = vsel %vm318, %v1019, 0
    %1022 = vmatprep.subr.mxu0 %v287
    %1023 = vmatpush1.msra.mxu0 %v286
    %1024 = vmatprep.subr.mxu0 %v289
    %1025 = vmatpush1.msra.mxu0 %v288
    %1026 = vmatprep.subr.mxu0 %v291
    %1027 = vmatpush1.msra.mxu0 %v290
    %1028 = vmatprep.subr.mxu0 %v293
    %1029 = vmatpush1.msra.mxu0 %v292
    %1030 = vmatprep.subr.mxu0 %v295
    %1031 = vmatpush1.msra.mxu0 %v294
    %1032 = vmatprep.subr.mxu0 %v297
    %1033 = vmatpush1.msra.mxu0 %v296
    %1034 = vmatprep.subr.mxu0 %v299
    %1035 = vmatpush1.msra.mxu0 %v298
    %1036 = vmatprep.subr.mxu0 %v301
    %1037 = vmatpush1.msra.mxu0 %v300
    %1038 = vmatprep.subr.mxu0 0.0
    %1039 = vmatpush1.msra.mxu0 0.0
    %1040 = vmatprep.subr.mxu0 0.0
    %1041 = vmatpush1.msra.mxu0 0.0
    %1042 = vmatprep.subr.mxu0 0.0
    %1043 = vmatpush1.msra.mxu0 0.0
    %1044 = vmatprep.subr.mxu0 0.0
    %1045 = vmatpush1.msra.mxu0 0.0
    %1046 = vmatprep.subr.mxu0 0.0
    %1047 = vmatpush1.msra.mxu0 0.0
    %1048 = vmatprep.subr.mxu0 0.0
    %1049 = vmatpush1.msra.mxu0 0.0
    %1050 = vmatprep.subr.mxu0 0.0
    %1051 = vmatpush1.msra.mxu0 0.0
    %1052 = vmatprep.subr.mxu0 0.0
    %1053 = vmatpush1.msra.mxu0 0.0
    %1054 = vmatprep.subr.mxu0 0.0
    %1055 = vmatpush1.msra.mxu0 0.0
    %1056 = vmatprep.subr.mxu0 0.0
    %1057 = vmatpush1.msra.mxu0 0.0
    %1058 = vmatprep.subr.mxu0 0.0
    %1059 = vmatpush1.msra.mxu0 0.0
    %1060 = vmatprep.subr.mxu0 0.0
    %1061 = vmatpush1.msra.mxu0 0.0
    %1062 = vmatprep.subr.mxu0 0.0
    %1063 = vmatpush1.msra.mxu0 0.0
    %1064 = vmatprep.subr.mxu0 0.0
    %1065 = vmatpush1.msra.mxu0 0.0
    %1066 = vmatprep.subr.mxu0 0.0
    %1067 = vmatpush1.msra.mxu0 0.0
    %1068 = vmatprep.subr.mxu0 0.0
    %1069 = vmatpush1.msra.mxu0 0.0
    %1070 = vmatprep.subr.mxu0 0.0
    %1071 = vmatpush1.msra.mxu0 0.0
    %1072 = vmatprep.subr.mxu0 0.0
    %1073 = vmatpush1.msra.mxu0 0.0
    %1074 = vmatprep.subr.mxu0 0.0
    %1075 = vmatpush1.msra.mxu0 0.0
    %1076 = vmatprep.subr.mxu0 0.0
    %1077 = vmatpush1.msra.mxu0 0.0
    %1078 = vmatprep.subr.mxu0 0.0
    %1079 = vmatpush1.msra.mxu0 0.0
    %1080 = vmatprep.subr.mxu0 0.0
    %1081 = vmatpush1.msra.mxu0 0.0
    %1082 = vmatprep.subr.mxu0 0.0
    %1083 = vmatpush1.msra.mxu0 0.0
    %1084 = vmatprep.subr.mxu0 0.0
    %1085 = vmatpush1.msra.mxu0 0.0
    %1086 = vmatprep.mubr.f32.mxu0 0.0
    %1087 = vmatmul.mubr.f32.gmra.mrb[0].mxu0 %v1020
    %v1088 = vpop.f32.mrb[0].mxu0
    %v1089 = vadd.f32 0.0, %v1088
    %v1090 = vpop.f32.mrb[0].mxu0
    %v1091 = vadd.f32 0.0, %v1090
    %1092 = vdwg.mxu0
    %v1093 = vadd.f32 %v316, %v1089
    %v1094 = vadd.f32 %v317, %v1091
    %v1095 = vxor.u32 %v1093, 2147483648
    %v1096 = vxor.u32 %v1094, 2147483648
    %v1097 = vmul.f32 %v1095, 1.442695
    %v1098 = vpow.pop %v1097
    %v1099 = vmul.f32 %v1096, 1.442695
    %v1100 = vpow.pop %v1099
    %v1101 = vadd.f32 %v1098, 1.0
    %v1102 = vadd.f32 %v1100, 1.0
    %v1103 = vrcp.pop %v1101
    %v1104 = vmul.f32 1.0, %v1103
    %v1105 = vrcp.pop %v1102
    %v1106 = vmul.f32 1.0, %v1105
    %v1107 = vtanh.pop %v1094
    %v1108 = vmul.f32 %v1104, %v1014
    %v1109 = vmul.f32 %v1104, %v1107
    %1111 = vrot.lane.b32.xlu0 %v1109, 64
    %v1112 = vpop.permute.xlu0 %1111
    %v1114 = vadd.f32 %v1108, %v1112
    %v1115 = vtanh.pop %v1114
    %v1116 = vmul.f32 %v1106, %v1115
    %1118 = vrot.lane.b32.xlu0 %v1116, 64
    %v1119 = vpop.permute.xlu0 %1118
    %vm1128 = vcmask 261120
    %v1129 = vsel %vm1128, %v419, %v1119
    %v1130 = vsel %vm1128, %v519, %v1019
    %v1131 = vsel %vm1128, %v619, %v919
    %v1132 = vsel %vm1128, %v719, %v819
    %v1133 = vsel %vm1128, %v819, %v719
    %v1134 = vsel %vm1128, %v919, %v619
    %v1135 = vsel %vm1128, %v1019, %v519
    %v1136 = vsel %vm1128, %v1119, %v419
    %v1137 = vld [vmem:[%s5] sm:$0xff]
    %v1138 = vld [vmem:[%s5 + $0x8] sm:$0xff]
    %v1139 = vld [vmem:[%s5 + $0x10] sm:$0xff]
    %v1140 = vld [vmem:[%s5 + $0x18] sm:$0xff]
    %v1141 = vld [vmem:[%s5 + $0x20] sm:$0xff]
    %v1142 = vld [vmem:[%s5 + $0x28] sm:$0xff]
    %v1143 = vld [vmem:[%s5 + $0x30] sm:$0xff]
    %v1144 = vld [vmem:[%s5 + $0x38] sm:$0xff]
    %v1145 = vld [vmem:[%s5 + $0x40] sm:$0xff]
    %v1146 = vld [vmem:[%s5 + $0x48] sm:$0xff]
    %v1147 = vld [vmem:[%s5 + $0x50] sm:$0xff]
    %v1148 = vld [vmem:[%s5 + $0x58] sm:$0xff]
    %v1149 = vld [vmem:[%s5 + $0x60] sm:$0xff]
    %v1150 = vld [vmem:[%s5 + $0x68] sm:$0xff]
    %v1151 = vld [vmem:[%s5 + $0x70] sm:$0xff]
    %v1152 = vld [vmem:[%s5 + $0x78] sm:$0xff]
    %v1153 = vld [vmem:[%s7] sm:$0x3]
    %v1155 = vlaneseq
    %v1156 = vshrl.u32 %v1155, 7
    %v1157 = vsub.s32 0, %v1156
    %v1158 = vrot.slane %v1153, %v1157
    %v1159 = vlaneseq
    %v1160 = vshrl.u32 %v1159, 7
    %v1161 = vsub.s32 1, %v1160
    %v1162 = vrot.slane %v1153, %v1161
    %v1166 = vsel %vm318, %v1129, 0
    %v1169 = vsel %vm318, %v1130, 0
    %v1172 = vsel %vm318, %v1131, 0
    %v1175 = vsel %vm318, %v1132, 0
    %v1178 = vsel %vm318, %v1133, 0
    %v1181 = vsel %vm318, %v1134, 0
    %v1184 = vsel %vm318, %v1135, 0
    %v1187 = vsel %vm318, %v1136, 0
    %1189 = vmatprep.subr.mxu0 %v1138
    %1190 = vmatpush1.msra.mxu0 %v1137
    %1191 = vmatprep.subr.mxu0 %v1140
    %1192 = vmatpush1.msra.mxu0 %v1139
    %1193 = vmatprep.subr.mxu0 %v1142
    %1194 = vmatpush1.msra.mxu0 %v1141
    %1195 = vmatprep.subr.mxu0 %v1144
    %1196 = vmatpush1.msra.mxu0 %v1143
    %1197 = vmatprep.subr.mxu0 %v1146
    %1198 = vmatpush1.msra.mxu0 %v1145
    %1199 = vmatprep.subr.mxu0 %v1148
    %1200 = vmatpush1.msra.mxu0 %v1147
    %1201 = vmatprep.subr.mxu0 %v1150
    %1202 = vmatpush1.msra.mxu0 %v1149
    %1203 = vmatprep.subr.mxu0 %v1152
    %1204 = vmatpush1.msra.mxu0 %v1151
    %1205 = vmatprep.subr.mxu0 0.0
    %1206 = vmatpush1.msra.mxu0 0.0
    %1207 = vmatprep.subr.mxu0 0.0
    %1208 = vmatpush1.msra.mxu0 0.0
    %1209 = vmatprep.subr.mxu0 0.0
    %1210 = vmatpush1.msra.mxu0 0.0
    %1211 = vmatprep.subr.mxu0 0.0
    %1212 = vmatpush1.msra.mxu0 0.0
    %1213 = vmatprep.subr.mxu0 0.0
    %1214 = vmatpush1.msra.mxu0 0.0
    %1215 = vmatprep.subr.mxu0 0.0
    %1216 = vmatpush1.msra.mxu0 0.0
    %1217 = vmatprep.subr.mxu0 0.0
    %1218 = vmatpush1.msra.mxu0 0.0
    %1219 = vmatprep.subr.mxu0 0.0
    %1220 = vmatpush1.msra.mxu0 0.0
    %1221 = vmatprep.subr.mxu0 0.0
    %1222 = vmatpush1.msra.mxu0 0.0
    %1223 = vmatprep.subr.mxu0 0.0
    %1224 = vmatpush1.msra.mxu0 0.0
    %1225 = vmatprep.subr.mxu0 0.0
    %1226 = vmatpush1.msra.mxu0 0.0
    %1227 = vmatprep.subr.mxu0 0.0
    %1228 = vmatpush1.msra.mxu0 0.0
    %1229 = vmatprep.subr.mxu0 0.0
    %1230 = vmatpush1.msra.mxu0 0.0
    %1231 = vmatprep.subr.mxu0 0.0
    %1232 = vmatpush1.msra.mxu0 0.0
    %1233 = vmatprep.subr.mxu0 0.0
    %1234 = vmatpush1.msra.mxu0 0.0
    %1235 = vmatprep.subr.mxu0 0.0
    %1236 = vmatpush1.msra.mxu0 0.0
    %1237 = vmatprep.subr.mxu0 0.0
    %1238 = vmatpush1.msra.mxu0 0.0
    %1239 = vmatprep.subr.mxu0 0.0
    %1240 = vmatpush1.msra.mxu0 0.0
    %1241 = vmatprep.subr.mxu0 0.0
    %1242 = vmatpush1.msra.mxu0 0.0
    %1243 = vmatprep.subr.mxu0 0.0
    %1244 = vmatpush1.msra.mxu0 0.0
    %1245 = vmatprep.subr.mxu0 0.0
    %1246 = vmatpush1.msra.mxu0 0.0
    %1247 = vmatprep.subr.mxu0 0.0
    %1248 = vmatpush1.msra.mxu0 0.0
    %1249 = vmatprep.subr.mxu0 0.0
    %1250 = vmatpush1.msra.mxu0 0.0
    %1251 = vmatprep.subr.mxu0 0.0
    %1252 = vmatpush1.msra.mxu0 0.0
    %1253 = vmatprep.mubr.f32.mxu0 0.0
    %1254 = vmatmul.mubr.f32.gmra.mrb[0].mxu0 %v1166
    %v1255 = vpop.f32.mrb[0].mxu0
    %v1256 = vadd.f32 %v1158, %v1255
    %v1257 = vpop.f32.mrb[0].mxu0
    %v1258 = vadd.f32 %v1162, %v1257
    %1259 = vmatprep.mubr.f32.mxu0 0.0
    %1260 = vmatmul.mubr.f32.gmra.mrb[0].mxu0 %v1169
    %v1261 = vpop.f32.mrb[0].mxu0
    %v1262 = vadd.f32 %v1158, %v1261
    %v1263 = vpop.f32.mrb[0].mxu0
    %v1264 = vadd.f32 %v1162, %v1263
    %1265 = vmatprep.mubr.f32.mxu0 0.0
    %1266 = vmatmul.mubr.f32.gmra.mrb[0].mxu0 %v1172
    %v1267 = vpop.f32.mrb[0].mxu0
    %v1268 = vadd.f32 %v1158, %v1267
    %v1269 = vpop.f32.mrb[0].mxu0
    %v1270 = vadd.f32 %v1162, %v1269
    %1271 = vmatprep.mubr.f32.mxu0 0.0
    %1272 = vmatmul.mubr.f32.gmra.mrb[0].mxu0 %v1175
    %v1273 = vpop.f32.mrb[0].mxu0
    %v1274 = vadd.f32 %v1158, %v1273
    %v1275 = vpop.f32.mrb[0].mxu0
    %v1276 = vadd.f32 %v1162, %v1275
    %1277 = vmatprep.mubr.f32.mxu0 0.0
    %1278 = vmatmul.mubr.f32.gmra.mrb[0].mxu0 %v1178
    %v1279 = vpop.f32.mrb[0].mxu0
    %v1280 = vadd.f32 %v1158, %v1279
    %v1281 = vpop.f32.mrb[0].mxu0
    %v1282 = vadd.f32 %v1162, %v1281
    %1283 = vmatprep.mubr.f32.mxu0 0.0
    %1284 = vmatmul.mubr.f32.gmra.mrb[0].mxu0 %v1181
    %v1285 = vpop.f32.mrb[0].mxu0
    %v1286 = vadd.f32 %v1158, %v1285
    %v1287 = vpop.f32.mrb[0].mxu0
    %v1288 = vadd.f32 %v1162, %v1287
    %1289 = vmatprep.mubr.f32.mxu0 0.0
    %1290 = vmatmul.mubr.f32.gmra.mrb[0].mxu0 %v1184
    %v1291 = vpop.f32.mrb[0].mxu0
    %v1292 = vadd.f32 %v1158, %v1291
    %v1293 = vpop.f32.mrb[0].mxu0
    %v1294 = vadd.f32 %v1162, %v1293
    %1295 = vmatprep.mubr.f32.mxu0 0.0
    %1296 = vmatmul.mubr.f32.gmra.mrb[0].mxu0 %v1187
    %v1297 = vpop.f32.mrb[0].mxu0
    %v1298 = vadd.f32 %v1158, %v1297
    %v1299 = vpop.f32.mrb[0].mxu0
    %v1300 = vadd.f32 %v1162, %v1299
    %1301 = vdwg.mxu0
    %v1302 = vld [vmem:[#allocation6] sm:$0xff]
    %v1303 = vld [vmem:[#allocation6 + $0x8] sm:$0xff]
    %v1304 = vld [vmem:[#allocation6 + $0x10] sm:$0xff]
    %v1305 = vld [vmem:[#allocation6 + $0x18] sm:$0xff]
    %v1306 = vld [vmem:[#allocation6 + $0x20] sm:$0xff]
    %v1307 = vld [vmem:[#allocation6 + $0x28] sm:$0xff]
    %v1308 = vld [vmem:[#allocation6 + $0x30] sm:$0xff]
    %v1309 = vld [vmem:[#allocation6 + $0x38] sm:$0xff]
    %v1310 = vld [vmem:[#allocation6 + $0x40] sm:$0xff]
    %v1311 = vld [vmem:[#allocation6 + $0x48] sm:$0xff]
    %v1312 = vld [vmem:[#allocation6 + $0x50] sm:$0xff]
    %v1313 = vld [vmem:[#allocation6 + $0x58] sm:$0xff]
    %v1314 = vld [vmem:[#allocation6 + $0x60] sm:$0xff]
    %v1315 = vld [vmem:[#allocation6 + $0x68] sm:$0xff]
    %v1316 = vld [vmem:[#allocation6 + $0x70] sm:$0xff]
    %v1317 = vld [vmem:[#allocation6 + $0x78] sm:$0xff]
    %v1318 = vsel %vm117, %v1256, %v1298
    %v1319 = vsel %vm118, %v1258, %v1300
    %v1320 = vsel %vm117, %v1262, %v1292
    %v1321 = vsel %vm118, %v1264, %v1294
    %v1322 = vsel %vm117, %v1268, %v1286
    %v1323 = vsel %vm118, %v1270, %v1288
    %v1324 = vsel %vm117, %v1274, %v1280
    %v1325 = vsel %vm118, %v1276, %v1282
    %v1326 = vsel %vm117, %v1280, %v1274
    %v1327 = vsel %vm118, %v1282, %v1276
    %v1328 = vsel %vm117, %v1286, %v1268
    %v1329 = vsel %vm118, %v1288, %v1270
    %v1330 = vsel %vm117, %v1292, %v1262
    %v1331 = vsel %vm118, %v1294, %v1264
    %v1332 = vsel %vm117, %v1298, %v1256
    %v1333 = vsel %vm118, %v1300, %v1258
    %1334 = vmatprep.subr.mxu0 %v1303
    %1335 = vmatpush1.msra.mxu0 %v1302
    %1336 = vmatprep.subr.mxu0 %v1305
    %1337 = vmatpush1.msra.mxu0 %v1304
    %1338 = vmatprep.subr.mxu0 %v1307
    %1339 = vmatpush1.msra.mxu0 %v1306
    %1340 = vmatprep.subr.mxu0 %v1309
    %1341 = vmatpush1.msra.mxu0 %v1308
    %1342 = vmatprep.subr.mxu0 %v1311
    %1343 = vmatpush1.msra.mxu0 %v1310
    %1344 = vmatprep.subr.mxu0 %v1313
    %1345 = vmatpush1.msra.mxu0 %v1312
    %1346 = vmatprep.subr.mxu0 %v1315
    %1347 = vmatpush1.msra.mxu0 %v1314
    %1348 = vmatprep.subr.mxu0 %v1317
    %1349 = vmatpush1.msra.mxu0 %v1316
    %1350 = vmatprep.subr.mxu0 0.0
    %1351 = vmatpush1.msra.mxu0 0.0
    %1352 = vmatprep.subr.mxu0 0.0
    %1353 = vmatpush1.msra.mxu0 0.0
    %1354 = vmatprep.subr.mxu0 0.0
    %1355 = vmatpush1.msra.mxu0 0.0
    %1356 = vmatprep.subr.mxu0 0.0
    %1357 = vmatpush1.msra.mxu0 0.0
    %1358 = vmatprep.subr.mxu0 0.0
    %1359 = vmatpush1.msra.mxu0 0.0
    %1360 = vmatprep.subr.mxu0 0.0
    %1361 = vmatpush1.msra.mxu0 0.0
    %1362 = vmatprep.subr.mxu0 0.0
    %1363 = vmatpush1.msra.mxu0 0.0
    %1364 = vmatprep.subr.mxu0 0.0
    %1365 = vmatpush1.msra.mxu0 0.0
    %1366 = vmatprep.subr.mxu0 0.0
    %1367 = vmatpush1.msra.mxu0 0.0
    %1368 = vmatprep.subr.mxu0 0.0
    %1369 = vmatpush1.msra.mxu0 0.0
    %1370 = vmatprep.subr.mxu0 0.0
    %1371 = vmatpush1.msra.mxu0 0.0
    %1372 = vmatprep.subr.mxu0 0.0
    %1373 = vmatpush1.msra.mxu0 0.0
    %1374 = vmatprep.subr.mxu0 0.0
    %1375 = vmatpush1.msra.mxu0 0.0
    %1376 = vmatprep.subr.mxu0 0.0
    %1377 = vmatpush1.msra.mxu0 0.0
    %1378 = vmatprep.subr.mxu0 0.0
    %1379 = vmatpush1.msra.mxu0 0.0
    %1380 = vmatprep.subr.mxu0 0.0
    %1381 = vmatpush1.msra.mxu0 0.0
    %1382 = vmatprep.subr.mxu0 0.0
    %1383 = vmatpush1.msra.mxu0 0.0
    %1384 = vmatprep.subr.mxu0 0.0
    %1385 = vmatpush1.msra.mxu0 0.0
    %1386 = vmatprep.subr.mxu0 0.0
    %1387 = vmatpush1.msra.mxu0 0.0
    %1388 = vmatprep.subr.mxu0 0.0
    %1389 = vmatpush1.msra.mxu0 0.0
    %1390 = vmatprep.subr.mxu0 0.0
    %1391 = vmatpush1.msra.mxu0 0.0
    %1392 = vmatprep.subr.mxu0 0.0
    %1393 = vmatpush1.msra.mxu0 0.0
    %1394 = vmatprep.subr.mxu0 0.0
    %1395 = vmatpush1.msra.mxu0 0.0
    %1396 = vmatprep.subr.mxu0 0.0
    %1397 = vmatpush1.msra.mxu0 0.0
    %1398 = vmatprep.mubr.f32.mxu0 0.0
    %1399 = vmatmul.mubr.f32.gmra.mrb[0].mxu0 %v320
    %v1400 = vpop.f32.mrb[0].mxu0
    %v1401 = vadd.f32 0.0, %v1400
    %v1402 = vpop.f32.mrb[0].mxu0
    %v1403 = vadd.f32 0.0, %v1402
    %1404 = vdwg.mxu0
    %v1405 = vadd.f32 %v1318, %v1401
    %v1406 = vadd.f32 %v1319, %v1403
    %v1407 = vxor.u32 %v1405, 2147483648
    %v1408 = vxor.u32 %v1406, 2147483648
    %v1409 = vmul.f32 %v1407, 1.442695
    %v1410 = vpow.pop %v1409
    %v1411 = vmul.f32 %v1408, 1.442695
    %v1412 = vpow.pop %v1411
    %v1413 = vadd.f32 %v1410, 1.0
    %v1414 = vadd.f32 %v1412, 1.0
    %v1415 = vrcp.pop %v1413
    %v1416 = vmul.f32 1.0, %v1415
    %v1417 = vrcp.pop %v1414
    %v1418 = vmul.f32 1.0, %v1417
    %v1419 = vtanh.pop %v1406
    %v1420 = vmul.f32 %v1416, 0.0
    %v1421 = vmul.f32 %v1416, %v1419
    %1423 = vrot.lane.b32.xlu0 %v1421, 64
    %v1424 = vpop.permute.xlu0 %1423
    %v1426 = vadd.f32 %v1420, %v1424
    %v1427 = vtanh.pop %v1426
    %v1428 = vmul.f32 %v1418, %v1427
    %1430 = vrot.lane.b32.xlu0 %v1428, 64
    %v1431 = vpop.permute.xlu0 %1430
    %v1432 = vsel %vm318, %v1431, 0
    %1434 = vmatprep.subr.mxu0 %v1303
    %1435 = vmatpush1.msra.mxu0 %v1302
    %1436 = vmatprep.subr.mxu0 %v1305
    %1437 = vmatpush1.msra.mxu0 %v1304
    %1438 = vmatprep.subr.mxu0 %v1307
    %1439 = vmatpush1.msra.mxu0 %v1306
    %1440 = vmatprep.subr.mxu0 %v1309
    %1441 = vmatpush1.msra.mxu0 %v1308
    %1442 = vmatprep.subr.mxu0 %v1311
    %1443 = vmatpush1.msra.mxu0 %v1310
    %1444 = vmatprep.subr.mxu0 %v1313
    %1445 = vmatpush1.msra.mxu0 %v1312
    %1446 = vmatprep.subr.mxu0 %v1315
    %1447 = vmatpush1.msra.mxu0 %v1314
    %1448 = vmatprep.subr.mxu0 %v1317
    %1449 = vmatpush1.msra.mxu0 %v1316
    %1450 = vmatprep.subr.mxu0 0.0
    %1451 = vmatpush1.msra.mxu0 0.0
    %1452 = vmatprep.subr.mxu0 0.0
    %1453 = vmatpush1.msra.mxu0 0.0
    %1454 = vmatprep.subr.mxu0 0.0
    %1455 = vmatpush1.msra.mxu0 0.0
    %1456 = vmatprep.subr.mxu0 0.0
    %1457 = vmatpush1.msra.mxu0 0.0
    %1458 = vmatprep.subr.mxu0 0.0
    %1459 = vmatpush1.msra.mxu0 0.0
    %1460 = vmatprep.subr.mxu0 0.0
    %1461 = vmatpush1.msra.mxu0 0.0
    %1462 = vmatprep.subr.mxu0 0.0
    %1463 = vmatpush1.msra.mxu0 0.0
    %1464 = vmatprep.subr.mxu0 0.0
    %1465 = vmatpush1.msra.mxu0 0.0
    %1466 = vmatprep.subr.mxu0 0.0
    %1467 = vmatpush1.msra.mxu0 0.0
    %1468 = vmatprep.subr.mxu0 0.0
    %1469 = vmatpush1.msra.mxu0 0.0
    %1470 = vmatprep.subr.mxu0 0.0
    %1471 = vmatpush1.msra.mxu0 0.0
    %1472 = vmatprep.subr.mxu0 0.0
    %1473 = vmatpush1.msra.mxu0 0.0
    %1474 = vmatprep.subr.mxu0 0.0
    %1475 = vmatpush1.msra.mxu0 0.0
    %1476 = vmatprep.subr.mxu0 0.0
    %1477 = vmatpush1.msra.mxu0 0.0
    %1478 = vmatprep.subr.mxu0 0.0
    %1479 = vmatpush1.msra.mxu0 0.0
    %1480 = vmatprep.subr.mxu0 0.0
    %1481 = vmatpush1.msra.mxu0 0.0
    %1482 = vmatprep.subr.mxu0 0.0
    %1483 = vmatpush1.msra.mxu0 0.0
    %1484 = vmatprep.subr.mxu0 0.0
    %1485 = vmatpush1.msra.mxu0 0.0
    %1486 = vmatprep.subr.mxu0 0.0
    %1487 = vmatpush1.msra.mxu0 0.0
    %1488 = vmatprep.subr.mxu0 0.0
    %1489 = vmatpush1.msra.mxu0 0.0
    %1490 = vmatprep.subr.mxu0 0.0
    %1491 = vmatpush1.msra.mxu0 0.0
    %1492 = vmatprep.subr.mxu0 0.0
    %1493 = vmatpush1.msra.mxu0 0.0
    %1494 = vmatprep.subr.mxu0 0.0
    %1495 = vmatpush1.msra.mxu0 0.0
    %1496 = vmatprep.subr.mxu0 0.0
    %1497 = vmatpush1.msra.mxu0 0.0
    %1498 = vmatprep.mubr.f32.mxu0 0.0
    %1499 = vmatmul.mubr.f32.gmra.mrb[0].mxu0 %v1432
    %v1500 = vpop.f32.mrb[0].mxu0
    %v1501 = vadd.f32 0.0, %v1500
    %v1502 = vpop.f32.mrb[0].mxu0
    %v1503 = vadd.f32 0.0, %v1502
    %1504 = vdwg.mxu0
    %v1505 = vadd.f32 %v1320, %v1501
    %v1506 = vadd.f32 %v1321, %v1503
    %v1507 = vxor.u32 %v1505, 2147483648
    %v1508 = vxor.u32 %v1506, 2147483648
    %v1509 = vmul.f32 %v1507, 1.442695
    %v1510 = vpow.pop %v1509
    %v1511 = vmul.f32 %v1508, 1.442695
    %v1512 = vpow.pop %v1511
    %v1513 = vadd.f32 %v1510, 1.0
    %v1514 = vadd.f32 %v1512, 1.0
    %v1515 = vrcp.pop %v1513
    %v1516 = vmul.f32 1.0, %v1515
    %v1517 = vrcp.pop %v1514
    %v1518 = vmul.f32 1.0, %v1517
    %v1519 = vtanh.pop %v1506
    %v1520 = vmul.f32 %v1516, %v1426
    %v1521 = vmul.f32 %v1516, %v1519
    %1523 = vrot.lane.b32.xlu0 %v1521, 64
    %v1524 = vpop.permute.xlu0 %1523
    %v1526 = vadd.f32 %v1520, %v1524
    %v1527 = vtanh.pop %v1526
    %v1528 = vmul.f32 %v1518, %v1527
    %1530 = vrot.lane.b32.xlu0 %v1528, 64
    %v1531 = vpop.permute.xlu0 %1530
    %v1532 = vsel %vm318, %v1531, 0
    %1534 = vmatprep.subr.mxu0 %v1303
    %1535 = vmatpush1.msra.mxu0 %v1302
    %1536 = vmatprep.subr.mxu0 %v1305
    %1537 = vmatpush1.msra.mxu0 %v1304
    %1538 = vmatprep.subr.mxu0 %v1307
    %1539 = vmatpush1.msra.mxu0 %v1306
    %1540 = vmatprep.subr.mxu0 %v1309
    %1541 = vmatpush1.msra.mxu0 %v1308
    %1542 = vmatprep.subr.mxu0 %v1311
    %1543 = vmatpush1.msra.mxu0 %v1310
    %1544 = vmatprep.subr.mxu0 %v1313
    %1545 = vmatpush1.msra.mxu0 %v1312
    %1546 = vmatprep.subr.mxu0 %v1315
    %1547 = vmatpush1.msra.mxu0 %v1314
    %1548 = vmatprep.subr.mxu0 %v1317
    %1549 = vmatpush1.msra.mxu0 %v1316
    %1550 = vmatprep.subr.mxu0 0.0
    %1551 = vmatpush1.msra.mxu0 0.0
    %1552 = vmatprep.subr.mxu0 0.0
    %1553 = vmatpush1.msra.mxu0 0.0
    %1554 = vmatprep.subr.mxu0 0.0
    %1555 = vmatpush1.msra.mxu0 0.0
    %1556 = vmatprep.subr.mxu0 0.0
    %1557 = vmatpush1.msra.mxu0 0.0
    %1558 = vmatprep.subr.mxu0 0.0
    %1559 = vmatpush1.msra.mxu0 0.0
    %1560 = vmatprep.subr.mxu0 0.0
    %1561 = vmatpush1.msra.mxu0 0.0
    %1562 = vmatprep.subr.mxu0 0.0
    %1563 = vmatpush1.msra.mxu0 0.0
    %1564 = vmatprep.subr.mxu0 0.0
    %1565 = vmatpush1.msra.mxu0 0.0
    %1566 = vmatprep.subr.mxu0 0.0
    %1567 = vmatpush1.msra.mxu0 0.0
    %1568 = vmatprep.subr.mxu0 0.0
    %1569 = vmatpush1.msra.mxu0 0.0
    %1570 = vmatprep.subr.mxu0 0.0
    %1571 = vmatpush1.msra.mxu0 0.0
    %1572 = vmatprep.subr.mxu0 0.0
    %1573 = vmatpush1.msra.mxu0 0.0
    %1574 = vmatprep.subr.mxu0 0.0
    %1575 = vmatpush1.msra.mxu0 0.0
    %1576 = vmatprep.subr.mxu0 0.0
    %1577 = vmatpush1.msra.mxu0 0.0
    %1578 = vmatprep.subr.mxu0 0.0
    %1579 = vmatpush1.msra.mxu0 0.0
    %1580 = vmatprep.subr.mxu0 0.0
    %1581 = vmatpush1.msra.mxu0 0.0
    %1582 = vmatprep.subr.mxu0 0.0
    %1583 = vmatpush1.msra.mxu0 0.0
    %1584 = vmatprep.subr.mxu0 0.0
    %1585 = vmatpush1.msra.mxu0 0.0
    %1586 = vmatprep.subr.mxu0 0.0
    %1587 = vmatpush1.msra.mxu0 0.0
    %1588 = vmatprep.subr.mxu0 0.0
    %1589 = vmatpush1.msra.mxu0 0.0
    %1590 = vmatprep.subr.mxu0 0.0
    %1591 = vmatpush1.msra.mxu0 0.0
    %1592 = vmatprep.subr.mxu0 0.0
    %1593 = vmatpush1.msra.mxu0 0.0
    %1594 = vmatprep.subr.mxu0 0.0
    %1595 = vmatpush1.msra.mxu0 0.0
    %1596 = vmatprep.subr.mxu0 0.0
    %1597 = vmatpush1.msra.mxu0 0.0
    %1598 = vmatprep.mubr.f32.mxu0 0.0
    %1599 = vmatmul.mubr.f32.gmra.mrb[0].mxu0 %v1532
    %v1600 = vpop.f32.mrb[0].mxu0
    %v1601 = vadd.f32 0.0, %v1600
    %v1602 = vpop.f32.mrb[0].mxu0
    %v1603 = vadd.f32 0.0, %v1602
    %1604 = vdwg.mxu0
    %v1605 = vadd.f32 %v1322, %v1601
    %v1606 = vadd.f32 %v1323, %v1603
    %v1607 = vxor.u32 %v1605, 2147483648
    %v1608 = vxor.u32 %v1606, 2147483648
    %v1609 = vmul.f32 %v1607, 1.442695
    %v1610 = vpow.pop %v1609
    %v1611 = vmul.f32 %v1608, 1.442695
    %v1612 = vpow.pop %v1611
    %v1613 = vadd.f32 %v1610, 1.0
    %v1614 = vadd.f32 %v1612, 1.0
    %v1615 = vrcp.pop %v1613
    %v1616 = vmul.f32 1.0, %v1615
    %v1617 = vrcp.pop %v1614
    %v1618 = vmul.f32 1.0, %v1617
    %v1619 = vtanh.pop %v1606
    %v1620 = vmul.f32 %v1616, %v1526
    %v1621 = vmul.f32 %v1616, %v1619
    %1623 = vrot.lane.b32.xlu0 %v1621, 64
    %v1624 = vpop.permute.xlu0 %1623
    %v1626 = vadd.f32 %v1620, %v1624
    %v1627 = vtanh.pop %v1626
    %v1628 = vmul.f32 %v1618, %v1627
    %1630 = vrot.lane.b32.xlu0 %v1628, 64
    %v1631 = vpop.permute.xlu0 %1630
    %v1632 = vsel %vm318, %v1631, 0
    %1634 = vmatprep.subr.mxu0 %v1303
    %1635 = vmatpush1.msra.mxu0 %v1302
    %1636 = vmatprep.subr.mxu0 %v1305
    %1637 = vmatpush1.msra.mxu0 %v1304
    %1638 = vmatprep.subr.mxu0 %v1307
    %1639 = vmatpush1.msra.mxu0 %v1306
    %1640 = vmatprep.subr.mxu0 %v1309
    %1641 = vmatpush1.msra.mxu0 %v1308
    %1642 = vmatprep.subr.mxu0 %v1311
    %1643 = vmatpush1.msra.mxu0 %v1310
    %1644 = vmatprep.subr.mxu0 %v1313
    %1645 = vmatpush1.msra.mxu0 %v1312
    %1646 = vmatprep.subr.mxu0 %v1315
    %1647 = vmatpush1.msra.mxu0 %v1314
    %1648 = vmatprep.subr.mxu0 %v1317
    %1649 = vmatpush1.msra.mxu0 %v1316
    %1650 = vmatprep.subr.mxu0 0.0
    %1651 = vmatpush1.msra.mxu0 0.0
    %1652 = vmatprep.subr.mxu0 0.0
    %1653 = vmatpush1.msra.mxu0 0.0
    %1654 = vmatprep.subr.mxu0 0.0
    %1655 = vmatpush1.msra.mxu0 0.0
    %1656 = vmatprep.subr.mxu0 0.0
    %1657 = vmatpush1.msra.mxu0 0.0
    %1658 = vmatprep.subr.mxu0 0.0
    %1659 = vmatpush1.msra.mxu0 0.0
    %1660 = vmatprep.subr.mxu0 0.0
    %1661 = vmatpush1.msra.mxu0 0.0
    %1662 = vmatprep.subr.mxu0 0.0
    %1663 = vmatpush1.msra.mxu0 0.0
    %1664 = vmatprep.subr.mxu0 0.0
    %1665 = vmatpush1.msra.mxu0 0.0
    %1666 = vmatprep.subr.mxu0 0.0
    %1667 = vmatpush1.msra.mxu0 0.0
    %1668 = vmatprep.subr.mxu0 0.0
    %1669 = vmatpush1.msra.mxu0 0.0
    %1670 = vmatprep.subr.mxu0 0.0
    %1671 = vmatpush1.msra.mxu0 0.0
    %1672 = vmatprep.subr.mxu0 0.0
    %1673 = vmatpush1.msra.mxu0 0.0
    %1674 = vmatprep.subr.mxu0 0.0
    %1675 = vmatpush1.msra.mxu0 0.0
    %1676 = vmatprep.subr.mxu0 0.0
    %1677 = vmatpush1.msra.mxu0 0.0
    %1678 = vmatprep.subr.mxu0 0.0
    %1679 = vmatpush1.msra.mxu0 0.0
    %1680 = vmatprep.subr.mxu0 0.0
    %1681 = vmatpush1.msra.mxu0 0.0
    %1682 = vmatprep.subr.mxu0 0.0
    %1683 = vmatpush1.msra.mxu0 0.0
    %1684 = vmatprep.subr.mxu0 0.0
    %1685 = vmatpush1.msra.mxu0 0.0
    %1686 = vmatprep.subr.mxu0 0.0
    %1687 = vmatpush1.msra.mxu0 0.0
    %1688 = vmatprep.subr.mxu0 0.0
    %1689 = vmatpush1.msra.mxu0 0.0
    %1690 = vmatprep.subr.mxu0 0.0
    %1691 = vmatpush1.msra.mxu0 0.0
    %1692 = vmatprep.subr.mxu0 0.0
    %1693 = vmatpush1.msra.mxu0 0.0
    %1694 = vmatprep.subr.mxu0 0.0
    %1695 = vmatpush1.msra.mxu0 0.0
    %1696 = vmatprep.subr.mxu0 0.0
    %1697 = vmatpush1.msra.mxu0 0.0
    %1698 = vmatprep.mubr.f32.mxu0 0.0
    %1699 = vmatmul.mubr.f32.gmra.mrb[0].mxu0 %v1632
    %v1700 = vpop.f32.mrb[0].mxu0
    %v1701 = vadd.f32 0.0, %v1700
    %v1702 = vpop.f32.mrb[0].mxu0
    %v1703 = vadd.f32 0.0, %v1702
    %1704 = vdwg.mxu0
    %v1705 = vadd.f32 %v1324, %v1701
    %v1706 = vadd.f32 %v1325, %v1703
    %v1707 = vxor.u32 %v1705, 2147483648
    %v1708 = vxor.u32 %v1706, 2147483648
    %v1709 = vmul.f32 %v1707, 1.442695
    %v1710 = vpow.pop %v1709
    %v1711 = vmul.f32 %v1708, 1.442695
    %v1712 = vpow.pop %v1711
    %v1713 = vadd.f32 %v1710, 1.0
    %v1714 = vadd.f32 %v1712, 1.0
    %v1715 = vrcp.pop %v1713
    %v1716 = vmul.f32 1.0, %v1715
    %v1717 = vrcp.pop %v1714
    %v1718 = vmul.f32 1.0, %v1717
    %v1719 = vtanh.pop %v1706
    %v1720 = vmul.f32 %v1716, %v1626
    %v1721 = vmul.f32 %v1716, %v1719
    %1723 = vrot.lane.b32.xlu0 %v1721, 64
    %v1724 = vpop.permute.xlu0 %1723
    %v1726 = vadd.f32 %v1720, %v1724
    %v1727 = vtanh.pop %v1726
    %v1728 = vmul.f32 %v1718, %v1727
    %1730 = vrot.lane.b32.xlu0 %v1728, 64
    %v1731 = vpop.permute.xlu0 %1730
    %v1732 = vsel %vm318, %v1731, 0
    %1734 = vmatprep.subr.mxu0 %v1303
    %1735 = vmatpush1.msra.mxu0 %v1302
    %1736 = vmatprep.subr.mxu0 %v1305
    %1737 = vmatpush1.msra.mxu0 %v1304
    %1738 = vmatprep.subr.mxu0 %v1307
    %1739 = vmatpush1.msra.mxu0 %v1306
    %1740 = vmatprep.subr.mxu0 %v1309
    %1741 = vmatpush1.msra.mxu0 %v1308
    %1742 = vmatprep.subr.mxu0 %v1311
    %1743 = vmatpush1.msra.mxu0 %v1310
    %1744 = vmatprep.subr.mxu0 %v1313
    %1745 = vmatpush1.msra.mxu0 %v1312
    %1746 = vmatprep.subr.mxu0 %v1315
    %1747 = vmatpush1.msra.mxu0 %v1314
    %1748 = vmatprep.subr.mxu0 %v1317
    %1749 = vmatpush1.msra.mxu0 %v1316
    %1750 = vmatprep.subr.mxu0 0.0
    %1751 = vmatpush1.msra.mxu0 0.0
    %1752 = vmatprep.subr.mxu0 0.0
    %1753 = vmatpush1.msra.mxu0 0.0
    %1754 = vmatprep.subr.mxu0 0.0
    %1755 = vmatpush1.msra.mxu0 0.0
    %1756 = vmatprep.subr.mxu0 0.0
    %1757 = vmatpush1.msra.mxu0 0.0
    %1758 = vmatprep.subr.mxu0 0.0
    %1759 = vmatpush1.msra.mxu0 0.0
    %1760 = vmatprep.subr.mxu0 0.0
    %1761 = vmatpush1.msra.mxu0 0.0
    %1762 = vmatprep.subr.mxu0 0.0
    %1763 = vmatpush1.msra.mxu0 0.0
    %1764 = vmatprep.subr.mxu0 0.0
    %1765 = vmatpush1.msra.mxu0 0.0
    %1766 = vmatprep.subr.mxu0 0.0
    %1767 = vmatpush1.msra.mxu0 0.0
    %1768 = vmatprep.subr.mxu0 0.0
    %1769 = vmatpush1.msra.mxu0 0.0
    %1770 = vmatprep.subr.mxu0 0.0
    %1771 = vmatpush1.msra.mxu0 0.0
    %1772 = vmatprep.subr.mxu0 0.0
    %1773 = vmatpush1.msra.mxu0 0.0
    %1774 = vmatprep.subr.mxu0 0.0
    %1775 = vmatpush1.msra.mxu0 0.0
    %1776 = vmatprep.subr.mxu0 0.0
    %1777 = vmatpush1.msra.mxu0 0.0
    %1778 = vmatprep.subr.mxu0 0.0
    %1779 = vmatpush1.msra.mxu0 0.0
    %1780 = vmatprep.subr.mxu0 0.0
    %1781 = vmatpush1.msra.mxu0 0.0
    %1782 = vmatprep.subr.mxu0 0.0
    %1783 = vmatpush1.msra.mxu0 0.0
    %1784 = vmatprep.subr.mxu0 0.0
    %1785 = vmatpush1.msra.mxu0 0.0
    %1786 = vmatprep.subr.mxu0 0.0
    %1787 = vmatpush1.msra.mxu0 0.0
    %1788 = vmatprep.subr.mxu0 0.0
    %1789 = vmatpush1.msra.mxu0 0.0
    %1790 = vmatprep.subr.mxu0 0.0
    %1791 = vmatpush1.msra.mxu0 0.0
    %1792 = vmatprep.subr.mxu0 0.0
    %1793 = vmatpush1.msra.mxu0 0.0
    %1794 = vmatprep.subr.mxu0 0.0
    %1795 = vmatpush1.msra.mxu0 0.0
    %1796 = vmatprep.subr.mxu0 0.0
    %1797 = vmatpush1.msra.mxu0 0.0
    %1798 = vmatprep.mubr.f32.mxu0 0.0
    %1799 = vmatmul.mubr.f32.gmra.mrb[0].mxu0 %v1732
    %v1800 = vpop.f32.mrb[0].mxu0
    %v1801 = vadd.f32 0.0, %v1800
    %v1802 = vpop.f32.mrb[0].mxu0
    %v1803 = vadd.f32 0.0, %v1802
    %1804 = vdwg.mxu0
    %v1805 = vadd.f32 %v1326, %v1801
    %v1806 = vadd.f32 %v1327, %v1803
    %v1807 = vxor.u32 %v1805, 2147483648
    %v1808 = vxor.u32 %v1806, 2147483648
    %v1809 = vmul.f32 %v1807, 1.442695
    %v1810 = vpow.pop %v1809
    %v1811 = vmul.f32 %v1808, 1.442695
    %v1812 = vpow.pop %v1811
    %v1813 = vadd.f32 %v1810, 1.0
    %v1814 = vadd.f32 %v1812, 1.0
    %v1815 = vrcp.pop %v1813
    %v1816 = vmul.f32 1.0, %v1815
    %v1817 = vrcp.pop %v1814
    %v1818 = vmul.f32 1.0, %v1817
    %v1819 = vtanh.pop %v1806
    %v1820 = vmul.f32 %v1816, %v1726
    %v1821 = vmul.f32 %v1816, %v1819
    %1823 = vrot.lane.b32.xlu0 %v1821, 64
    %v1824 = vpop.permute.xlu0 %1823
    %v1826 = vadd.f32 %v1820, %v1824
    %v1827 = vtanh.pop %v1826
    %v1828 = vmul.f32 %v1818, %v1827
    %1830 = vrot.lane.b32.xlu0 %v1828, 64
    %v1831 = vpop.permute.xlu0 %1830
    %v1832 = vsel %vm318, %v1831, 0
    %1834 = vmatprep.subr.mxu0 %v1303
    %1835 = vmatpush1.msra.mxu0 %v1302
    %1836 = vmatprep.subr.mxu0 %v1305
    %1837 = vmatpush1.msra.mxu0 %v1304
    %1838 = vmatprep.subr.mxu0 %v1307
    %1839 = vmatpush1.msra.mxu0 %v1306
    %1840 = vmatprep.subr.mxu0 %v1309
    %1841 = vmatpush1.msra.mxu0 %v1308
    %1842 = vmatprep.subr.mxu0 %v1311
    %1843 = vmatpush1.msra.mxu0 %v1310
    %1844 = vmatprep.subr.mxu0 %v1313
    %1845 = vmatpush1.msra.mxu0 %v1312
    %1846 = vmatprep.subr.mxu0 %v1315
    %1847 = vmatpush1.msra.mxu0 %v1314
    %1848 = vmatprep.subr.mxu0 %v1317
    %1849 = vmatpush1.msra.mxu0 %v1316
    %1850 = vmatprep.subr.mxu0 0.0
    %1851 = vmatpush1.msra.mxu0 0.0
    %1852 = vmatprep.subr.mxu0 0.0
    %1853 = vmatpush1.msra.mxu0 0.0
    %1854 = vmatprep.subr.mxu0 0.0
    %1855 = vmatpush1.msra.mxu0 0.0
    %1856 = vmatprep.subr.mxu0 0.0
    %1857 = vmatpush1.msra.mxu0 0.0
    %1858 = vmatprep.subr.mxu0 0.0
    %1859 = vmatpush1.msra.mxu0 0.0
    %1860 = vmatprep.subr.mxu0 0.0
    %1861 = vmatpush1.msra.mxu0 0.0
    %1862 = vmatprep.subr.mxu0 0.0
    %1863 = vmatpush1.msra.mxu0 0.0
    %1864 = vmatprep.subr.mxu0 0.0
    %1865 = vmatpush1.msra.mxu0 0.0
    %1866 = vmatprep.subr.mxu0 0.0
    %1867 = vmatpush1.msra.mxu0 0.0
    %1868 = vmatprep.subr.mxu0 0.0
    %1869 = vmatpush1.msra.mxu0 0.0
    %1870 = vmatprep.subr.mxu0 0.0
    %1871 = vmatpush1.msra.mxu0 0.0
    %1872 = vmatprep.subr.mxu0 0.0
    %1873 = vmatpush1.msra.mxu0 0.0
    %1874 = vmatprep.subr.mxu0 0.0
    %1875 = vmatpush1.msra.mxu0 0.0
    %1876 = vmatprep.subr.mxu0 0.0
    %1877 = vmatpush1.msra.mxu0 0.0
    %1878 = vmatprep.subr.mxu0 0.0
    %1879 = vmatpush1.msra.mxu0 0.0
    %1880 = vmatprep.subr.mxu0 0.0
    %1881 = vmatpush1.msra.mxu0 0.0
    %1882 = vmatprep.subr.mxu0 0.0
    %1883 = vmatpush1.msra.mxu0 0.0
    %1884 = vmatprep.subr.mxu0 0.0
    %1885 = vmatpush1.msra.mxu0 0.0
    %1886 = vmatprep.subr.mxu0 0.0
    %1887 = vmatpush1.msra.mxu0 0.0
    %1888 = vmatprep.subr.mxu0 0.0
    %1889 = vmatpush1.msra.mxu0 0.0
    %1890 = vmatprep.subr.mxu0 0.0
    %1891 = vmatpush1.msra.mxu0 0.0
    %1892 = vmatprep.subr.mxu0 0.0
    %1893 = vmatpush1.msra.mxu0 0.0
    %1894 = vmatprep.subr.mxu0 0.0
    %1895 = vmatpush1.msra.mxu0 0.0
    %1896 = vmatprep.subr.mxu0 0.0
    %1897 = vmatpush1.msra.mxu0 0.0
    %1898 = vmatprep.mubr.f32.mxu0 0.0
    %1899 = vmatmul.mubr.f32.gmra.mrb[0].mxu0 %v1832
    %v1900 = vpop.f32.mrb[0].mxu0
    %v1901 = vadd.f32 0.0, %v1900
    %v1902 = vpop.f32.mrb[0].mxu0
    %v1903 = vadd.f32 0.0, %v1902
    %1904 = vdwg.mxu0
    %v1905 = vadd.f32 %v1328, %v1901
    %v1906 = vadd.f32 %v1329, %v1903
    %v1907 = vxor.u32 %v1905, 2147483648
    %v1908 = vxor.u32 %v1906, 2147483648
    %v1909 = vmul.f32 %v1907, 1.442695
    %v1910 = vpow.pop %v1909
    %v1911 = vmul.f32 %v1908, 1.442695
    %v1912 = vpow.pop %v1911
    %v1913 = vadd.f32 %v1910, 1.0
    %v1914 = vadd.f32 %v1912, 1.0
    %v1915 = vrcp.pop %v1913
    %v1916 = vmul.f32 1.0, %v1915
    %v1917 = vrcp.pop %v1914
    %v1918 = vmul.f32 1.0, %v1917
    %v1919 = vtanh.pop %v1906
    %v1920 = vmul.f32 %v1916, %v1826
    %v1921 = vmul.f32 %v1916, %v1919
    %1923 = vrot.lane.b32.xlu0 %v1921, 64
    %v1924 = vpop.permute.xlu0 %1923
    %v1926 = vadd.f32 %v1920, %v1924
    %v1927 = vtanh.pop %v1926
    %v1928 = vmul.f32 %v1918, %v1927
    %1930 = vrot.lane.b32.xlu0 %v1928, 64
    %v1931 = vpop.permute.xlu0 %1930
    %v1932 = vsel %vm318, %v1931, 0
    %1934 = vmatprep.subr.mxu0 %v1303
    %1935 = vmatpush1.msra.mxu0 %v1302
    %1936 = vmatprep.subr.mxu0 %v1305
    %1937 = vmatpush1.msra.mxu0 %v1304
    %1938 = vmatprep.subr.mxu0 %v1307
    %1939 = vmatpush1.msra.mxu0 %v1306
    %1940 = vmatprep.subr.mxu0 %v1309
    %1941 = vmatpush1.msra.mxu0 %v1308
    %1942 = vmatprep.subr.mxu0 %v1311
    %1943 = vmatpush1.msra.mxu0 %v1310
    %1944 = vmatprep.subr.mxu0 %v1313
    %1945 = vmatpush1.msra.mxu0 %v1312
    %1946 = vmatprep.subr.mxu0 %v1315
    %1947 = vmatpush1.msra.mxu0 %v1314
    %1948 = vmatprep.subr.mxu0 %v1317
    %1949 = vmatpush1.msra.mxu0 %v1316
    %1950 = vmatprep.subr.mxu0 0.0
    %1951 = vmatpush1.msra.mxu0 0.0
    %1952 = vmatprep.subr.mxu0 0.0
    %1953 = vmatpush1.msra.mxu0 0.0
    %1954 = vmatprep.subr.mxu0 0.0
    %1955 = vmatpush1.msra.mxu0 0.0
    %1956 = vmatprep.subr.mxu0 0.0
    %1957 = vmatpush1.msra.mxu0 0.0
    %1958 = vmatprep.subr.mxu0 0.0
    %1959 = vmatpush1.msra.mxu0 0.0
    %1960 = vmatprep.subr.mxu0 0.0
    %1961 = vmatpush1.msra.mxu0 0.0
    %1962 = vmatprep.subr.mxu0 0.0
    %1963 = vmatpush1.msra.mxu0 0.0
    %1964 = vmatprep.subr.mxu0 0.0
    %1965 = vmatpush1.msra.mxu0 0.0
    %1966 = vmatprep.subr.mxu0 0.0
    %1967 = vmatpush1.msra.mxu0 0.0
    %1968 = vmatprep.subr.mxu0 0.0
    %1969 = vmatpush1.msra.mxu0 0.0
    %1970 = vmatprep.subr.mxu0 0.0
    %1971 = vmatpush1.msra.mxu0 0.0
    %1972 = vmatprep.subr.mxu0 0.0
    %1973 = vmatpush1.msra.mxu0 0.0
    %1974 = vmatprep.subr.mxu0 0.0
    %1975 = vmatpush1.msra.mxu0 0.0
    %1976 = vmatprep.subr.mxu0 0.0
    %1977 = vmatpush1.msra.mxu0 0.0
    %1978 = vmatprep.subr.mxu0 0.0
    %1979 = vmatpush1.msra.mxu0 0.0
    %1980 = vmatprep.subr.mxu0 0.0
    %1981 = vmatpush1.msra.mxu0 0.0
    %1982 = vmatprep.subr.mxu0 0.0
    %1983 = vmatpush1.msra.mxu0 0.0
    %1984 = vmatprep.subr.mxu0 0.0
    %1985 = vmatpush1.msra.mxu0 0.0
    %1986 = vmatprep.subr.mxu0 0.0
    %1987 = vmatpush1.msra.mxu0 0.0
    %1988 = vmatprep.subr.mxu0 0.0
    %1989 = vmatpush1.msra.mxu0 0.0
    %1990 = vmatprep.subr.mxu0 0.0
    %1991 = vmatpush1.msra.mxu0 0.0
    %1992 = vmatprep.subr.mxu0 0.0
    %1993 = vmatpush1.msra.mxu0 0.0
    %1994 = vmatprep.subr.mxu0 0.0
    %1995 = vmatpush1.msra.mxu0 0.0
    %1996 = vmatprep.subr.mxu0 0.0
    %1997 = vmatpush1.msra.mxu0 0.0
    %1998 = vmatprep.mubr.f32.mxu0 0.0
    %1999 = vmatmul.mubr.f32.gmra.mrb[0].mxu0 %v1932
    %v2000 = vpop.f32.mrb[0].mxu0
    %v2001 = vadd.f32 0.0, %v2000
    %v2002 = vpop.f32.mrb[0].mxu0
    %v2003 = vadd.f32 0.0, %v2002
    %2004 = vdwg.mxu0
    %v2005 = vadd.f32 %v1330, %v2001
    %v2006 = vadd.f32 %v1331, %v2003
    %v2007 = vxor.u32 %v2005, 2147483648
    %v2008 = vxor.u32 %v2006, 2147483648
    %v2009 = vmul.f32 %v2007, 1.442695
    %v2010 = vpow.pop %v2009
    %v2011 = vmul.f32 %v2008, 1.442695
    %v2012 = vpow.pop %v2011
    %v2013 = vadd.f32 %v2010, 1.0
    %v2014 = vadd.f32 %v2012, 1.0
    %v2015 = vrcp.pop %v2013
    %v2016 = vmul.f32 1.0, %v2015
    %v2017 = vrcp.pop %v2014
    %v2018 = vmul.f32 1.0, %v2017
    %v2019 = vtanh.pop %v2006
    %v2020 = vmul.f32 %v2016, %v1926
    %v2021 = vmul.f32 %v2016, %v2019
    %2023 = vrot.lane.b32.xlu0 %v2021, 64
    %v2024 = vpop.permute.xlu0 %2023
    %v2026 = vadd.f32 %v2020, %v2024
    %v2027 = vtanh.pop %v2026
    %v2028 = vmul.f32 %v2018, %v2027
    %2030 = vrot.lane.b32.xlu0 %v2028, 64
    %v2031 = vpop.permute.xlu0 %2030
    %v2032 = vsel %vm318, %v2031, 0
    %2034 = vmatprep.subr.mxu0 %v1303
    %2035 = vmatpush1.msra.mxu0 %v1302
    %2036 = vmatprep.subr.mxu0 %v1305
    %2037 = vmatpush1.msra.mxu0 %v1304
    %2038 = vmatprep.subr.mxu0 %v1307
    %2039 = vmatpush1.msra.mxu0 %v1306
    %2040 = vmatprep.subr.mxu0 %v1309
    %2041 = vmatpush1.msra.mxu0 %v1308
    %2042 = vmatprep.subr.mxu0 %v1311
    %2043 = vmatpush1.msra.mxu0 %v1310
    %2044 = vmatprep.subr.mxu0 %v1313
    %2045 = vmatpush1.msra.mxu0 %v1312
    %2046 = vmatprep.subr.mxu0 %v1315
    %2047 = vmatpush1.msra.mxu0 %v1314
    %2048 = vmatprep.subr.mxu0 %v1317
    %2049 = vmatpush1.msra.mxu0 %v1316
    %2050 = vmatprep.subr.mxu0 0.0
    %2051 = vmatpush1.msra.mxu0 0.0
    %2052 = vmatprep.subr.mxu0 0.0
    %2053 = vmatpush1.msra.mxu0 0.0
    %2054 = vmatprep.subr.mxu0 0.0
    %2055 = vmatpush1.msra.mxu0 0.0
    %2056 = vmatprep.subr.mxu0 0.0
    %2057 = vmatpush1.msra.mxu0 0.0
    %2058 = vmatprep.subr.mxu0 0.0
    %2059 = vmatpush1.msra.mxu0 0.0
    %2060 = vmatprep.subr.mxu0 0.0
    %2061 = vmatpush1.msra.mxu0 0.0
    %2062 = vmatprep.subr.mxu0 0.0
    %2063 = vmatpush1.msra.mxu0 0.0
    %2064 = vmatprep.subr.mxu0 0.0
    %2065 = vmatpush1.msra.mxu0 0.0
    %2066 = vmatprep.subr.mxu0 0.0
    %2067 = vmatpush1.msra.mxu0 0.0
    %2068 = vmatprep.subr.mxu0 0.0
    %2069 = vmatpush1.msra.mxu0 0.0
    %2070 = vmatprep.subr.mxu0 0.0
    %2071 = vmatpush1.msra.mxu0 0.0
    %2072 = vmatprep.subr.mxu0 0.0
    %2073 = vmatpush1.msra.mxu0 0.0
    %2074 = vmatprep.subr.mxu0 0.0
    %2075 = vmatpush1.msra.mxu0 0.0
    %2076 = vmatprep.subr.mxu0 0.0
    %2077 = vmatpush1.msra.mxu0 0.0
    %2078 = vmatprep.subr.mxu0 0.0
    %2079 = vmatpush1.msra.mxu0 0.0
    %2080 = vmatprep.subr.mxu0 0.0
    %2081 = vmatpush1.msra.mxu0 0.0
    %2082 = vmatprep.subr.mxu0 0.0
    %2083 = vmatpush1.msra.mxu0 0.0
    %2084 = vmatprep.subr.mxu0 0.0
    %2085 = vmatpush1.msra.mxu0 0.0
    %2086 = vmatprep.subr.mxu0 0.0
    %2087 = vmatpush1.msra.mxu0 0.0
    %2088 = vmatprep.subr.mxu0 0.0
    %2089 = vmatpush1.msra.mxu0 0.0
    %2090 = vmatprep.subr.mxu0 0.0
    %2091 = vmatpush1.msra.mxu0 0.0
    %2092 = vmatprep.subr.mxu0 0.0
    %2093 = vmatpush1.msra.mxu0 0.0
    %2094 = vmatprep.subr.mxu0 0.0
    %2095 = vmatpush1.msra.mxu0 0.0
    %2096 = vmatprep.subr.mxu0 0.0
    %2097 = vmatpush1.msra.mxu0 0.0
    %2098 = vmatprep.mubr.f32.mxu0 0.0
    %2099 = vmatmul.mubr.f32.gmra.mrb[0].mxu0 %v2032
    %v2100 = vpop.f32.mrb[0].mxu0
    %v2101 = vadd.f32 0.0, %v2100
    %v2102 = vpop.f32.mrb[0].mxu0
    %v2103 = vadd.f32 0.0, %v2102
    %2104 = vdwg.mxu0
    %v2105 = vadd.f32 %v1332, %v2101
    %v2106 = vadd.f32 %v1333, %v2103
    %v2107 = vxor.u32 %v2105, 2147483648
    %v2108 = vxor.u32 %v2106, 2147483648
    %v2109 = vmul.f32 %v2107, 1.442695
    %v2110 = vpow.pop %v2109
    %v2111 = vmul.f32 %v2108, 1.442695
    %v2112 = vpow.pop %v2111
    %v2113 = vadd.f32 %v2110, 1.0
    %v2114 = vadd.f32 %v2112, 1.0
    %v2115 = vrcp.pop %v2113
    %v2116 = vmul.f32 1.0, %v2115
    %v2117 = vrcp.pop %v2114
    %v2118 = vmul.f32 1.0, %v2117
    %v2119 = vtanh.pop %v2106
    %v2120 = vmul.f32 %v2116, %v2026
    %v2121 = vmul.f32 %v2116, %v2119
    %2123 = vrot.lane.b32.xlu0 %v2121, 64
    %v2124 = vpop.permute.xlu0 %2123
    %v2126 = vadd.f32 %v2120, %v2124
    %v2127 = vtanh.pop %v2126
    %v2128 = vmul.f32 %v2118, %v2127
    %2130 = vrot.lane.b32.xlu0 %v2128, 64
    %v2131 = vpop.permute.xlu0 %2130
    %v2140 = vsel %vm1128, %v1431, %v2131
    %v2141 = vsel %vm1128, %v1531, %v2031
    %v2142 = vsel %vm1128, %v1631, %v1931
    %v2143 = vsel %vm1128, %v1731, %v1831
    %v2144 = vsel %vm1128, %v1831, %v1731
    %v2145 = vsel %vm1128, %v1931, %v1631
    %v2146 = vsel %vm1128, %v2031, %v1531
    %v2147 = vsel %vm1128, %v2131, %v1431
    %v2148 = vld [vmem:[%s8] sm:$0xff]
    %v2149 = vld [vmem:[%s8 + $0x8] sm:$0xff]
    %v2150 = vld [vmem:[%s8 + $0x10] sm:$0xff]
    %v2151 = vld [vmem:[%s8 + $0x18] sm:$0xff]
    %v2152 = vld [vmem:[%s8 + $0x20] sm:$0xff]
    %v2153 = vld [vmem:[%s8 + $0x28] sm:$0xff]
    %v2154 = vld [vmem:[%s8 + $0x30] sm:$0xff]
    %v2155 = vld [vmem:[%s8 + $0x38] sm:$0xff]
    %v2156 = vld [vmem:[%s9] sm:$0x1]
    %v2158 = vlaneseq
    %v2159 = vshrl.u32 %v2158, 7
    %v2160 = vsub.s32 0, %v2159
    %v2161 = vrot.slane %v2156, %v2160
    %v2164 = vsel %vm318, %v2140, 0
    %v2167 = vsel %vm318, %v2141, 0
    %v2170 = vsel %vm318, %v2142, 0
    %v2173 = vsel %vm318, %v2143, 0
    %v2176 = vsel %vm318, %v2144, 0
    %v2179 = vsel %vm318, %v2145, 0
    %v2182 = vsel %vm318, %v2146, 0
    %v2185 = vsel %vm318, %v2147, 0
    %2187 = vmatprep.subr.mxu0 0.0
    %2188 = vmatpush1.msra.mxu0 %v2148
    %2189 = vmatprep.subr.mxu0 0.0
    %2190 = vmatpush1.msra.mxu0 %v2149
    %2191 = vmatprep.subr.mxu0 0.0
    %2192 = vmatpush1.msra.mxu0 %v2150
    %2193 = vmatprep.subr.mxu0 0.0
    %2194 = vmatpush1.msra.mxu0 %v2151
    %2195 = vmatprep.subr.mxu0 0.0
    %2196 = vmatpush1.msra.mxu0 %v2152
    %2197 = vmatprep.subr.mxu0 0.0
    %2198 = vmatpush1.msra.mxu0 %v2153
    %2199 = vmatprep.subr.mxu0 0.0
    %2200 = vmatpush1.msra.mxu0 %v2154
    %2201 = vmatprep.subr.mxu0 0.0
    %2202 = vmatpush1.msra.mxu0 %v2155
    %2203 = vmatprep.subr.mxu0 0.0
    %2204 = vmatpush1.msra.mxu0 0.0
    %2205 = vmatprep.subr.mxu0 0.0
    %2206 = vmatpush1.msra.mxu0 0.0
    %2207 = vmatprep.subr.mxu0 0.0
    %2208 = vmatpush1.msra.mxu0 0.0
    %2209 = vmatprep.subr.mxu0 0.0
    %2210 = vmatpush1.msra.mxu0 0.0
    %2211 = vmatprep.subr.mxu0 0.0
    %2212 = vmatpush1.msra.mxu0 0.0
    %2213 = vmatprep.subr.mxu0 0.0
    %2214 = vmatpush1.msra.mxu0 0.0
    %2215 = vmatprep.subr.mxu0 0.0
    %2216 = vmatpush1.msra.mxu0 0.0
    %2217 = vmatprep.subr.mxu0 0.0
    %2218 = vmatpush1.msra.mxu0 0.0
    %2219 = vmatprep.subr.mxu0 0.0
    %2220 = vmatpush1.msra.mxu0 0.0
    %2221 = vmatprep.subr.mxu0 0.0
    %2222 = vmatpush1.msra.mxu0 0.0
    %2223 = vmatprep.subr.mxu0 0.0
    %2224 = vmatpush1.msra.mxu0 0.0
    %2225 = vmatprep.subr.mxu0 0.0
    %2226 = vmatpush1.msra.mxu0 0.0
    %2227 = vmatprep.subr.mxu0 0.0
    %2228 = vmatpush1.msra.mxu0 0.0
    %2229 = vmatprep.subr.mxu0 0.0
    %2230 = vmatpush1.msra.mxu0 0.0
    %2231 = vmatprep.subr.mxu0 0.0
    %2232 = vmatpush1.msra.mxu0 0.0
    %2233 = vmatprep.subr.mxu0 0.0
    %2234 = vmatpush1.msra.mxu0 0.0
    %2235 = vmatprep.subr.mxu0 0.0
    %2236 = vmatpush1.msra.mxu0 0.0
    %2237 = vmatprep.subr.mxu0 0.0
    %2238 = vmatpush1.msra.mxu0 0.0
    %2239 = vmatprep.subr.mxu0 0.0
    %2240 = vmatpush1.msra.mxu0 0.0
    %2241 = vmatprep.subr.mxu0 0.0
    %2242 = vmatpush1.msra.mxu0 0.0
    %2243 = vmatprep.subr.mxu0 0.0
    %2244 = vmatpush1.msra.mxu0 0.0
    %2245 = vmatprep.subr.mxu0 0.0
    %2246 = vmatpush1.msra.mxu0 0.0
    %2247 = vmatprep.subr.mxu0 0.0
    %2248 = vmatpush1.msra.mxu0 0.0
    %2249 = vmatprep.subr.mxu0 0.0
    %2250 = vmatpush1.msra.mxu0 0.0
    %2251 = vmatprep.mubr.f32.mxu0 0.0
    %2252 = vmatmul.mubr.f32.gmra.mrb[0].mxu0 %v2164
    %v2253 = vpop.f32.mrb[0].mxu0
    %v2254 = vadd.f32 %v2161, %v2253
    %v2255 = vpop.f32.mrb[0].mxu0
    %2256 = vmatprep.mubr.f32.mxu0 0.0
    %2257 = vmatmul.mubr.f32.gmra.mrb[0].mxu0 %v2167
    %v2258 = vpop.f32.mrb[0].mxu0
    %v2259 = vadd.f32 %v2161, %v2258
    %v2260 = vpop.f32.mrb[0].mxu0
    %2261 = vmatprep.mubr.f32.mxu0 0.0
    %2262 = vmatmul.mubr.f32.gmra.mrb[0].mxu0 %v2170
    %v2263 = vpop.f32.mrb[0].mxu0
    %v2264 = vadd.f32 %v2161, %v2263
    %v2265 = vpop.f32.mrb[0].mxu0
    %2266 = vmatprep.mubr.f32.mxu0 0.0
    %2267 = vmatmul.mubr.f32.gmra.mrb[0].mxu0 %v2173
    %v2268 = vpop.f32.mrb[0].mxu0
    %v2269 = vadd.f32 %v2161, %v2268
    %v2270 = vpop.f32.mrb[0].mxu0
    %2271 = vmatprep.mubr.f32.mxu0 0.0
    %2272 = vmatmul.mubr.f32.gmra.mrb[0].mxu0 %v2176
    %v2273 = vpop.f32.mrb[0].mxu0
    %v2274 = vadd.f32 %v2161, %v2273
    %v2275 = vpop.f32.mrb[0].mxu0
    %2276 = vmatprep.mubr.f32.mxu0 0.0
    %2277 = vmatmul.mubr.f32.gmra.mrb[0].mxu0 %v2179
    %v2278 = vpop.f32.mrb[0].mxu0
    %v2279 = vadd.f32 %v2161, %v2278
    %v2280 = vpop.f32.mrb[0].mxu0
    %2281 = vmatprep.mubr.f32.mxu0 0.0
    %2282 = vmatmul.mubr.f32.gmra.mrb[0].mxu0 %v2182
    %v2283 = vpop.f32.mrb[0].mxu0
    %v2284 = vadd.f32 %v2161, %v2283
    %v2285 = vpop.f32.mrb[0].mxu0
    %2286 = vmatprep.mubr.f32.mxu0 0.0
    %2287 = vmatmul.mubr.f32.gmra.mrb[0].mxu0 %v2185
    %v2288 = vpop.f32.mrb[0].mxu0
    %v2289 = vadd.f32 %v2161, %v2288
    %v2290 = vpop.f32.mrb[0].mxu0
    %2291 = vdwg.mxu0
    %v2292 = vtanh.pop %v2254
    %v2293 = vtanh.pop %v2259
    %v2294 = vtanh.pop %v2264
    %v2295 = vtanh.pop %v2269
    %v2296 = vtanh.pop %v2274
    %v2297 = vtanh.pop %v2279
    %v2298 = vtanh.pop %v2284
    %v2299 = vtanh.pop %v2289
    %v2300 = vld [vmem:[%s10] sm:$0xff]
    %v2301 = vld [vmem:[%s10 + $0x8] sm:$0xff]
    %v2302 = vld [vmem:[%s10 + $0x10] sm:$0xff]
    %v2303 = vld [vmem:[%s10 + $0x18] sm:$0xff]
    %v2304 = vld [vmem:[%s11] sm:$0x1]
    %v2306 = vlaneseq
    %v2307 = vshrl.u32 %v2306, 7
    %v2308 = vsub.s32 0, %v2307
    %v2309 = vrot.slane %v2304, %v2308
    %v2312 = vsel %vm1128, %v2292, 0
    %v2315 = vsel %vm1128, %v2293, 0
    %v2318 = vsel %vm1128, %v2294, 0
    %v2321 = vsel %vm1128, %v2295, 0
    %v2324 = vsel %vm1128, %v2296, 0
    %v2327 = vsel %vm1128, %v2297, 0
    %v2330 = vsel %vm1128, %v2298, 0
    %v2333 = vsel %vm1128, %v2299, 0
    %2335 = vmatprep.subr.mxu0 0.0
    %2336 = vmatpush1.msra.mxu0 %v2300
    %2337 = vmatprep.subr.mxu0 0.0
    %2338 = vmatpush1.msra.mxu0 %v2301
    %2339 = vmatprep.subr.mxu0 0.0
    %2340 = vmatpush1.msra.mxu0 %v2302
    %2341 = vmatprep.subr.mxu0 0.0
    %2342 = vmatpush1.msra.mxu0 %v2303
    %2343 = vmatprep.subr.mxu0 0.0
    %2344 = vmatpush1.msra.mxu0 0.0
    %2345 = vmatprep.subr.mxu0 0.0
    %2346 = vmatpush1.msra.mxu0 0.0
    %2347 = vmatprep.subr.mxu0 0.0
    %2348 = vmatpush1.msra.mxu0 0.0
    %2349 = vmatprep.subr.mxu0 0.0
    %2350 = vmatpush1.msra.mxu0 0.0
    %2351 = vmatprep.subr.mxu0 0.0
    %2352 = vmatpush1.msra.mxu0 0.0
    %2353 = vmatprep.subr.mxu0 0.0
    %2354 = vmatpush1.msra.mxu0 0.0
    %2355 = vmatprep.subr.mxu0 0.0
    %2356 = vmatpush1.msra.mxu0 0.0
    %2357 = vmatprep.subr.mxu0 0.0
    %2358 = vmatpush1.msra.mxu0 0.0
    %2359 = vmatprep.subr.mxu0 0.0
    %2360 = vmatpush1.msra.mxu0 0.0
    %2361 = vmatprep.subr.mxu0 0.0
    %2362 = vmatpush1.msra.mxu0 0.0
    %2363 = vmatprep.subr.mxu0 0.0
    %2364 = vmatpush1.msra.mxu0 0.0
    %2365 = vmatprep.subr.mxu0 0.0
    %2366 = vmatpush1.msra.mxu0 0.0
    %2367 = vmatprep.subr.mxu0 0.0
    %2368 = vmatpush1.msra.mxu0 0.0
    %2369 = vmatprep.subr.mxu0 0.0
    %2370 = vmatpush1.msra.mxu0 0.0
    %2371 = vmatprep.subr.mxu0 0.0
    %2372 = vmatpush1.msra.mxu0 0.0
    %2373 = vmatprep.subr.mxu0 0.0
    %2374 = vmatpush1.msra.mxu0 0.0
    %2375 = vmatprep.subr.mxu0 0.0
    %2376 = vmatpush1.msra.mxu0 0.0
    %2377 = vmatprep.subr.mxu0 0.0
    %2378 = vmatpush1.msra.mxu0 0.0
    %2379 = vmatprep.subr.mxu0 0.0
    %2380 = vmatpush1.msra.mxu0 0.0
    %2381 = vmatprep.subr.mxu0 0.0
    %2382 = vmatpush1.msra.mxu0 0.0
    %2383 = vmatprep.subr.mxu0 0.0
    %2384 = vmatpush1.msra.mxu0 0.0
    %2385 = vmatprep.subr.mxu0 0.0
    %2386 = vmatpush1.msra.mxu0 0.0
    %2387 = vmatprep.subr.mxu0 0.0
    %2388 = vmatpush1.msra.mxu0 0.0
    %2389 = vmatprep.subr.mxu0 0.0
    %2390 = vmatpush1.msra.mxu0 0.0
    %2391 = vmatprep.subr.mxu0 0.0
    %2392 = vmatpush1.msra.mxu0 0.0
    %2393 = vmatprep.subr.mxu0 0.0
    %2394 = vmatpush1.msra.mxu0 0.0
    %2395 = vmatprep.subr.mxu0 0.0
    %2396 = vmatpush1.msra.mxu0 0.0
    %2397 = vmatprep.subr.mxu0 0.0
    %2398 = vmatpush1.msra.mxu0 0.0
    %2399 = vmatprep.mubr.f32.mxu0 0.0
    %2400 = vmatmul.mubr.f32.gmra.mrb[0].mxu0 %v2312
    %v2401 = vpop.f32.mrb[0].mxu0
    %v2402 = vadd.f32 %v2309, %v2401
    %v2403 = vpop.f32.mrb[0].mxu0
    %2404 = vmatprep.mubr.f32.mxu0 0.0
    %2405 = vmatmul.mubr.f32.gmra.mrb[0].mxu0 %v2315
    %v2406 = vpop.f32.mrb[0].mxu0
    %v2407 = vadd.f32 %v2309, %v2406
    %v2408 = vpop.f32.mrb[0].mxu0
    %2409 = vmatprep.mubr.f32.mxu0 0.0
    %2410 = vmatmul.mubr.f32.gmra.mrb[0].mxu0 %v2318
    %v2411 = vpop.f32.mrb[0].mxu0
    %v2412 = vadd.f32 %v2309, %v2411
    %v2413 = vpop.f32.mrb[0].mxu0
    %2414 = vmatprep.mubr.f32.mxu0 0.0
    %2415 = vmatmul.mubr.f32.gmra.mrb[0].mxu0 %v2321
    %v2416 = vpop.f32.mrb[0].mxu0
    %v2417 = vadd.f32 %v2309, %v2416
    %v2418 = vpop.f32.mrb[0].mxu0
    %2419 = vmatprep.mubr.f32.mxu0 0.0
    %2420 = vmatmul.mubr.f32.gmra.mrb[0].mxu0 %v2324
    %v2421 = vpop.f32.mrb[0].mxu0
    %v2422 = vadd.f32 %v2309, %v2421
    %v2423 = vpop.f32.mrb[0].mxu0
    %2424 = vmatprep.mubr.f32.mxu0 0.0
    %2425 = vmatmul.mubr.f32.gmra.mrb[0].mxu0 %v2327
    %v2426 = vpop.f32.mrb[0].mxu0
    %v2427 = vadd.f32 %v2309, %v2426
    %v2428 = vpop.f32.mrb[0].mxu0
    %2429 = vmatprep.mubr.f32.mxu0 0.0
    %2430 = vmatmul.mubr.f32.gmra.mrb[0].mxu0 %v2330
    %v2431 = vpop.f32.mrb[0].mxu0
    %v2432 = vadd.f32 %v2309, %v2431
    %v2433 = vpop.f32.mrb[0].mxu0
    %2434 = vmatprep.mubr.f32.mxu0 0.0
    %2435 = vmatmul.mubr.f32.gmra.mrb[0].mxu0 %v2333
    %v2436 = vpop.f32.mrb[0].mxu0
    %v2437 = vadd.f32 %v2309, %v2436
    %v2438 = vpop.f32.mrb[0].mxu0
    %2439 = vdwg.mxu0
    %v2440 = vtanh.pop %v2402
    %v2441 = vtanh.pop %v2407
    %v2442 = vtanh.pop %v2412
    %v2443 = vtanh.pop %v2417
    %v2444 = vtanh.pop %v2422
    %v2445 = vtanh.pop %v2427
    %v2446 = vtanh.pop %v2432
    %v2447 = vtanh.pop %v2437
    %v2448 = vld [vmem:[%s12] sm:$0xff]
    %v2449 = vld [vmem:[%s12 + $0x8] sm:$0xff]
    %v2450 = vld [vmem:[%s12 + $0x10] sm:$0xff]
    %v2451 = vld [vmem:[%s12 + $0x18] sm:$0xff]
    %v2452 = vld [vmem:[#allocation2] sm:$0x1]
    %v2454 = vlaneseq
    %v2455 = vshrl.u32 %v2454, 7
    %v2456 = vsub.s32 0, %v2455
    %v2457 = vrot.slane %v2452, %v2456
    %v2460 = vsel %vm1128, %v2440, 0
    %v2463 = vsel %vm1128, %v2441, 0
    %v2466 = vsel %vm1128, %v2442, 0
    %v2469 = vsel %vm1128, %v2443, 0
    %v2472 = vsel %vm1128, %v2444, 0
    %v2475 = vsel %vm1128, %v2445, 0
    %v2478 = vsel %vm1128, %v2446, 0
    %v2481 = vsel %vm1128, %v2447, 0
    %2483 = vmatprep.subr.mxu0 0.0
    %2484 = vmatpush1.msra.mxu0 %v2448
    %2485 = vmatprep.subr.mxu0 0.0
    %2486 = vmatpush1.msra.mxu0 %v2449
    %2487 = vmatprep.subr.mxu0 0.0
    %2488 = vmatpush1.msra.mxu0 %v2450
    %2489 = vmatprep.subr.mxu0 0.0
    %2490 = vmatpush1.msra.mxu0 %v2451
    %2491 = vmatprep.subr.mxu0 0.0
    %2492 = vmatpush1.msra.mxu0 0.0
    %2493 = vmatprep.subr.mxu0 0.0
    %2494 = vmatpush1.msra.mxu0 0.0
    %2495 = vmatprep.subr.mxu0 0.0
    %2496 = vmatpush1.msra.mxu0 0.0
    %2497 = vmatprep.subr.mxu0 0.0
    %2498 = vmatpush1.msra.mxu0 0.0
    %2499 = vmatprep.subr.mxu0 0.0
    %2500 = vmatpush1.msra.mxu0 0.0
    %2501 = vmatprep.subr.mxu0 0.0
    %2502 = vmatpush1.msra.mxu0 0.0
    %2503 = vmatprep.subr.mxu0 0.0
    %2504 = vmatpush1.msra.mxu0 0.0
    %2505 = vmatprep.subr.mxu0 0.0
    %2506 = vmatpush1.msra.mxu0 0.0
    %2507 = vmatprep.subr.mxu0 0.0
    %2508 = vmatpush1.msra.mxu0 0.0
    %2509 = vmatprep.subr.mxu0 0.0
    %2510 = vmatpush1.msra.mxu0 0.0
    %2511 = vmatprep.subr.mxu0 0.0
    %2512 = vmatpush1.msra.mxu0 0.0
    %2513 = vmatprep.subr.mxu0 0.0
    %2514 = vmatpush1.msra.mxu0 0.0
    %2515 = vmatprep.subr.mxu0 0.0
    %2516 = vmatpush1.msra.mxu0 0.0
    %2517 = vmatprep.subr.mxu0 0.0
    %2518 = vmatpush1.msra.mxu0 0.0
    %2519 = vmatprep.subr.mxu0 0.0
    %2520 = vmatpush1.msra.mxu0 0.0
    %2521 = vmatprep.subr.mxu0 0.0
    %2522 = vmatpush1.msra.mxu0 0.0
    %2523 = vmatprep.subr.mxu0 0.0
    %2524 = vmatpush1.msra.mxu0 0.0
    %2525 = vmatprep.subr.mxu0 0.0
    %2526 = vmatpush1.msra.mxu0 0.0
    %2527 = vmatprep.subr.mxu0 0.0
    %2528 = vmatpush1.msra.mxu0 0.0
    %2529 = vmatprep.subr.mxu0 0.0
    %2530 = vmatpush1.msra.mxu0 0.0
    %2531 = vmatprep.subr.mxu0 0.0
    %2532 = vmatpush1.msra.mxu0 0.0
    %2533 = vmatprep.subr.mxu0 0.0
    %2534 = vmatpush1.msra.mxu0 0.0
    %2535 = vmatprep.subr.mxu0 0.0
    %2536 = vmatpush1.msra.mxu0 0.0
    %2537 = vmatprep.subr.mxu0 0.0
    %2538 = vmatpush1.msra.mxu0 0.0
    %2539 = vmatprep.subr.mxu0 0.0
    %2540 = vmatpush1.msra.mxu0 0.0
    %2541 = vmatprep.subr.mxu0 0.0
    %2542 = vmatpush1.msra.mxu0 0.0
    %2543 = vmatprep.subr.mxu0 0.0
    %2544 = vmatpush1.msra.mxu0 0.0
    %2545 = vmatprep.subr.mxu0 0.0
    %2546 = vmatpush1.msra.mxu0 0.0
    %2547 = vmatprep.mubr.f32.mxu0 0.0
    %2548 = vmatmul.mubr.f32.gmra.mrb[0].mxu0 %v2460
    %v2549 = vpop.f32.mrb[0].mxu0
    %v2550 = vadd.f32 %v2457, %v2549
    %v2551 = vpop.f32.mrb[0].mxu0
    %2552 = vmatprep.mubr.f32.mxu0 0.0
    %2553 = vmatmul.mubr.f32.gmra.mrb[0].mxu0 %v2463
    %v2554 = vpop.f32.mrb[0].mxu0
    %v2555 = vadd.f32 %v2457, %v2554
    %v2556 = vpop.f32.mrb[0].mxu0
    %2557 = vmatprep.mubr.f32.mxu0 0.0
    %2558 = vmatmul.mubr.f32.gmra.mrb[0].mxu0 %v2466
    %v2559 = vpop.f32.mrb[0].mxu0
    %v2560 = vadd.f32 %v2457, %v2559
    %v2561 = vpop.f32.mrb[0].mxu0
    %2562 = vmatprep.mubr.f32.mxu0 0.0
    %2563 = vmatmul.mubr.f32.gmra.mrb[0].mxu0 %v2469
    %v2564 = vpop.f32.mrb[0].mxu0
    %v2565 = vadd.f32 %v2457, %v2564
    %v2566 = vpop.f32.mrb[0].mxu0
    %2567 = vmatprep.mubr.f32.mxu0 0.0
    %2568 = vmatmul.mubr.f32.gmra.mrb[0].mxu0 %v2472
    %v2569 = vpop.f32.mrb[0].mxu0
    %v2570 = vadd.f32 %v2457, %v2569
    %v2571 = vpop.f32.mrb[0].mxu0
    %2572 = vmatprep.mubr.f32.mxu0 0.0
    %2573 = vmatmul.mubr.f32.gmra.mrb[0].mxu0 %v2475
    %v2574 = vpop.f32.mrb[0].mxu0
    %v2575 = vadd.f32 %v2457, %v2574
    %v2576 = vpop.f32.mrb[0].mxu0
    %2577 = vmatprep.mubr.f32.mxu0 0.0
    %2578 = vmatmul.mubr.f32.gmra.mrb[0].mxu0 %v2478
    %v2579 = vpop.f32.mrb[0].mxu0
    %v2580 = vadd.f32 %v2457, %v2579
    %v2581 = vpop.f32.mrb[0].mxu0
    %2582 = vmatprep.mubr.f32.mxu0 0.0
    %2583 = vmatmul.mubr.f32.gmra.mrb[0].mxu0 %v2481
    %v2584 = vpop.f32.mrb[0].mxu0
    %v2585 = vadd.f32 %v2457, %v2584
    %v2586 = vpop.f32.mrb[0].mxu0
    %2587 = vdwg.mxu0
    %v2588 = vld [vmem:[%s1] sm:$0xff]
    %v2589 = vld [vmem:[%s1 + $0x8] sm:$0xff]
    %v2590 = vld [vmem:[%s1 + $0x10] sm:$0xff]
    %v2591 = vld [vmem:[%s1 + $0x18] sm:$0xff]
    %v2592 = vld [vmem:[%s1 + $0x20] sm:$0xff]
    %v2593 = vld [vmem:[%s1 + $0x28] sm:$0xff]
    %v2594 = vld [vmem:[%s1 + $0x30] sm:$0xff]
    %v2595 = vld [vmem:[%s1 + $0x38] sm:$0xff]
    %vm2596 = vcmp.eq.f32.partialorder %v2588, 0.0
    %vm2597 = vcmp.eq.f32.partialorder %v2589, 0.0
    %vm2598 = vcmp.eq.f32.partialorder %v2590, 0.0
    %vm2599 = vcmp.eq.f32.partialorder %v2591, 0.0
    %vm2600 = vcmp.eq.f32.partialorder %v2592, 0.0
    %vm2601 = vcmp.eq.f32.partialorder %v2593, 0.0
    %vm2602 = vcmp.eq.f32.partialorder %v2594, 0.0
    %vm2603 = vcmp.eq.f32.partialorder %v2595, 0.0
    %v2604 = vsel %vm2596, -inf, %v2550
    %v2605 = vsel %vm2597, -inf, %v2555
    %v2606 = vsel %vm2598, -inf, %v2560
    %v2607 = vsel %vm2599, -inf, %v2565
    %v2608 = vsel %vm2600, -inf, %v2570
    %v2609 = vsel %vm2601, -inf, %v2575
    %v2610 = vsel %vm2602, -inf, %v2580
    %v2611 = vsel %vm2603, -inf, %v2585
    %vm2612 = vcmask 7168
    %v2613 = vsel %vm2612, %v2604, -inf
    %v2614 = vsel %vm2612, %v2605, -inf
    %v2615 = vsel %vm2612, %v2606, -inf
    %v2616 = vsel %vm2612, %v2607, -inf
    %v2617 = vsel %vm2612, %v2608, -inf
    %v2618 = vmax.f32 %v2613, %v2617
    %v2619 = vsel %vm2612, %v2609, -inf
    %v2620 = vmax.f32 %v2614, %v2619
    %v2621 = vsel %vm2612, %v2610, -inf
    %v2622 = vmax.f32 %v2615, %v2621
    %v2623 = vsel %vm2612, %v2611, -inf
    %v2624 = vmax.f32 %v2616, %v2623
    %v2625 = vmax.f32 %v2618, %v2620
    %v2626 = vmax.f32 %v2622, %v2624
    %v2627 = vmax.f32 %v2625, %v2626
    %v2628 = vsub.f32 %v2604, %v2627
    %v2629 = vsub.f32 %v2605, %v2627
    %v2630 = vsub.f32 %v2606, %v2627
    %v2631 = vsub.f32 %v2607, %v2627
    %v2632 = vsub.f32 %v2608, %v2627
    %v2633 = vsub.f32 %v2609, %v2627
    %v2634 = vsub.f32 %v2610, %v2627
    %v2635 = vsub.f32 %v2611, %v2627
    %v2636 = vmul.f32 %v2628, 1.442695
    %v2637 = vpow.pop %v2636
    %v2638 = vmul.f32 %v2629, 1.442695
    %v2639 = vpow.pop %v2638
    %v2640 = vmul.f32 %v2630, 1.442695
    %v2641 = vpow.pop %v2640
    %v2642 = vmul.f32 %v2631, 1.442695
    %v2643 = vpow.pop %v2642
    %v2644 = vmul.f32 %v2632, 1.442695
    %v2645 = vpow.pop %v2644
    %v2646 = vmul.f32 %v2633, 1.442695
    %v2647 = vpow.pop %v2646
    %v2648 = vmul.f32 %v2634, 1.442695
    %v2649 = vpow.pop %v2648
    %v2650 = vmul.f32 %v2635, 1.442695
    %v2651 = vpow.pop %v2650
    %v2652 = vsel %vm2612, %v2637, 0.0
    %v2653 = vsel %vm2612, %v2639, 0.0
    %v2654 = vadd.f32 %v2652, %v2653
    %v2655 = vsel %vm2612, %v2641, 0.0
    %v2656 = vadd.f32 %v2654, %v2655
    %v2657 = vsel %vm2612, %v2643, 0.0
    %v2658 = vadd.f32 %v2656, %v2657
    %v2659 = vsel %vm2612, %v2645, 0.0
    %v2660 = vadd.f32 %v2658, %v2659
    %v2661 = vsel %vm2612, %v2647, 0.0
    %v2662 = vadd.f32 %v2660, %v2661
    %v2663 = vsel %vm2612, %v2649, 0.0
    %v2664 = vadd.f32 %v2662, %v2663
    %v2665 = vsel %vm2612, %v2651, 0.0
    %v2666 = vadd.f32 %v2664, %v2665
    %v2667 = vrcp.pop %v2666
    %v2668 = vmul.f32 1.0, %v2667
    %v2669 = vmul.f32 %v2637, %v2668
    %v2670 = vmul.f32 %v2639, %v2668
    %v2671 = vmul.f32 %v2641, %v2668
    %v2672 = vmul.f32 %v2643, %v2668
    %v2673 = vmul.f32 %v2645, %v2668
    %v2674 = vmul.f32 %v2647, %v2668
    %v2675 = vmul.f32 %v2649, %v2668
    %v2676 = vmul.f32 %v2651, %v2668
    %2677 = vst.msk [vmem:[%s19] sm:$0xff] %vm2612, %v2669
    %2678 = vst.msk [vmem:[%s19 + $0x8] sm:$0xff] %vm2612, %v2670
    %2679 = vst.msk [vmem:[%s19 + $0x10] sm:$0xff] %vm2612, %v2671
    %2680 = vst.msk [vmem:[%s19 + $0x18] sm:$0xff] %vm2612, %v2672
    %2681 = vst.msk [vmem:[%s19 + $0x20] sm:$0xff] %vm2612, %v2673
    %2682 = vst.msk [vmem:[%s19 + $0x28] sm:$0xff] %vm2612, %v2674
    %2683 = vst.msk [vmem:[%s19 + $0x30] sm:$0xff] %vm2612, %v2675
    %2684 = vst.msk [vmem:[%s19 + $0x38] sm:$0xff] %vm2612, %v2676
    %2686 = vset.pattern.permute.xlu0 0
    %2687 = vperm.xlu0 %2686, %v2669
    %v2688 = vpop.permute.xlu0 %2687
    %2691 = vset.pattern.permute.xlu0 0
    %2692 = vperm.xlu0 %2691, %v2670
    %v2693 = vpop.permute.xlu0 %2692
    %2696 = vset.pattern.permute.xlu0 0
    %2697 = vperm.xlu0 %2696, %v2671
    %v2698 = vpop.permute.xlu0 %2697
    %2701 = vset.pattern.permute.xlu0 0
    %2702 = vperm.xlu0 %2701, %v2672
    %v2703 = vpop.permute.xlu0 %2702
    %2706 = vset.pattern.permute.xlu0 0
    %2707 = vperm.xlu0 %2706, %v2673
    %v2708 = vpop.permute.xlu0 %2707
    %2711 = vset.pattern.permute.xlu0 0
    %2712 = vperm.xlu0 %2711, %v2674
    %v2713 = vpop.permute.xlu0 %2712
    %2716 = vset.pattern.permute.xlu0 0
    %2717 = vperm.xlu0 %2716, %v2675
    %v2718 = vpop.permute.xlu0 %2717
    %2721 = vset.pattern.permute.xlu0 0
    %2722 = vperm.xlu0 %2721, %v2676
    %v2723 = vpop.permute.xlu0 %2722
    %v2725 = vmul.f32 %v2688, %v2292
    %v2726 = vmul.f32 %v2693, %v2293
    %v2727 = vmul.f32 %v2698, %v2294
    %v2728 = vmul.f32 %v2703, %v2295
    %v2729 = vmul.f32 %v2708, %v2296
    %v2730 = vmul.f32 %v2713, %v2297
    %v2731 = vmul.f32 %v2718, %v2298
    %v2732 = vmul.f32 %v2723, %v2299
    %v2733 = vsel %vm1128, %v2725, 0.0
    %v2734 = vsel %vm1128, %v2726, 0.0
    %v2735 = vadd.f32 %v2733, %v2734
    %v2736 = vsel %vm1128, %v2727, 0.0
    %v2737 = vadd.f32 %v2735, %v2736
    %v2738 = vsel %vm1128, %v2728, 0.0
    %v2739 = vadd.f32 %v2737, %v2738
    %v2740 = vsel %vm1128, %v2729, 0.0
    %v2741 = vadd.f32 %v2739, %v2740
    %v2742 = vsel %vm1128, %v2730, 0.0
    %v2743 = vadd.f32 %v2741, %v2742
    %v2744 = vsel %vm1128, %v2731, 0.0
    %v2745 = vadd.f32 %v2743, %v2744
    %v2746 = vsel %vm1128, %v2732, 0.0
    %v2747 = vadd.f32 %v2745, %v2746
    %v2748 = vld [vmem:[%s14] sm:$0xff]
    %v2749 = vld [vmem:[%s14 + $0x8] sm:$0xff]
    %v2750 = vld [vmem:[%s14 + $0x10] sm:$0xff]
    %v2751 = vld [vmem:[%s14 + $0x18] sm:$0xff]
    %v2752 = vld [vmem:[%s15] sm:$0x1]
    %v2754 = vlaneseq
    %v2755 = vshrl.u32 %v2754, 7
    %v2756 = vsub.s32 0, %v2755
    %v2757 = vrot.slane %v2752, %v2756
    %v2760 = vsel %vm1128, %v2747, 0
    %2762 = vmatprep.subr.mxu0 0.0
    %2763 = vmatpush1.msra.mxu0 %v2748
    %2764 = vmatprep.subr.mxu0 0.0
    %2765 = vmatpush1.msra.mxu0 %v2749
    %2766 = vmatprep.subr.mxu0 0.0
    %2767 = vmatpush1.msra.mxu0 %v2750
    %2768 = vmatprep.subr.mxu0 0.0
    %2769 = vmatpush1.msra.mxu0 %v2751
    %2770 = vmatprep.subr.mxu0 0.0
    %2771 = vmatpush1.msra.mxu0 0.0
    %2772 = vmatprep.subr.mxu0 0.0
    %2773 = vmatpush1.msra.mxu0 0.0
    %2774 = vmatprep.subr.mxu0 0.0
    %2775 = vmatpush1.msra.mxu0 0.0
    %2776 = vmatprep.subr.mxu0 0.0
    %2777 = vmatpush1.msra.mxu0 0.0
    %2778 = vmatprep.subr.mxu0 0.0
    %2779 = vmatpush1.msra.mxu0 0.0
    %2780 = vmatprep.subr.mxu0 0.0
    %2781 = vmatpush1.msra.mxu0 0.0
    %2782 = vmatprep.subr.mxu0 0.0
    %2783 = vmatpush1.msra.mxu0 0.0
    %2784 = vmatprep.subr.mxu0 0.0
    %2785 = vmatpush1.msra.mxu0 0.0
    %2786 = vmatprep.subr.mxu0 0.0
    %2787 = vmatpush1.msra.mxu0 0.0
    %2788 = vmatprep.subr.mxu0 0.0
    %2789 = vmatpush1.msra.mxu0 0.0
    %2790 = vmatprep.subr.mxu0 0.0
    %2791 = vmatpush1.msra.mxu0 0.0
    %2792 = vmatprep.subr.mxu0 0.0
    %2793 = vmatpush1.msra.mxu0 0.0
    %2794 = vmatprep.subr.mxu0 0.0
    %2795 = vmatpush1.msra.mxu0 0.0
    %2796 = vmatprep.subr.mxu0 0.0
    %2797 = vmatpush1.msra.mxu0 0.0
    %2798 = vmatprep.subr.mxu0 0.0
    %2799 = vmatpush1.msra.mxu0 0.0
    %2800 = vmatprep.subr.mxu0 0.0
    %2801 = vmatpush1.msra.mxu0 0.0
    %2802 = vmatprep.subr.mxu0 0.0
    %2803 = vmatpush1.msra.mxu0 0.0
    %2804 = vmatprep.subr.mxu0 0.0
    %2805 = vmatpush1.msra.mxu0 0.0
    %2806 = vmatprep.subr.mxu0 0.0
    %2807 = vmatpush1.msra.mxu0 0.0
    %2808 = vmatprep.subr.mxu0 0.0
    %2809 = vmatpush1.msra.mxu0 0.0
    %2810 = vmatprep.subr.mxu0 0.0
    %2811 = vmatpush1.msra.mxu0 0.0
    %2812 = vmatprep.subr.mxu0 0.0
    %2813 = vmatpush1.msra.mxu0 0.0
    %2814 = vmatprep.subr.mxu0 0.0
    %2815 = vmatpush1.msra.mxu0 0.0
    %2816 = vmatprep.subr.mxu0 0.0
    %2817 = vmatpush1.msra.mxu0 0.0
    %2818 = vmatprep.subr.mxu0 0.0
    %2819 = vmatpush1.msra.mxu0 0.0
    %2820 = vmatprep.subr.mxu0 0.0
    %2821 = vmatpush1.msra.mxu0 0.0
    %2822 = vmatprep.subr.mxu0 0.0
    %2823 = vmatpush1.msra.mxu0 0.0
    %2824 = vmatprep.subr.mxu0 0.0
    %2825 = vmatpush1.msra.mxu0 0.0
    %2826 = vmatprep.mubr.f32.mxu0 0.0
    %2827 = vmatmul.mubr.f32.gmra.mrb[0].mxu0 %v2760
    %v2828 = vpop.f32.mrb[0].mxu0
    %v2829 = vadd.f32 %v2757, %v2828
    %v2830 = vpop.f32.mrb[0].mxu0
    %2831 = vdwg.mxu0
    %v2832 = vmax.f32 %v2829, 0.0
    %v2833 = vld [vmem:[%s16] sm:$0xff]
    %v2834 = vld [vmem:[%s16 + $0x8] sm:$0xff]
    %v2835 = vld [vmem:[%s17] sm:$0x1]
    %v2837 = vlaneseq
    %v2838 = vshrl.u32 %v2837, 7
    %v2839 = vsub.s32 0, %v2838
    %v2840 = vrot.slane %v2835, %v2839
    %vm2842 = vcmask 130048
    %v2844 = vsel %vm2842, %v2832, 0
    %2846 = vmatprep.subr.mxu0 0.0
    %2847 = vmatpush1.msra.mxu0 %v2833
    %2848 = vmatprep.subr.mxu0 0.0
    %2849 = vmatpush1.msra.mxu0 %v2834
    %2850 = vmatprep.subr.mxu0 0.0
    %2851 = vmatpush1.msra.mxu0 0.0
    %2852 = vmatprep.subr.mxu0 0.0
    %2853 = vmatpush1.msra.mxu0 0.0
    %2854 = vmatprep.subr.mxu0 0.0
    %2855 = vmatpush1.msra.mxu0 0.0
    %2856 = vmatprep.subr.mxu0 0.0
    %2857 = vmatpush1.msra.mxu0 0.0
    %2858 = vmatprep.subr.mxu0 0.0
    %2859 = vmatpush1.msra.mxu0 0.0
    %2860 = vmatprep.subr.mxu0 0.0
    %2861 = vmatpush1.msra.mxu0 0.0
    %2862 = vmatprep.subr.mxu0 0.0
    %2863 = vmatpush1.msra.mxu0 0.0
    %2864 = vmatprep.subr.mxu0 0.0
    %2865 = vmatpush1.msra.mxu0 0.0
    %2866 = vmatprep.subr.mxu0 0.0
    %2867 = vmatpush1.msra.mxu0 0.0
    %2868 = vmatprep.subr.mxu0 0.0
    %2869 = vmatpush1.msra.mxu0 0.0
    %2870 = vmatprep.subr.mxu0 0.0
    %2871 = vmatpush1.msra.mxu0 0.0
    %2872 = vmatprep.subr.mxu0 0.0
    %2873 = vmatpush1.msra.mxu0 0.0
    %2874 = vmatprep.subr.mxu0 0.0
    %2875 = vmatpush1.msra.mxu0 0.0
    %2876 = vmatprep.subr.mxu0 0.0
    %2877 = vmatpush1.msra.mxu0 0.0
    %2878 = vmatprep.subr.mxu0 0.0
    %2879 = vmatpush1.msra.mxu0 0.0
    %2880 = vmatprep.subr.mxu0 0.0
    %2881 = vmatpush1.msra.mxu0 0.0
    %2882 = vmatprep.subr.mxu0 0.0
    %2883 = vmatpush1.msra.mxu0 0.0
    %2884 = vmatprep.subr.mxu0 0.0
    %2885 = vmatpush1.msra.mxu0 0.0
    %2886 = vmatprep.subr.mxu0 0.0
    %2887 = vmatpush1.msra.mxu0 0.0
    %2888 = vmatprep.subr.mxu0 0.0
    %2889 = vmatpush1.msra.mxu0 0.0
    %2890 = vmatprep.subr.mxu0 0.0
    %2891 = vmatpush1.msra.mxu0 0.0
    %2892 = vmatprep.subr.mxu0 0.0
    %2893 = vmatpush1.msra.mxu0 0.0
    %2894 = vmatprep.subr.mxu0 0.0
    %2895 = vmatpush1.msra.mxu0 0.0
    %2896 = vmatprep.subr.mxu0 0.0
    %2897 = vmatpush1.msra.mxu0 0.0
    %2898 = vmatprep.subr.mxu0 0.0
    %2899 = vmatpush1.msra.mxu0 0.0
    %2900 = vmatprep.subr.mxu0 0.0
    %2901 = vmatpush1.msra.mxu0 0.0
    %2902 = vmatprep.subr.mxu0 0.0
    %2903 = vmatpush1.msra.mxu0 0.0
    %2904 = vmatprep.subr.mxu0 0.0
    %2905 = vmatpush1.msra.mxu0 0.0
    %2906 = vmatprep.subr.mxu0 0.0
    %2907 = vmatpush1.msra.mxu0 0.0
    %2908 = vmatprep.subr.mxu0 0.0
    %2909 = vmatpush1.msra.mxu0 0.0
    %2910 = vmatprep.mubr.f32.mxu0 0.0
    %2911 = vmatmul.mubr.f32.gmra.mrb[0].mxu0 %v2844
    %v2912 = vpop.f32.mrb[0].mxu0
    %v2913 = vadd.f32 %v2840, %v2912
    %v2914 = vpop.f32.mrb[0].mxu0
    %2915 = vdwg.mxu0
    %v2916 = vxor.u32 %v2913, 2147483648
    %v2917 = vmul.f32 %v2916, 1.442695
    %v2918 = vpow.pop %v2917
    %v2919 = vadd.f32 %v2918, 1.0
    %v2920 = vrcp.pop %v2919
    %v2921 = vmul.f32 1.0, %v2920
    %2922 = vst [vmem:[#allocation8] sm:$0xff] %v2921
    // Predicated region
    $region82: #{tpu_custom_call.1} parent=1 // pred_check
      _
    $region83: #{tpu_custom_call.1} parent=1 // pred_check_branch
      %2924 = sbr.rel (0) target = $region85
    $region84: #{tpu_custom_call.1} parent=1 // pred_region
      %s2926 = ssub.s32 128, 128
      %2927 = vsyncadd [#allocation5], %s2926
      %s2929 = sshll.u32 [#allocation8], 4
      %s2930 = int_to_ptr.vmem [resolvable:$true] %s2929
      %2932 = dma.vmem_to_hbm [thread:$0]  %s2930, 128, %s18, [#allocation5]
    $region85: #{tpu_custom_call.1} parent=1 // pred_fallthru
      _
    // Predicated region
    $region86: #{tpu_custom_call.1} parent=1 // pred_check
      _
    $region87: #{tpu_custom_call.1} parent=1 // pred_check_branch
      %2934 = sbr.rel (0) target = $region89
    $region88: #{tpu_custom_call.1} parent=1 // pred_region
      _
    $region89: #{tpu_custom_call.1} parent=1 // pred_fallthru
      _
    // Predicated region
    $region90: #{tpu_custom_call.1} parent=1 // pred_check
      _
    $region91: #{tpu_custom_call.1} parent=1 // pred_check_branch
      %2936 = sbr.rel (0) target = $region93
    $region92: #{tpu_custom_call.1} parent=1 // pred_region
      %2937 = dma.done [#allocation5], 128
    $region93: #{tpu_custom_call.1} parent=1 // pred_fallthru
      _
    // Predicated region
    $region94: #{tpu_custom_call.1} parent=1 // pred_check
      _
    $region95: #{tpu_custom_call.1} parent=1 // pred_check_branch
      %2939 = sbr.rel (0) target = $region97
    $region96: #{tpu_custom_call.1} parent=1 // pred_region
      _
    $region97: #{tpu_custom_call.1} parent=1 // pred_fallthru
      _
    %2940 = vsyncpa [#allocation4], 1
    %2941 = vsyncpa [#allocation7], 1
    %2942 = vsyncpa [#allocation5], 1

</llo_original>
